<compile_context>
chip_gen: v7x
topology: tpu7x:2x2x1
jax: 0.10.0
libtpu: 0.0.40
codegen_flags: <defaults>
</compile_context>

<pallas_src>
import functools
import math

import jax
import jax.numpy as jnp
from jax import lax
from jax.experimental import pallas as pl
from jax.experimental.pallas import tpu as pltpu

LANES = 128        # anchors per lane row
CHUNK = 16         # sublane rows per inner fori_loop iteration (bf16 (16,128) tile aligned)
TR_MAX = 128       # max sublane rows per grid step (128*128 = 16384 anchors)
CORE_SPLITS = 2    # leading "parallel" grid axis -> 2 TensorCores on v7x, harmless elsewhere
_EPS = 1e-7


def _round_up(x, m):
    return (x + m - 1) // m * m


def _rbbox_loss_kernel(feats_ref, pd_ref, iou_out_ref, dfl_out_ref, *, reg_max, tr):
    """One grid step processes tr*128 anchors.

    feats_ref   : (14, tr, 128) f32           per-anchor scalars (see wrapper layout)
    pd_ref      : (4, reg_max, tr, 128)       DFL logits (bf16 or f32), anchors on the lane axis
    iou_out_ref : (1, 16, 128) f32            lane-dense partial sums of (1-iou)*w  (resident acc)
    dfl_out_ref : (1, 16, 128) f32            lane-dense partial sums of dfl*w      (resident acc)
    """
    step = pl.program_id(1)

    @pl.when(step == 0)
    def _init():
        iou_out_ref[...] = jnp.zeros_like(iou_out_ref)
        dfl_out_ref[...] = jnp.zeros_like(dfl_out_ref)

    hi = reg_max - 1 - 0.01
    n_chunks = tr // CHUNK

    def chunk_body(ci, carry):
        r0 = pl.multiple_of(ci * CHUNK, CHUNK)
        rows = pl.ds(r0, CHUNK)

        px = feats_ref[0, rows, :]
        py = feats_ref[1, rows, :]
        pw = feats_ref[2, rows, :]
        ph = feats_ref[3, rows, :]
        pt = feats_ref[4, rows, :]
        tx = feats_ref[5, rows, :]
        ty = feats_ref[6, rows, :]
        tw = feats_ref[7, rows, :]
        th = feats_ref[8, rows, :]
        tt = feats_ref[9, rows, :]
        ax = feats_ref[10, rows, :]
        ay = feats_ref[11, rows, :]
        w = feats_ref[12, rows, :]
        fg_m = feats_ref[13, rows, :] > 0.5

        # ---- probiou (rotated-box probabilistic IoU); we need (1 - iou) directly ----
        def cov(bw, bh, ang):
            a = bw * bw * (1.0 / 12.0)
            b = bh * bh * (1.0 / 12.0)
            c = jnp.cos(ang)
            s = jnp.sin(ang)
            c2 = c * c
            s2 = s * s
            return a * c2 + b * s2, a * s2 + b * c2, (a - b) * c * s

        a1, b1, c1 = cov(pw, ph, pt)
        a2, b2, c2 = cov(tw, th, tt)
        sa = a1 + a2
        sb = b1 + b2
        sc = c1 + c2
        den0 = jnp.maximum(sa * sb - sc * sc, 0.0)   # fp-rounding guard (mathematically >= 0)
        inv_den = 1.0 / (den0 + _EPS)                # shared by t1 and t2
        dx = px - tx
        dy = py - ty
        t1 = (sa * dy * dy + sb * dx * dx) * inv_den * 0.25
        t2 = (sc * (-dx) * dy) * inv_den * 0.5
        det1 = jnp.maximum(a1 * b1 - c1 * c1, 0.0)
        det2 = jnp.maximum(a2 * b2 - c2 * c2, 0.0)
        t3 = 0.5 * jnp.log(den0 / (4.0 * jnp.sqrt(det1 * det2) + _EPS) + _EPS)
        bd = jnp.clip(t1 + t2 + t3, _EPS, 100.0)
        one_minus_iou = jnp.sqrt(1.0 - jnp.exp(-bd) + _EPS)    # == 1 - iou
        iou_out_ref[0] += jnp.where(fg_m, one_minus_iou * w, 0.0)

        # ---- DFL: target ltrb distances from the axis-aligned part of the target box ----
        hw_ = tw * 0.5
        hh_ = th * 0.5
        dists = (
            jnp.clip(ax - (tx - hw_), 0.0, hi),   # left
            jnp.clip(ay - (ty - hh_), 0.0, hi),   # top
            jnp.clip((tx + hw_) - ax, 0.0, hi),   # right
            jnp.clip((ty + hh_) - ay, 0.0, hi),   # bottom
        )

        dfl_sum = jnp.zeros_like(w)
        for s in range(4):
            t = dists[s]

            # pass 1: running max over bins in the transport dtype (max is exact in bf16),
            # widened to f32 exactly once.
            m_n = pd_ref[s, 0, rows, :]
            for j in range(1, reg_max):
                m_n = jnp.maximum(m_n, pd_ref[s, j, rows, :])
            m = m_n.astype(jnp.float32)

            # pass 2: logsumexp + fused hat-weight soft-target gather.
            # CE(tl)*wl + CE(tr)*wr == lse - sum_j p_j * max(1 - |t - j|, 0)
            sum_e = jnp.zeros_like(m)
            soft = jnp.zeros_like(m)
            for j in range(reg_max):
                pj = pd_ref[s, j, rows, :].astype(jnp.float32)
                sum_e = sum_e + jnp.exp(pj - m)
                soft = soft + pj * jnp.maximum(1.0 - jnp.abs(t - float(j)), 0.0)
            dfl_sum = dfl_sum + (m + jnp.log(sum_e) - soft)

        dfl_out_ref[0] += jnp.where(fg_m, dfl_sum * 0.25 * w, 0.0)
        return carry

    lax.fori_loop(0, n_chunks, chunk_body, 0)


def rotated_bbox_loss(pred_dist, pred_bboxes, anchor_points, target_bboxes,
                      target_scores, target_scores_sum, fg_mask, reg_max=16,
                      pd_dtype=jnp.bfloat16):
    """Pallas forward of RotatedBboxLoss. Returns (loss_iou, loss_dfl) scalars."""
    B, A, _ = pred_bboxes.shape
    N = B * A

    # Per-anchor classification weight: class-axis reduce kept as cheap fused XLA glue.
    weight = target_scores.sum(-1).reshape(N, 1).astype(jnp.float32)
    fg = fg_mask.reshape(N, 1).astype(jnp.float32)
    anch = jnp.broadcast_to(anchor_points[None, :, :], (B, A, 2)).reshape(N, 2).astype(jnp.float32)
    pb = pred_bboxes.reshape(N, 5).astype(jnp.float32)
    tb = target_bboxes.reshape(N, 5).astype(jnp.float32)

    # --- tiling: pad anchors to CORE_SPLITS * steps * tr * 128, tr a multiple of 16 ---
    r_min = max(pl.cdiv(N, LANES), 1)
    tr = min(TR_MAX, _round_up(pl.cdiv(r_min, CORE_SPLITS), CHUNK))
    n_pad = _round_up(N, CORE_SPLITS * tr * LANES)
    rows = n_pad // LANES
    steps = rows // (CORE_SPLITS * tr)

    # feats: single fused concat + pad + transpose -> (14, rows, 128) f32 (padded anchors: fg=0)
    feats = jnp.concatenate([pb, tb, anch, weight, fg], axis=-1)      # (N, 14)
    feats = jnp.pad(feats, ((0, n_pad - N), (0, 0)))
    feats = feats.reshape(rows, LANES, 14).transpose(2, 0, 1)

    # DFL logits -> (4, reg_max, rows, 128); cast to the transport dtype BEFORE the layout
    # transpose so the XLA round trip and the kernel DMA both move half the bytes (bf16 default).
    # TODO(synk): emit pred_dist from the detection head already as (4, reg_max, N) to drop this
    # transpose entirely.
    pd = pred_dist.reshape(N, 4, reg_max).astype(pd_dtype)
    pd = jnp.pad(pd, ((0, n_pad - N), (0, 0), (0, 0)))
    pd = pd.reshape(rows, LANES, 4, reg_max).transpose(2, 3, 0, 1)    # (4, reg_max, rows, 128)

    kernel = functools.partial(_rbbox_loss_kernel, reg_max=reg_max, tr=tr)
    iou_parts, dfl_parts = pl.pallas_call(
        kernel,
        out_shape=(jax.ShapeDtypeStruct((CORE_SPLITS, CHUNK, LANES), jnp.float32),
                   jax.ShapeDtypeStruct((CORE_SPLITS, CHUNK, LANES), jnp.float32)),
        grid_spec=pltpu.PrefetchScalarGridSpec(
            num_scalar_prefetch=0,
            grid=(CORE_SPLITS, steps),
            in_specs=[
                pl.BlockSpec((14, tr, LANES), lambda c, i: (0, c * steps + i, 0)),
                pl.BlockSpec((4, reg_max, tr, LANES), lambda c, i: (0, 0, c * steps + i, 0)),
            ],
            out_specs=[
                pl.BlockSpec((1, CHUNK, LANES), lambda c, i: (c, 0, 0)),
                pl.BlockSpec((1, CHUNK, LANES), lambda c, i: (c, 0, 0)),
            ],
        ),
        compiler_params=pltpu.CompilerParams(
            dimension_semantics=("parallel", "arbitrary"),
        ),
    )(feats, pd)

    tss = jnp.asarray(target_scores_sum, jnp.float32)
    return jnp.sum(iou_parts) / tss, jnp.sum(dfl_parts) / tss


def _rotated_bbox_loss_ref(pred_dist, pred_bboxes, anchor_points, target_bboxes,
                           target_scores, target_scores_sum, fg_mask, reg_max=16):
    """Pure-JAX reference matching the PyTorch module (masked instead of boolean-indexed)."""
    eps = 1e-7
    weight = target_scores.sum(-1)

    def cov(boxes):
        a = boxes[..., 2] ** 2 / 12.0
        b = boxes[..., 3] ** 2 / 12.0
        c = boxes[..., 4]
        cos = jnp.cos(c)
        sin = jnp.sin(c)
        return a * cos ** 2 + b * sin ** 2, a * sin ** 2 + b * cos ** 2, (a - b) * cos * sin

    x1, y1 = pred_bboxes[..., 0], pred_bboxes[..., 1]
    x2, y2 = target_bboxes[..., 0], target_bboxes[..., 1]
    a1, b1, c1 = cov(pred_bboxes)
    a2, b2, c2 = cov(target_bboxes)
    den0 = (a1 + a2) * (b1 + b2) - (c1 + c2) ** 2
    t1 = ((a1 + a2) * (y1 - y2) ** 2 + (b1 + b2) * (x1 - x2) ** 2) / (den0 + eps) * 0.25
    t2 = ((c1 + c2) * (x2 - x1) * (y1 - y2)) / (den0 + eps) * 0.5
    t3 = 0.5 * jnp.log(den0 / (4.0 * jnp.sqrt(jnp.clip(a1 * b1 - c1 ** 2, 0.0) *
                                              jnp.clip(a2 * b2 - c2 ** 2, 0.0)) + eps) + eps)
    bd = jnp.clip(t1 + t2 + t3, eps, 100.0)
    iou = 1.0 - jnp.sqrt(1.0 - jnp.exp(-bd) + eps)
    loss_iou = jnp.sum(jnp.where(fg_mask, (1.0 - iou) * weight, 0.0)) / target_scores_sum

    xy = target_bboxes[..., :2]
    wh = target_bboxes[..., 2:4]
    x1y1 = xy - wh / 2.0
    x2y2 = xy + wh / 2.0
    ltrb = jnp.concatenate([anchor_points[None] - x1y1, x2y2 - anchor_points[None]], axis=-1)
    ltrb = jnp.clip(ltrb, 0.0, reg_max - 1 - 0.01)

    B, A = fg_mask.shape
    pd = pred_dist.reshape(B, A, 4, reg_max).astype(jnp.float32)
    lse = jax.nn.logsumexp(pd, axis=-1)
    tl = jnp.floor(ltrb)
    wl = tl + 1.0 - ltrb
    wr = 1.0 - wl
    tl_i = tl.astype(jnp.int32)
    g_l = jnp.take_along_axis(pd, tl_i[..., None], axis=-1)[..., 0]
    g_r = jnp.take_along_axis(pd, tl_i[..., None] + 1, axis=-1)[..., 0]
    dfl = (lse - g_l) * wl + (lse - g_r) * wr
    loss_dfl = jnp.sum(jnp.where(fg_mask, dfl.mean(-1) * weight, 0.0)) / target_scores_sum
    return loss_iou, loss_dfl


if __name__ == "__main__":
    key = jax.random.PRNGKey(0)
    ks = jax.random.split(key, 6)

    B, HW, reg_max, nc = 2, 8, 16, 4
    A = HW * HW                                   # 64 anchors per image

    gx, gy = jnp.meshgrid(jnp.arange(HW, dtype=jnp.float32) + 0.5,
                          jnp.arange(HW, dtype=jnp.float32) + 0.5, indexing="xy")
    anchor_points = jnp.stack([gx.reshape(-1), gy.reshape(-1)], axis=-1)   # (A, 2)

    def rand_obb(k):
        k1, k2, k3 = jax.random.split(k, 3)
        xy = jax.random.uniform(k1, (B, A, 2), minval=1.0, maxval=HW - 1.0)
        wh = jax.random.uniform(k2, (B, A, 2), minval=0.5, maxval=6.0)
        ang = jax.random.uniform(k3, (B, A, 1), minval=-math.pi / 2, maxval=math.pi / 2)
        return jnp.concatenate([xy, wh, ang], axis=-1)

    pred_dist = jax.random.normal(ks[0], (B, A, 4 * reg_max), dtype=jnp.float32)
    pred_bboxes = rand_obb(ks[1])
    target_bboxes = rand_obb(ks[2])
    target_scores = jax.random.uniform(ks[3], (B, A, nc), dtype=jnp.float32)
    fg_mask = jax.random.uniform(ks[4], (B, A)) > 0.5
    target_scores_sum = jnp.maximum(target_scores.sum(), 1.0)

    ref_iou, ref_dfl = _rotated_bbox_loss_ref(
        pred_dist, pred_bboxes, anchor_points, target_bboxes,
        target_scores, target_scores_sum, fg_mask, reg_max=reg_max)

    # Exact-transport path (f32 pd): tight check against the pure-JAX reference.
    iou_f32, dfl_f32 = rotated_bbox_loss(
        pred_dist, pred_bboxes, anchor_points, target_bboxes,
        target_scores, target_scores_sum, fg_mask, reg_max=reg_max,
        pd_dtype=jnp.float32)
    jax.block_until_ready((iou_f32, dfl_f32))
    assert jnp.allclose(iou_f32, ref_iou, rtol=1e-4, atol=1e-5), (iou_f32, ref_iou)
    assert jnp.allclose(dfl_f32, ref_dfl, rtol=1e-4, atol=1e-5), (dfl_f32, ref_dfl)

    # Default fast path (bf16 pd HBM transport): tolerance accounts for bf16 logit rounding.
    loss_iou, loss_dfl = rotated_bbox_loss(
        pred_dist, pred_bboxes, anchor_points, target_bboxes,
        target_scores, target_scores_sum, fg_mask, reg_max=reg_max)
    jax.block_until_ready((loss_iou, loss_dfl))
    assert jnp.allclose(loss_iou, ref_iou, rtol=5e-3, atol=1e-3), (loss_iou, ref_iou)
    assert jnp.allclose(loss_dfl, ref_dfl, rtol=5e-3, atol=1e-3), (loss_dfl, ref_dfl)

    print("KERNEL_OK")
</pallas_src>

<mosaic_0001>
module attributes {stable_mosaic.version = 11 : i64} {
  func.func @_rbbox_loss_kernel(%arg0: i32, %arg1: i32, %arg2: memref<14x16x128xf32, #tpu.memory_space<vmem>>, %arg3: memref<4x16x16x128xf32, #tpu.memory_space<vmem>>, %arg4: memref<1x16x128xf32, #tpu.memory_space<vmem>>, %arg5: memref<1x16x128xf32, #tpu.memory_space<vmem>>) attributes {dimension_semantics = [#tpu.dimension_semantics<parallel>, #tpu.dimension_semantics<arbitrary>], iteration_bounds = array<i64: 2, 1>, scalar_prefetch = 0 : i64, scratch_operands = 0 : i64, tpu.core_type = #tpu.core_type<tc>, window_params = [{transform_indices = @transform_0, window_bounds = array<i64: 14, 16, 128>}, {transform_indices = @transform_1, window_bounds = array<i64: 4, 16, 16, 128>}, {transform_indices = @transform_2, window_bounds = array<i64: 1, 16, 128>}, {transform_indices = @transform_3, window_bounds = array<i64: 1, 16, 128>}]} {
    %c0_i32 = arith.constant 0 : i32
    %0 = arith.cmpi eq, %arg1, %c0_i32 : i32
    %1 = arith.extui %0 : i1 to i32
    %c0_i32_0 = arith.constant 0 : i32
    %2 = arith.cmpi ne, %1, %c0_i32_0 : i32
    scf.if %2 {
      %cst_645 = arith.constant 0.000000e+00 : f32
      %1437 = vector.broadcast %cst_645 : f32 to vector<1x16x128xf32>
      %c0_646 = arith.constant 0 : index
      %c0_647 = arith.constant 0 : index
      %c0_648 = arith.constant 0 : index
      %1438 = vector.load %arg4[%c0_646, %c0_647, %c0_648] : memref<1x16x128xf32, #tpu.memory_space<vmem>>, vector<1x16x128xf32>
      tpu.vector_store %arg4[%c0_646, %c0_647, %c0_648], %1437 {strides = array<i32>} : memref<1x16x128xf32, #tpu.memory_space<vmem>>, vector<1x16x128xf32>,
      %cst_649 = arith.constant 0.000000e+00 : f32
      %1439 = vector.broadcast %cst_649 : f32 to vector<1x16x128xf32>
      %c0_650 = arith.constant 0 : index
      %c0_651 = arith.constant 0 : index
      %c0_652 = arith.constant 0 : index
      %1440 = vector.load %arg5[%c0_650, %c0_651, %c0_652] : memref<1x16x128xf32, #tpu.memory_space<vmem>>, vector<1x16x128xf32>
      tpu.vector_store %arg5[%c0_650, %c0_651, %c0_652], %1439 {strides = array<i32>} : memref<1x16x128xf32, #tpu.memory_space<vmem>>, vector<1x16x128xf32>,
    } else {
    }
    %c0_i32_1 = arith.constant 0 : i32
    %c16_i32 = arith.constant 16 : i32
    %3 = arith.muli %c0_i32_1, %c16_i32 : i32
    %4 = tpu.assume_multiple %3, 16 : i32
    %c0 = arith.constant 0 : index
    %5 = arith.index_cast %4 : i32 to index
    %c0_2 = arith.constant 0 : index
    %6 = vector.load %arg2[%c0, %5, %c0_2] : memref<14x16x128xf32, #tpu.memory_space<vmem>>, vector<1x16x128xf32>
    %7 = vector.shape_cast %6 : vector<1x16x128xf32> to vector<16x128xf32>
    %c1 = arith.constant 1 : index
    %8 = arith.index_cast %4 : i32 to index
    %c0_3 = arith.constant 0 : index
    %9 = vector.load %arg2[%c1, %8, %c0_3] : memref<14x16x128xf32, #tpu.memory_space<vmem>>, vector<1x16x128xf32>
    %10 = vector.shape_cast %9 : vector<1x16x128xf32> to vector<16x128xf32>
    %c2 = arith.constant 2 : index
    %11 = arith.index_cast %4 : i32 to index
    %c0_4 = arith.constant 0 : index
    %12 = vector.load %arg2[%c2, %11, %c0_4] : memref<14x16x128xf32, #tpu.memory_space<vmem>>, vector<1x16x128xf32>
    %13 = vector.shape_cast %12 : vector<1x16x128xf32> to vector<16x128xf32>
    %c3 = arith.constant 3 : index
    %14 = arith.index_cast %4 : i32 to index
    %c0_5 = arith.constant 0 : index
    %15 = vector.load %arg2[%c3, %14, %c0_5] : memref<14x16x128xf32, #tpu.memory_space<vmem>>, vector<1x16x128xf32>
    %16 = vector.shape_cast %15 : vector<1x16x128xf32> to vector<16x128xf32>
    %c4 = arith.constant 4 : index
    %17 = arith.index_cast %4 : i32 to index
    %c0_6 = arith.constant 0 : index
    %18 = vector.load %arg2[%c4, %17, %c0_6] : memref<14x16x128xf32, #tpu.memory_space<vmem>>, vector<1x16x128xf32>
    %19 = vector.shape_cast %18 : vector<1x16x128xf32> to vector<16x128xf32>
    %c5 = arith.constant 5 : index
    %20 = arith.index_cast %4 : i32 to index
    %c0_7 = arith.constant 0 : index
    %21 = vector.load %arg2[%c5, %20, %c0_7] : memref<14x16x128xf32, #tpu.memory_space<vmem>>, vector<1x16x128xf32>
    %22 = vector.shape_cast %21 : vector<1x16x128xf32> to vector<16x128xf32>
    %c6 = arith.constant 6 : index
    %23 = arith.index_cast %4 : i32 to index
    %c0_8 = arith.constant 0 : index
    %24 = vector.load %arg2[%c6, %23, %c0_8] : memref<14x16x128xf32, #tpu.memory_space<vmem>>, vector<1x16x128xf32>
    %25 = vector.shape_cast %24 : vector<1x16x128xf32> to vector<16x128xf32>
    %c7 = arith.constant 7 : index
    %26 = arith.index_cast %4 : i32 to index
    %c0_9 = arith.constant 0 : index
    %27 = vector.load %arg2[%c7, %26, %c0_9] : memref<14x16x128xf32, #tpu.memory_space<vmem>>, vector<1x16x128xf32>
    %28 = vector.shape_cast %27 : vector<1x16x128xf32> to vector<16x128xf32>
    %c8 = arith.constant 8 : index
    %29 = arith.index_cast %4 : i32 to index
    %c0_10 = arith.constant 0 : index
    %30 = vector.load %arg2[%c8, %29, %c0_10] : memref<14x16x128xf32, #tpu.memory_space<vmem>>, vector<1x16x128xf32>
    %31 = vector.shape_cast %30 : vector<1x16x128xf32> to vector<16x128xf32>
    %c9 = arith.constant 9 : index
    %32 = arith.index_cast %4 : i32 to index
    %c0_11 = arith.constant 0 : index
    %33 = vector.load %arg2[%c9, %32, %c0_11] : memref<14x16x128xf32, #tpu.memory_space<vmem>>, vector<1x16x128xf32>
    %34 = vector.shape_cast %33 : vector<1x16x128xf32> to vector<16x128xf32>
    %c10 = arith.constant 10 : index
    %35 = arith.index_cast %4 : i32 to index
    %c0_12 = arith.constant 0 : index
    %36 = vector.load %arg2[%c10, %35, %c0_12] : memref<14x16x128xf32, #tpu.memory_space<vmem>>, vector<1x16x128xf32>
    %37 = vector.shape_cast %36 : vector<1x16x128xf32> to vector<16x128xf32>
    %c11 = arith.constant 11 : index
    %38 = arith.index_cast %4 : i32 to index
    %c0_13 = arith.constant 0 : index
    %39 = vector.load %arg2[%c11, %38, %c0_13] : memref<14x16x128xf32, #tpu.memory_space<vmem>>, vector<1x16x128xf32>
    %40 = vector.shape_cast %39 : vector<1x16x128xf32> to vector<16x128xf32>
    %c12 = arith.constant 12 : index
    %41 = arith.index_cast %4 : i32 to index
    %c0_14 = arith.constant 0 : index
    %42 = vector.load %arg2[%c12, %41, %c0_14] : memref<14x16x128xf32, #tpu.memory_space<vmem>>, vector<1x16x128xf32>
    %43 = vector.shape_cast %42 : vector<1x16x128xf32> to vector<16x128xf32>
    %c13 = arith.constant 13 : index
    %44 = arith.index_cast %4 : i32 to index
    %c0_15 = arith.constant 0 : index
    %45 = vector.load %arg2[%c13, %44, %c0_15] : memref<14x16x128xf32, #tpu.memory_space<vmem>>, vector<1x16x128xf32>
    %46 = vector.shape_cast %45 : vector<1x16x128xf32> to vector<16x128xf32>
    %cst = arith.constant 5.000000e-01 : f32
    %47 = vector.broadcast %cst : f32 to vector<16x128xf32>
    %48 = arith.cmpf ogt, %46, %47 : vector<16x128xf32>
    %49 = arith.mulf %13, %13 : vector<16x128xf32>
    %cst_16 = arith.constant 0.0833333358 : f32
    %50 = vector.broadcast %cst_16 : f32 to vector<16x128xf32>
    %51 = arith.mulf %49, %50 : vector<16x128xf32>
    %52 = arith.mulf %16, %16 : vector<16x128xf32>
    %cst_17 = arith.constant 0.0833333358 : f32
    %53 = vector.broadcast %cst_17 : f32 to vector<16x128xf32>
    %54 = arith.mulf %52, %53 : vector<16x128xf32>
    %55 = math.cos %19 : vector<16x128xf32>
    %56 = math.sin %19 : vector<16x128xf32>
    %57 = arith.mulf %55, %55 : vector<16x128xf32>
    %58 = arith.mulf %56, %56 : vector<16x128xf32>
    %59 = arith.mulf %51, %57 : vector<16x128xf32>
    %60 = arith.mulf %54, %58 : vector<16x128xf32>
    %61 = arith.addf %59, %60 : vector<16x128xf32>
    %62 = arith.mulf %51, %58 : vector<16x128xf32>
    %63 = arith.mulf %54, %57 : vector<16x128xf32>
    %64 = arith.addf %62, %63 : vector<16x128xf32>
    %65 = arith.subf %51, %54 : vector<16x128xf32>
    %66 = arith.mulf %65, %55 : vector<16x128xf32>
    %67 = arith.mulf %66, %56 : vector<16x128xf32>
    %68 = arith.mulf %28, %28 : vector<16x128xf32>
    %cst_18 = arith.constant 0.0833333358 : f32
    %69 = vector.broadcast %cst_18 : f32 to vector<16x128xf32>
    %70 = arith.mulf %68, %69 : vector<16x128xf32>
    %71 = arith.mulf %31, %31 : vector<16x128xf32>
    %cst_19 = arith.constant 0.0833333358 : f32
    %72 = vector.broadcast %cst_19 : f32 to vector<16x128xf32>
    %73 = arith.mulf %71, %72 : vector<16x128xf32>
    %74 = math.cos %34 : vector<16x128xf32>
    %75 = math.sin %34 : vector<16x128xf32>
    %76 = arith.mulf %74, %74 : vector<16x128xf32>
    %77 = arith.mulf %75, %75 : vector<16x128xf32>
    %78 = arith.mulf %70, %76 : vector<16x128xf32>
    %79 = arith.mulf %73, %77 : vector<16x128xf32>
    %80 = arith.addf %78, %79 : vector<16x128xf32>
    %81 = arith.mulf %70, %77 : vector<16x128xf32>
    %82 = arith.mulf %73, %76 : vector<16x128xf32>
    %83 = arith.addf %81, %82 : vector<16x128xf32>
    %84 = arith.subf %70, %73 : vector<16x128xf32>
    %85 = arith.mulf %84, %74 : vector<16x128xf32>
    %86 = arith.mulf %85, %75 : vector<16x128xf32>
    %87 = arith.addf %61, %80 : vector<16x128xf32>
    %88 = arith.addf %64, %83 : vector<16x128xf32>
    %89 = arith.addf %67, %86 : vector<16x128xf32>
    %90 = arith.mulf %87, %88 : vector<16x128xf32>
    %91 = arith.mulf %89, %89 : vector<16x128xf32>
    %92 = arith.subf %90, %91 : vector<16x128xf32>
    %cst_20 = arith.constant 0.000000e+00 : f32
    %93 = vector.broadcast %cst_20 : f32 to vector<16x128xf32>
    %94 = arith.maximumf %92, %93 : vector<16x128xf32>
    %cst_21 = arith.constant 1.000000e-07 : f32
    %95 = vector.broadcast %cst_21 : f32 to vector<16x128xf32>
    %96 = arith.addf %94, %95 : vector<16x128xf32>
    %cst_22 = arith.constant 1.000000e+00 : f32
    %97 = vector.broadcast %cst_22 : f32 to vector<16x128xf32>
    %98 = arith.divf %97, %96 : vector<16x128xf32>
    %99 = arith.subf %7, %22 : vector<16x128xf32>
    %100 = arith.subf %10, %25 : vector<16x128xf32>
    %101 = arith.mulf %87, %100 : vector<16x128xf32>
    %102 = arith.mulf %101, %100 : vector<16x128xf32>
    %103 = arith.mulf %88, %99 : vector<16x128xf32>
    %104 = arith.mulf %103, %99 : vector<16x128xf32>
    %105 = arith.addf %102, %104 : vector<16x128xf32>
    %106 = arith.mulf %105, %98 : vector<16x128xf32>
    %cst_23 = arith.constant 2.500000e-01 : f32
    %107 = vector.broadcast %cst_23 : f32 to vector<16x128xf32>
    %108 = arith.mulf %106, %107 : vector<16x128xf32>
    %cst_24 = arith.constant 0.000000e+00 : f32
    %109 = vector.broadcast %cst_24 : f32 to vector<16x128xf32>
    %110 = arith.subf %109, %99 : vector<16x128xf32>
    %111 = arith.mulf %89, %110 : vector<16x128xf32>
    %112 = arith.mulf %111, %100 : vector<16x128xf32>
    %113 = arith.mulf %112, %98 : vector<16x128xf32>
    %cst_25 = arith.constant 5.000000e-01 : f32
    %114 = vector.broadcast %cst_25 : f32 to vector<16x128xf32>
    %115 = arith.mulf %113, %114 : vector<16x128xf32>
    %116 = arith.mulf %61, %64 : vector<16x128xf32>
    %117 = arith.mulf %67, %67 : vector<16x128xf32>
    %118 = arith.subf %116, %117 : vector<16x128xf32>
    %cst_26 = arith.constant 0.000000e+00 : f32
    %119 = vector.broadcast %cst_26 : f32 to vector<16x128xf32>
    %120 = arith.maximumf %118, %119 : vector<16x128xf32>
    %121 = arith.mulf %80, %83 : vector<16x128xf32>
    %122 = arith.mulf %86, %86 : vector<16x128xf32>
    %123 = arith.subf %121, %122 : vector<16x128xf32>
    %cst_27 = arith.constant 0.000000e+00 : f32
    %124 = vector.broadcast %cst_27 : f32 to vector<16x128xf32>
    %125 = arith.maximumf %123, %124 : vector<16x128xf32>
    %126 = arith.mulf %120, %125 : vector<16x128xf32>
    %127 = math.sqrt %126 : vector<16x128xf32>
    %cst_28 = arith.constant 4.000000e+00 : f32
    %128 = vector.broadcast %cst_28 : f32 to vector<16x128xf32>
    %129 = arith.mulf %128, %127 : vector<16x128xf32>
    %cst_29 = arith.constant 1.000000e-07 : f32
    %130 = vector.broadcast %cst_29 : f32 to vector<16x128xf32>
    %131 = arith.addf %129, %130 : vector<16x128xf32>
    %132 = arith.divf %94, %131 : vector<16x128xf32>
    %cst_30 = arith.constant 1.000000e-07 : f32
    %133 = vector.broadcast %cst_30 : f32 to vector<16x128xf32>
    %134 = arith.addf %132, %133 : vector<16x128xf32>
    %135 = math.log %134 : vector<16x128xf32>
    %cst_31 = arith.constant 5.000000e-01 : f32
    %136 = vector.broadcast %cst_31 : f32 to vector<16x128xf32>
    %137 = arith.mulf %136, %135 : vector<16x128xf32>
    %138 = arith.addf %108, %115 : vector<16x128xf32>
    %139 = arith.addf %138, %137 : vector<16x128xf32>
    %cst_32 = arith.constant 1.000000e-07 : f32
    %cst_33 = arith.constant 1.000000e+02 : f32
    %140 = vector.broadcast %cst_32 : f32 to vector<16x128xf32>
    %141 = arith.maximumf %140, %139 : vector<16x128xf32>
    %142 = vector.broadcast %cst_33 : f32 to vector<16x128xf32>
    %143 = arith.minimumf %142, %141 : vector<16x128xf32>
    %cst_34 = arith.constant 0.000000e+00 : f32
    %144 = vector.broadcast %cst_34 : f32 to vector<16x128xf32>
    %145 = arith.subf %144, %143 : vector<16x128xf32>
    %146 = math.exp %145 : vector<16x128xf32>
    %cst_35 = arith.constant 1.000000e+00 : f32
    %147 = vector.broadcast %cst_35 : f32 to vector<16x128xf32>
    %148 = arith.subf %147, %146 : vector<16x128xf32>
    %cst_36 = arith.constant 1.000000e-07 : f32
    %149 = vector.broadcast %cst_36 : f32 to vector<16x128xf32>
    %150 = arith.addf %148, %149 : vector<16x128xf32>
    %151 = math.sqrt %150 : vector<16x128xf32>
    %c0_37 = arith.constant 0 : index
    %c0_38 = arith.constant 0 : index
    %c0_39 = arith.constant 0 : index
    %152 = vector.load %arg4[%c0_37, %c0_38, %c0_39] : memref<1x16x128xf32, #tpu.memory_space<vmem>>, vector<1x16x128xf32>
    %153 = vector.shape_cast %152 : vector<1x16x128xf32> to vector<16x128xf32>
    %154 = arith.mulf %151, %43 : vector<16x128xf32>
    %cst_40 = arith.constant 0.000000e+00 : f32
    %155 = vector.broadcast %cst_40 : f32 to vector<16x128xf32>
    %156 = arith.select %48, %154, %155 : vector<16x128xi1>, vector<16x128xf32>
    %157 = arith.addf %153, %156 : vector<16x128xf32>
    %c0_41 = arith.constant 0 : index
    %c0_42 = arith.constant 0 : index
    %c0_43 = arith.constant 0 : index
    %158 = vector.load %arg4[%c0_41, %c0_42, %c0_43] : memref<1x16x128xf32, #tpu.memory_space<vmem>>, vector<1x16x128xf32>
    %159 = vector.shape_cast %158 : vector<1x16x128xf32> to vector<16x128xf32>
    %160 = vector.shape_cast %157 : vector<16x128xf32> to vector<1x16x128xf32>
    tpu.vector_store %arg4[%c0_41, %c0_42, %c0_43], %160 {strides = array<i32>} : memref<1x16x128xf32, #tpu.memory_space<vmem>>, vector<1x16x128xf32>,
    %cst_44 = arith.constant 5.000000e-01 : f32
    %161 = vector.broadcast %cst_44 : f32 to vector<16x128xf32>
    %162 = arith.mulf %28, %161 : vector<16x128xf32>
    %cst_45 = arith.constant 5.000000e-01 : f32
    %163 = vector.broadcast %cst_45 : f32 to vector<16x128xf32>
    %164 = arith.mulf %31, %163 : vector<16x128xf32>
    %165 = arith.subf %22, %162 : vector<16x128xf32>
    %166 = arith.subf %37, %165 : vector<16x128xf32>
    %cst_46 = arith.constant 0.000000e+00 : f32
    %cst_47 = arith.constant 1.499000e+01 : f32
    %167 = vector.broadcast %cst_46 : f32 to vector<16x128xf32>
    %168 = arith.maximumf %167, %166 : vector<16x128xf32>
    %169 = vector.broadcast %cst_47 : f32 to vector<16x128xf32>
    %170 = arith.minimumf %169, %168 : vector<16x128xf32>
    %171 = arith.subf %25, %164 : vector<16x128xf32>
    %172 = arith.subf %40, %171 : vector<16x128xf32>
    %cst_48 = arith.constant 0.000000e+00 : f32
    %cst_49 = arith.constant 1.499000e+01 : f32
    %173 = vector.broadcast %cst_48 : f32 to vector<16x128xf32>
    %174 = arith.maximumf %173, %172 : vector<16x128xf32>
    %175 = vector.broadcast %cst_49 : f32 to vector<16x128xf32>
    %176 = arith.minimumf %175, %174 : vector<16x128xf32>
    %177 = arith.addf %22, %162 : vector<16x128xf32>
    %178 = arith.subf %177, %37 : vector<16x128xf32>
    %cst_50 = arith.constant 0.000000e+00 : f32
    %cst_51 = arith.constant 1.499000e+01 : f32
    %179 = vector.broadcast %cst_50 : f32 to vector<16x128xf32>
    %180 = arith.maximumf %179, %178 : vector<16x128xf32>
    %181 = vector.broadcast %cst_51 : f32 to vector<16x128xf32>
    %182 = arith.minimumf %181, %180 : vector<16x128xf32>
    %183 = arith.addf %25, %164 : vector<16x128xf32>
    %184 = arith.subf %183, %40 : vector<16x128xf32>
    %cst_52 = arith.constant 0.000000e+00 : f32
    %cst_53 = arith.constant 1.499000e+01 : f32
    %185 = vector.broadcast %cst_52 : f32 to vector<16x128xf32>
    %186 = arith.maximumf %185, %184 : vector<16x128xf32>
    %187 = vector.broadcast %cst_53 : f32 to vector<16x128xf32>
    %188 = arith.minimumf %187, %186 : vector<16x128xf32>
    %cst_54 = arith.constant 0.000000e+00 : f32
    %189 = vector.broadcast %cst_54 : f32 to vector<16x128xf32>
    %c0_55 = arith.constant 0 : index
    %c0_56 = arith.constant 0 : index
    %190 = arith.index_cast %4 : i32 to index
    %c0_57 = arith.constant 0 : index
    %191 = vector.load %arg3[%c0_55, %c0_56, %190, %c0_57] : memref<4x16x16x128xf32, #tpu.memory_space<vmem>>, vector<1x1x16x128xf32>
    %192 = vector.shape_cast %191 : vector<1x1x16x128xf32> to vector<16x128xf32>
    %c0_58 = arith.constant 0 : index
    %c1_59 = arith.constant 1 : index
    %193 = arith.index_cast %4 : i32 to index
    %c0_60 = arith.constant 0 : index
    %194 = vector.load %arg3[%c0_58, %c1_59, %193, %c0_60] : memref<4x16x16x128xf32, #tpu.memory_space<vmem>>, vector<1x1x16x128xf32>
    %195 = vector.shape_cast %194 : vector<1x1x16x128xf32> to vector<16x128xf32>
    %196 = arith.maximumf %192, %195 : vector<16x128xf32>
    %c0_61 = arith.constant 0 : index
    %c2_62 = arith.constant 2 : index
    %197 = arith.index_cast %4 : i32 to index
    %c0_63 = arith.constant 0 : index
    %198 = vector.load %arg3[%c0_61, %c2_62, %197, %c0_63] : memref<4x16x16x128xf32, #tpu.memory_space<vmem>>, vector<1x1x16x128xf32>
    %199 = vector.shape_cast %198 : vector<1x1x16x128xf32> to vector<16x128xf32>
    %200 = arith.maximumf %196, %199 : vector<16x128xf32>
    %c0_64 = arith.constant 0 : index
    %c3_65 = arith.constant 3 : index
    %201 = arith.index_cast %4 : i32 to index
    %c0_66 = arith.constant 0 : index
    %202 = vector.load %arg3[%c0_64, %c3_65, %201, %c0_66] : memref<4x16x16x128xf32, #tpu.memory_space<vmem>>, vector<1x1x16x128xf32>
    %203 = vector.shape_cast %202 : vector<1x1x16x128xf32> to vector<16x128xf32>
    %204 = arith.maximumf %200, %203 : vector<16x128xf32>
    %c0_67 = arith.constant 0 : index
    %c4_68 = arith.constant 4 : index
    %205 = arith.index_cast %4 : i32 to index
    %c0_69 = arith.constant 0 : index
    %206 = vector.load %arg3[%c0_67, %c4_68, %205, %c0_69] : memref<4x16x16x128xf32, #tpu.memory_space<vmem>>, vector<1x1x16x128xf32>
    %207 = vector.shape_cast %206 : vector<1x1x16x128xf32> to vector<16x128xf32>
    %208 = arith.maximumf %204, %207 : vector<16x128xf32>
    %c0_70 = arith.constant 0 : index
    %c5_71 = arith.constant 5 : index
    %209 = arith.index_cast %4 : i32 to index
    %c0_72 = arith.constant 0 : index
    %210 = vector.load %arg3[%c0_70, %c5_71, %209, %c0_72] : memref<4x16x16x128xf32, #tpu.memory_space<vmem>>, vector<1x1x16x128xf32>
    %211 = vector.shape_cast %210 : vector<1x1x16x128xf32> to vector<16x128xf32>
    %212 = arith.maximumf %208, %211 : vector<16x128xf32>
    %c0_73 = arith.constant 0 : index
    %c6_74 = arith.constant 6 : index
    %213 = arith.index_cast %4 : i32 to index
    %c0_75 = arith.constant 0 : index
    %214 = vector.load %arg3[%c0_73, %c6_74, %213, %c0_75] : memref<4x16x16x128xf32, #tpu.memory_space<vmem>>, vector<1x1x16x128xf32>
    %215 = vector.shape_cast %214 : vector<1x1x16x128xf32> to vector<16x128xf32>
    %216 = arith.maximumf %212, %215 : vector<16x128xf32>
    %c0_76 = arith.constant 0 : index
    %c7_77 = arith.constant 7 : index
    %217 = arith.index_cast %4 : i32 to index
    %c0_78 = arith.constant 0 : index
    %218 = vector.load %arg3[%c0_76, %c7_77, %217, %c0_78] : memref<4x16x16x128xf32, #tpu.memory_space<vmem>>, vector<1x1x16x128xf32>
    %219 = vector.shape_cast %218 : vector<1x1x16x128xf32> to vector<16x128xf32>
    %220 = arith.maximumf %216, %219 : vector<16x128xf32>
    %c0_79 = arith.constant 0 : index
    %c8_80 = arith.constant 8 : index
    %221 = arith.index_cast %4 : i32 to index
    %c0_81 = arith.constant 0 : index
    %222 = vector.load %arg3[%c0_79, %c8_80, %221, %c0_81] : memref<4x16x16x128xf32, #tpu.memory_space<vmem>>, vector<1x1x16x128xf32>
    %223 = vector.shape_cast %222 : vector<1x1x16x128xf32> to vector<16x128xf32>
    %224 = arith.maximumf %220, %223 : vector<16x128xf32>
    %c0_82 = arith.constant 0 : index
    %c9_83 = arith.constant 9 : index
    %225 = arith.index_cast %4 : i32 to index
    %c0_84 = arith.constant 0 : index
    %226 = vector.load %arg3[%c0_82, %c9_83, %225, %c0_84] : memref<4x16x16x128xf32, #tpu.memory_space<vmem>>, vector<1x1x16x128xf32>
    %227 = vector.shape_cast %226 : vector<1x1x16x128xf32> to vector<16x128xf32>
    %228 = arith.maximumf %224, %227 : vector<16x128xf32>
    %c0_85 = arith.constant 0 : index
    %c10_86 = arith.constant 10 : index
    %229 = arith.index_cast %4 : i32 to index
    %c0_87 = arith.constant 0 : index
    %230 = vector.load %arg3[%c0_85, %c10_86, %229, %c0_87] : memref<4x16x16x128xf32, #tpu.memory_space<vmem>>, vector<1x1x16x128xf32>
    %231 = vector.shape_cast %230 : vector<1x1x16x128xf32> to vector<16x128xf32>
    %232 = arith.maximumf %228, %231 : vector<16x128xf32>
    %c0_88 = arith.constant 0 : index
    %c11_89 = arith.constant 11 : index
    %233 = arith.index_cast %4 : i32 to index
    %c0_90 = arith.constant 0 : index
    %234 = vector.load %arg3[%c0_88, %c11_89, %233, %c0_90] : memref<4x16x16x128xf32, #tpu.memory_space<vmem>>, vector<1x1x16x128xf32>
    %235 = vector.shape_cast %234 : vector<1x1x16x128xf32> to vector<16x128xf32>
    %236 = arith.maximumf %232, %235 : vector<16x128xf32>
    %c0_91 = arith.constant 0 : index
    %c12_92 = arith.constant 12 : index
    %237 = arith.index_cast %4 : i32 to index
    %c0_93 = arith.constant 0 : index
    %238 = vector.load %arg3[%c0_91, %c12_92, %237, %c0_93] : memref<4x16x16x128xf32, #tpu.memory_space<vmem>>, vector<1x1x16x128xf32>
    %239 = vector.shape_cast %238 : vector<1x1x16x128xf32> to vector<16x128xf32>
    %240 = arith.maximumf %236, %239 : vector<16x128xf32>
    %c0_94 = arith.constant 0 : index
    %c13_95 = arith.constant 13 : index
    %241 = arith.index_cast %4 : i32 to index
    %c0_96 = arith.constant 0 : index
    %242 = vector.load %arg3[%c0_94, %c13_95, %241, %c0_96] : memref<4x16x16x128xf32, #tpu.memory_space<vmem>>, vector<1x1x16x128xf32>
    %243 = vector.shape_cast %242 : vector<1x1x16x128xf32> to vector<16x128xf32>
    %244 = arith.maximumf %240, %243 : vector<16x128xf32>
    %c0_97 = arith.constant 0 : index
    %c14 = arith.constant 14 : index
    %245 = arith.index_cast %4 : i32 to index
    %c0_98 = arith.constant 0 : index
    %246 = vector.load %arg3[%c0_97, %c14, %245, %c0_98] : memref<4x16x16x128xf32, #tpu.memory_space<vmem>>, vector<1x1x16x128xf32>
    %247 = vector.shape_cast %246 : vector<1x1x16x128xf32> to vector<16x128xf32>
    %248 = arith.maximumf %244, %247 : vector<16x128xf32>
    %c0_99 = arith.constant 0 : index
    %c15 = arith.constant 15 : index
    %249 = arith.index_cast %4 : i32 to index
    %c0_100 = arith.constant 0 : index
    %250 = vector.load %arg3[%c0_99, %c15, %249, %c0_100] : memref<4x16x16x128xf32, #tpu.memory_space<vmem>>, vector<1x1x16x128xf32>
    %251 = vector.shape_cast %250 : vector<1x1x16x128xf32> to vector<16x128xf32>
    %252 = arith.maximumf %248, %251 : vector<16x128xf32>
    %cst_101 = arith.constant 0.000000e+00 : f32
    %253 = vector.broadcast %cst_101 : f32 to vector<16x128xf32>
    %cst_102 = arith.constant 0.000000e+00 : f32
    %254 = vector.broadcast %cst_102 : f32 to vector<16x128xf32>
    %c0_103 = arith.constant 0 : index
    %c0_104 = arith.constant 0 : index
    %255 = arith.index_cast %4 : i32 to index
    %c0_105 = arith.constant 0 : index
    %256 = vector.load %arg3[%c0_103, %c0_104, %255, %c0_105] : memref<4x16x16x128xf32, #tpu.memory_space<vmem>>, vector<1x1x16x128xf32>
    %257 = vector.shape_cast %256 : vector<1x1x16x128xf32> to vector<16x128xf32>
    %258 = arith.subf %257, %252 : vector<16x128xf32>
    %259 = math.exp %258 : vector<16x128xf32>
    %260 = arith.addf %253, %259 : vector<16x128xf32>
    %cst_106 = arith.constant 0.000000e+00 : f32
    %261 = vector.broadcast %cst_106 : f32 to vector<16x128xf32>
    %262 = arith.subf %170, %261 : vector<16x128xf32>
    %263 = math.absf %262 : vector<16x128xf32>
    %cst_107 = arith.constant 1.000000e+00 : f32
    %264 = vector.broadcast %cst_107 : f32 to vector<16x128xf32>
    %265 = arith.subf %264, %263 : vector<16x128xf32>
    %cst_108 = arith.constant 0.000000e+00 : f32
    %266 = vector.broadcast %cst_108 : f32 to vector<16x128xf32>
    %267 = arith.maximumf %265, %266 : vector<16x128xf32>
    %268 = arith.mulf %257, %267 : vector<16x128xf32>
    %269 = arith.addf %254, %268 : vector<16x128xf32>
    %c0_109 = arith.constant 0 : index
    %c1_110 = arith.constant 1 : index
    %270 = arith.index_cast %4 : i32 to index
    %c0_111 = arith.constant 0 : index
    %271 = vector.load %arg3[%c0_109, %c1_110, %270, %c0_111] : memref<4x16x16x128xf32, #tpu.memory_space<vmem>>, vector<1x1x16x128xf32>
    %272 = vector.shape_cast %271 : vector<1x1x16x128xf32> to vector<16x128xf32>
    %273 = arith.subf %272, %252 : vector<16x128xf32>
    %274 = math.exp %273 : vector<16x128xf32>
    %275 = arith.addf %260, %274 : vector<16x128xf32>
    %cst_112 = arith.constant 1.000000e+00 : f32
    %276 = vector.broadcast %cst_112 : f32 to vector<16x128xf32>
    %277 = arith.subf %170, %276 : vector<16x128xf32>
    %278 = math.absf %277 : vector<16x128xf32>
    %cst_113 = arith.constant 1.000000e+00 : f32
    %279 = vector.broadcast %cst_113 : f32 to vector<16x128xf32>
    %280 = arith.subf %279, %278 : vector<16x128xf32>
    %cst_114 = arith.constant 0.000000e+00 : f32
    %281 = vector.broadcast %cst_114 : f32 to vector<16x128xf32>
    %282 = arith.maximumf %280, %281 : vector<16x128xf32>
    %283 = arith.mulf %272, %282 : vector<16x128xf32>
    %284 = arith.addf %269, %283 : vector<16x128xf32>
    %c0_115 = arith.constant 0 : index
    %c2_116 = arith.constant 2 : index
    %285 = arith.index_cast %4 : i32 to index
    %c0_117 = arith.constant 0 : index
    %286 = vector.load %arg3[%c0_115, %c2_116, %285, %c0_117] : memref<4x16x16x128xf32, #tpu.memory_space<vmem>>, vector<1x1x16x128xf32>
    %287 = vector.shape_cast %286 : vector<1x1x16x128xf32> to vector<16x128xf32>
    %288 = arith.subf %287, %252 : vector<16x128xf32>
    %289 = math.exp %288 : vector<16x128xf32>
    %290 = arith.addf %275, %289 : vector<16x128xf32>
    %cst_118 = arith.constant 2.000000e+00 : f32
    %291 = vector.broadcast %cst_118 : f32 to vector<16x128xf32>
    %292 = arith.subf %170, %291 : vector<16x128xf32>
    %293 = math.absf %292 : vector<16x128xf32>
    %cst_119 = arith.constant 1.000000e+00 : f32
    %294 = vector.broadcast %cst_119 : f32 to vector<16x128xf32>
    %295 = arith.subf %294, %293 : vector<16x128xf32>
    %cst_120 = arith.constant 0.000000e+00 : f32
    %296 = vector.broadcast %cst_120 : f32 to vector<16x128xf32>
    %297 = arith.maximumf %295, %296 : vector<16x128xf32>
    %298 = arith.mulf %287, %297 : vector<16x128xf32>
    %299 = arith.addf %284, %298 : vector<16x128xf32>
    %c0_121 = arith.constant 0 : index
    %c3_122 = arith.constant 3 : index
    %300 = arith.index_cast %4 : i32 to index
    %c0_123 = arith.constant 0 : index
    %301 = vector.load %arg3[%c0_121, %c3_122, %300, %c0_123] : memref<4x16x16x128xf32, #tpu.memory_space<vmem>>, vector<1x1x16x128xf32>
    %302 = vector.shape_cast %301 : vector<1x1x16x128xf32> to vector<16x128xf32>
    %303 = arith.subf %302, %252 : vector<16x128xf32>
    %304 = math.exp %303 : vector<16x128xf32>
    %305 = arith.addf %290, %304 : vector<16x128xf32>
    %cst_124 = arith.constant 3.000000e+00 : f32
    %306 = vector.broadcast %cst_124 : f32 to vector<16x128xf32>
    %307 = arith.subf %170, %306 : vector<16x128xf32>
    %308 = math.absf %307 : vector<16x128xf32>
    %cst_125 = arith.constant 1.000000e+00 : f32
    %309 = vector.broadcast %cst_125 : f32 to vector<16x128xf32>
    %310 = arith.subf %309, %308 : vector<16x128xf32>
    %cst_126 = arith.constant 0.000000e+00 : f32
    %311 = vector.broadcast %cst_126 : f32 to vector<16x128xf32>
    %312 = arith.maximumf %310, %311 : vector<16x128xf32>
    %313 = arith.mulf %302, %312 : vector<16x128xf32>
    %314 = arith.addf %299, %313 : vector<16x128xf32>
    %c0_127 = arith.constant 0 : index
    %c4_128 = arith.constant 4 : index
    %315 = arith.index_cast %4 : i32 to index
    %c0_129 = arith.constant 0 : index
    %316 = vector.load %arg3[%c0_127, %c4_128, %315, %c0_129] : memref<4x16x16x128xf32, #tpu.memory_space<vmem>>, vector<1x1x16x128xf32>
    %317 = vector.shape_cast %316 : vector<1x1x16x128xf32> to vector<16x128xf32>
    %318 = arith.subf %317, %252 : vector<16x128xf32>
    %319 = math.exp %318 : vector<16x128xf32>
    %320 = arith.addf %305, %319 : vector<16x128xf32>
    %cst_130 = arith.constant 4.000000e+00 : f32
    %321 = vector.broadcast %cst_130 : f32 to vector<16x128xf32>
    %322 = arith.subf %170, %321 : vector<16x128xf32>
    %323 = math.absf %322 : vector<16x128xf32>
    %cst_131 = arith.constant 1.000000e+00 : f32
    %324 = vector.broadcast %cst_131 : f32 to vector<16x128xf32>
    %325 = arith.subf %324, %323 : vector<16x128xf32>
    %cst_132 = arith.constant 0.000000e+00 : f32
    %326 = vector.broadcast %cst_132 : f32 to vector<16x128xf32>
    %327 = arith.maximumf %325, %326 : vector<16x128xf32>
    %328 = arith.mulf %317, %327 : vector<16x128xf32>
    %329 = arith.addf %314, %328 : vector<16x128xf32>
    %c0_133 = arith.constant 0 : index
    %c5_134 = arith.constant 5 : index
    %330 = arith.index_cast %4 : i32 to index
    %c0_135 = arith.constant 0 : index
    %331 = vector.load %arg3[%c0_133, %c5_134, %330, %c0_135] : memref<4x16x16x128xf32, #tpu.memory_space<vmem>>, vector<1x1x16x128xf32>
    %332 = vector.shape_cast %331 : vector<1x1x16x128xf32> to vector<16x128xf32>
    %333 = arith.subf %332, %252 : vector<16x128xf32>
    %334 = math.exp %333 : vector<16x128xf32>
    %335 = arith.addf %320, %334 : vector<16x128xf32>
    %cst_136 = arith.constant 5.000000e+00 : f32
    %336 = vector.broadcast %cst_136 : f32 to vector<16x128xf32>
    %337 = arith.subf %170, %336 : vector<16x128xf32>
    %338 = math.absf %337 : vector<16x128xf32>
    %cst_137 = arith.constant 1.000000e+00 : f32
    %339 = vector.broadcast %cst_137 : f32 to vector<16x128xf32>
    %340 = arith.subf %339, %338 : vector<16x128xf32>
    %cst_138 = arith.constant 0.000000e+00 : f32
    %341 = vector.broadcast %cst_138 : f32 to vector<16x128xf32>
    %342 = arith.maximumf %340, %341 : vector<16x128xf32>
    %343 = arith.mulf %332, %342 : vector<16x128xf32>
    %344 = arith.addf %329, %343 : vector<16x128xf32>
    %c0_139 = arith.constant 0 : index
    %c6_140 = arith.constant 6 : index
    %345 = arith.index_cast %4 : i32 to index
    %c0_141 = arith.constant 0 : index
    %346 = vector.load %arg3[%c0_139, %c6_140, %345, %c0_141] : memref<4x16x16x128xf32, #tpu.memory_space<vmem>>, vector<1x1x16x128xf32>
    %347 = vector.shape_cast %346 : vector<1x1x16x128xf32> to vector<16x128xf32>
    %348 = arith.subf %347, %252 : vector<16x128xf32>
    %349 = math.exp %348 : vector<16x128xf32>
    %350 = arith.addf %335, %349 : vector<16x128xf32>
    %cst_142 = arith.constant 6.000000e+00 : f32
    %351 = vector.broadcast %cst_142 : f32 to vector<16x128xf32>
    %352 = arith.subf %170, %351 : vector<16x128xf32>
    %353 = math.absf %352 : vector<16x128xf32>
    %cst_143 = arith.constant 1.000000e+00 : f32
    %354 = vector.broadcast %cst_143 : f32 to vector<16x128xf32>
    %355 = arith.subf %354, %353 : vector<16x128xf32>
    %cst_144 = arith.constant 0.000000e+00 : f32
    %356 = vector.broadcast %cst_144 : f32 to vector<16x128xf32>
    %357 = arith.maximumf %355, %356 : vector<16x128xf32>
    %358 = arith.mulf %347, %357 : vector<16x128xf32>
    %359 = arith.addf %344, %358 : vector<16x128xf32>
    %c0_145 = arith.constant 0 : index
    %c7_146 = arith.constant 7 : index
    %360 = arith.index_cast %4 : i32 to index
    %c0_147 = arith.constant 0 : index
    %361 = vector.load %arg3[%c0_145, %c7_146, %360, %c0_147] : memref<4x16x16x128xf32, #tpu.memory_space<vmem>>, vector<1x1x16x128xf32>
    %362 = vector.shape_cast %361 : vector<1x1x16x128xf32> to vector<16x128xf32>
    %363 = arith.subf %362, %252 : vector<16x128xf32>
    %364 = math.exp %363 : vector<16x128xf32>
    %365 = arith.addf %350, %364 : vector<16x128xf32>
    %cst_148 = arith.constant 7.000000e+00 : f32
    %366 = vector.broadcast %cst_148 : f32 to vector<16x128xf32>
    %367 = arith.subf %170, %366 : vector<16x128xf32>
    %368 = math.absf %367 : vector<16x128xf32>
    %cst_149 = arith.constant 1.000000e+00 : f32
    %369 = vector.broadcast %cst_149 : f32 to vector<16x128xf32>
    %370 = arith.subf %369, %368 : vector<16x128xf32>
    %cst_150 = arith.constant 0.000000e+00 : f32
    %371 = vector.broadcast %cst_150 : f32 to vector<16x128xf32>
    %372 = arith.maximumf %370, %371 : vector<16x128xf32>
    %373 = arith.mulf %362, %372 : vector<16x128xf32>
    %374 = arith.addf %359, %373 : vector<16x128xf32>
    %c0_151 = arith.constant 0 : index
    %c8_152 = arith.constant 8 : index
    %375 = arith.index_cast %4 : i32 to index
    %c0_153 = arith.constant 0 : index
    %376 = vector.load %arg3[%c0_151, %c8_152, %375, %c0_153] : memref<4x16x16x128xf32, #tpu.memory_space<vmem>>, vector<1x1x16x128xf32>
    %377 = vector.shape_cast %376 : vector<1x1x16x128xf32> to vector<16x128xf32>
    %378 = arith.subf %377, %252 : vector<16x128xf32>
    %379 = math.exp %378 : vector<16x128xf32>
    %380 = arith.addf %365, %379 : vector<16x128xf32>
    %cst_154 = arith.constant 8.000000e+00 : f32
    %381 = vector.broadcast %cst_154 : f32 to vector<16x128xf32>
    %382 = arith.subf %170, %381 : vector<16x128xf32>
    %383 = math.absf %382 : vector<16x128xf32>
    %cst_155 = arith.constant 1.000000e+00 : f32
    %384 = vector.broadcast %cst_155 : f32 to vector<16x128xf32>
    %385 = arith.subf %384, %383 : vector<16x128xf32>
    %cst_156 = arith.constant 0.000000e+00 : f32
    %386 = vector.broadcast %cst_156 : f32 to vector<16x128xf32>
    %387 = arith.maximumf %385, %386 : vector<16x128xf32>
    %388 = arith.mulf %377, %387 : vector<16x128xf32>
    %389 = arith.addf %374, %388 : vector<16x128xf32>
    %c0_157 = arith.constant 0 : index
    %c9_158 = arith.constant 9 : index
    %390 = arith.index_cast %4 : i32 to index
    %c0_159 = arith.constant 0 : index
    %391 = vector.load %arg3[%c0_157, %c9_158, %390, %c0_159] : memref<4x16x16x128xf32, #tpu.memory_space<vmem>>, vector<1x1x16x128xf32>
    %392 = vector.shape_cast %391 : vector<1x1x16x128xf32> to vector<16x128xf32>
    %393 = arith.subf %392, %252 : vector<16x128xf32>
    %394 = math.exp %393 : vector<16x128xf32>
    %395 = arith.addf %380, %394 : vector<16x128xf32>
    %cst_160 = arith.constant 9.000000e+00 : f32
    %396 = vector.broadcast %cst_160 : f32 to vector<16x128xf32>
    %397 = arith.subf %170, %396 : vector<16x128xf32>
    %398 = math.absf %397 : vector<16x128xf32>
    %cst_161 = arith.constant 1.000000e+00 : f32
    %399 = vector.broadcast %cst_161 : f32 to vector<16x128xf32>
    %400 = arith.subf %399, %398 : vector<16x128xf32>
    %cst_162 = arith.constant 0.000000e+00 : f32
    %401 = vector.broadcast %cst_162 : f32 to vector<16x128xf32>
    %402 = arith.maximumf %400, %401 : vector<16x128xf32>
    %403 = arith.mulf %392, %402 : vector<16x128xf32>
    %404 = arith.addf %389, %403 : vector<16x128xf32>
    %c0_163 = arith.constant 0 : index
    %c10_164 = arith.constant 10 : index
    %405 = arith.index_cast %4 : i32 to index
    %c0_165 = arith.constant 0 : index
    %406 = vector.load %arg3[%c0_163, %c10_164, %405, %c0_165] : memref<4x16x16x128xf32, #tpu.memory_space<vmem>>, vector<1x1x16x128xf32>
    %407 = vector.shape_cast %406 : vector<1x1x16x128xf32> to vector<16x128xf32>
    %408 = arith.subf %407, %252 : vector<16x128xf32>
    %409 = math.exp %408 : vector<16x128xf32>
    %410 = arith.addf %395, %409 : vector<16x128xf32>
    %cst_166 = arith.constant 1.000000e+01 : f32
    %411 = vector.broadcast %cst_166 : f32 to vector<16x128xf32>
    %412 = arith.subf %170, %411 : vector<16x128xf32>
    %413 = math.absf %412 : vector<16x128xf32>
    %cst_167 = arith.constant 1.000000e+00 : f32
    %414 = vector.broadcast %cst_167 : f32 to vector<16x128xf32>
    %415 = arith.subf %414, %413 : vector<16x128xf32>
    %cst_168 = arith.constant 0.000000e+00 : f32
    %416 = vector.broadcast %cst_168 : f32 to vector<16x128xf32>
    %417 = arith.maximumf %415, %416 : vector<16x128xf32>
    %418 = arith.mulf %407, %417 : vector<16x128xf32>
    %419 = arith.addf %404, %418 : vector<16x128xf32>
    %c0_169 = arith.constant 0 : index
    %c11_170 = arith.constant 11 : index
    %420 = arith.index_cast %4 : i32 to index
    %c0_171 = arith.constant 0 : index
    %421 = vector.load %arg3[%c0_169, %c11_170, %420, %c0_171] : memref<4x16x16x128xf32, #tpu.memory_space<vmem>>, vector<1x1x16x128xf32>
    %422 = vector.shape_cast %421 : vector<1x1x16x128xf32> to vector<16x128xf32>
    %423 = arith.subf %422, %252 : vector<16x128xf32>
    %424 = math.exp %423 : vector<16x128xf32>
    %425 = arith.addf %410, %424 : vector<16x128xf32>
    %cst_172 = arith.constant 1.100000e+01 : f32
    %426 = vector.broadcast %cst_172 : f32 to vector<16x128xf32>
    %427 = arith.subf %170, %426 : vector<16x128xf32>
    %428 = math.absf %427 : vector<16x128xf32>
    %cst_173 = arith.constant 1.000000e+00 : f32
    %429 = vector.broadcast %cst_173 : f32 to vector<16x128xf32>
    %430 = arith.subf %429, %428 : vector<16x128xf32>
    %cst_174 = arith.constant 0.000000e+00 : f32
    %431 = vector.broadcast %cst_174 : f32 to vector<16x128xf32>
    %432 = arith.maximumf %430, %431 : vector<16x128xf32>
    %433 = arith.mulf %422, %432 : vector<16x128xf32>
    %434 = arith.addf %419, %433 : vector<16x128xf32>
    %c0_175 = arith.constant 0 : index
    %c12_176 = arith.constant 12 : index
    %435 = arith.index_cast %4 : i32 to index
    %c0_177 = arith.constant 0 : index
    %436 = vector.load %arg3[%c0_175, %c12_176, %435, %c0_177] : memref<4x16x16x128xf32, #tpu.memory_space<vmem>>, vector<1x1x16x128xf32>
    %437 = vector.shape_cast %436 : vector<1x1x16x128xf32> to vector<16x128xf32>
    %438 = arith.subf %437, %252 : vector<16x128xf32>
    %439 = math.exp %438 : vector<16x128xf32>
    %440 = arith.addf %425, %439 : vector<16x128xf32>
    %cst_178 = arith.constant 1.200000e+01 : f32
    %441 = vector.broadcast %cst_178 : f32 to vector<16x128xf32>
    %442 = arith.subf %170, %441 : vector<16x128xf32>
    %443 = math.absf %442 : vector<16x128xf32>
    %cst_179 = arith.constant 1.000000e+00 : f32
    %444 = vector.broadcast %cst_179 : f32 to vector<16x128xf32>
    %445 = arith.subf %444, %443 : vector<16x128xf32>
    %cst_180 = arith.constant 0.000000e+00 : f32
    %446 = vector.broadcast %cst_180 : f32 to vector<16x128xf32>
    %447 = arith.maximumf %445, %446 : vector<16x128xf32>
    %448 = arith.mulf %437, %447 : vector<16x128xf32>
    %449 = arith.addf %434, %448 : vector<16x128xf32>
    %c0_181 = arith.constant 0 : index
    %c13_182 = arith.constant 13 : index
    %450 = arith.index_cast %4 : i32 to index
    %c0_183 = arith.constant 0 : index
    %451 = vector.load %arg3[%c0_181, %c13_182, %450, %c0_183] : memref<4x16x16x128xf32, #tpu.memory_space<vmem>>, vector<1x1x16x128xf32>
    %452 = vector.shape_cast %451 : vector<1x1x16x128xf32> to vector<16x128xf32>
    %453 = arith.subf %452, %252 : vector<16x128xf32>
    %454 = math.exp %453 : vector<16x128xf32>
    %455 = arith.addf %440, %454 : vector<16x128xf32>
    %cst_184 = arith.constant 1.300000e+01 : f32
    %456 = vector.broadcast %cst_184 : f32 to vector<16x128xf32>
    %457 = arith.subf %170, %456 : vector<16x128xf32>
    %458 = math.absf %457 : vector<16x128xf32>
    %cst_185 = arith.constant 1.000000e+00 : f32
    %459 = vector.broadcast %cst_185 : f32 to vector<16x128xf32>
    %460 = arith.subf %459, %458 : vector<16x128xf32>
    %cst_186 = arith.constant 0.000000e+00 : f32
    %461 = vector.broadcast %cst_186 : f32 to vector<16x128xf32>
    %462 = arith.maximumf %460, %461 : vector<16x128xf32>
    %463 = arith.mulf %452, %462 : vector<16x128xf32>
    %464 = arith.addf %449, %463 : vector<16x128xf32>
    %c0_187 = arith.constant 0 : index
    %c14_188 = arith.constant 14 : index
    %465 = arith.index_cast %4 : i32 to index
    %c0_189 = arith.constant 0 : index
    %466 = vector.load %arg3[%c0_187, %c14_188, %465, %c0_189] : memref<4x16x16x128xf32, #tpu.memory_space<vmem>>, vector<1x1x16x128xf32>
    %467 = vector.shape_cast %466 : vector<1x1x16x128xf32> to vector<16x128xf32>
    %468 = arith.subf %467, %252 : vector<16x128xf32>
    %469 = math.exp %468 : vector<16x128xf32>
    %470 = arith.addf %455, %469 : vector<16x128xf32>
    %cst_190 = arith.constant 1.400000e+01 : f32
    %471 = vector.broadcast %cst_190 : f32 to vector<16x128xf32>
    %472 = arith.subf %170, %471 : vector<16x128xf32>
    %473 = math.absf %472 : vector<16x128xf32>
    %cst_191 = arith.constant 1.000000e+00 : f32
    %474 = vector.broadcast %cst_191 : f32 to vector<16x128xf32>
    %475 = arith.subf %474, %473 : vector<16x128xf32>
    %cst_192 = arith.constant 0.000000e+00 : f32
    %476 = vector.broadcast %cst_192 : f32 to vector<16x128xf32>
    %477 = arith.maximumf %475, %476 : vector<16x128xf32>
    %478 = arith.mulf %467, %477 : vector<16x128xf32>
    %479 = arith.addf %464, %478 : vector<16x128xf32>
    %c0_193 = arith.constant 0 : index
    %c15_194 = arith.constant 15 : index
    %480 = arith.index_cast %4 : i32 to index
    %c0_195 = arith.constant 0 : index
    %481 = vector.load %arg3[%c0_193, %c15_194, %480, %c0_195] : memref<4x16x16x128xf32, #tpu.memory_space<vmem>>, vector<1x1x16x128xf32>
    %482 = vector.shape_cast %481 : vector<1x1x16x128xf32> to vector<16x128xf32>
    %483 = arith.subf %482, %252 : vector<16x128xf32>
    %484 = math.exp %483 : vector<16x128xf32>
    %485 = arith.addf %470, %484 : vector<16x128xf32>
    %cst_196 = arith.constant 1.500000e+01 : f32
    %486 = vector.broadcast %cst_196 : f32 to vector<16x128xf32>
    %487 = arith.subf %170, %486 : vector<16x128xf32>
    %488 = math.absf %487 : vector<16x128xf32>
    %cst_197 = arith.constant 1.000000e+00 : f32
    %489 = vector.broadcast %cst_197 : f32 to vector<16x128xf32>
    %490 = arith.subf %489, %488 : vector<16x128xf32>
    %cst_198 = arith.constant 0.000000e+00 : f32
    %491 = vector.broadcast %cst_198 : f32 to vector<16x128xf32>
    %492 = arith.maximumf %490, %491 : vector<16x128xf32>
    %493 = arith.mulf %482, %492 : vector<16x128xf32>
    %494 = arith.addf %479, %493 : vector<16x128xf32>
    %495 = math.log %485 : vector<16x128xf32>
    %496 = arith.addf %252, %495 : vector<16x128xf32>
    %497 = arith.subf %496, %494 : vector<16x128xf32>
    %498 = arith.addf %189, %497 : vector<16x128xf32>
    %c1_199 = arith.constant 1 : index
    %c0_200 = arith.constant 0 : index
    %499 = arith.index_cast %4 : i32 to index
    %c0_201 = arith.constant 0 : index
    %500 = vector.load %arg3[%c1_199, %c0_200, %499, %c0_201] : memref<4x16x16x128xf32, #tpu.memory_space<vmem>>, vector<1x1x16x128xf32>
    %501 = vector.shape_cast %500 : vector<1x1x16x128xf32> to vector<16x128xf32>
    %c1_202 = arith.constant 1 : index
    %c1_203 = arith.constant 1 : index
    %502 = arith.index_cast %4 : i32 to index
    %c0_204 = arith.constant 0 : index
    %503 = vector.load %arg3[%c1_202, %c1_203, %502, %c0_204] : memref<4x16x16x128xf32, #tpu.memory_space<vmem>>, vector<1x1x16x128xf32>
    %504 = vector.shape_cast %503 : vector<1x1x16x128xf32> to vector<16x128xf32>
    %505 = arith.maximumf %501, %504 : vector<16x128xf32>
    %c1_205 = arith.constant 1 : index
    %c2_206 = arith.constant 2 : index
    %506 = arith.index_cast %4 : i32 to index
    %c0_207 = arith.constant 0 : index
    %507 = vector.load %arg3[%c1_205, %c2_206, %506, %c0_207] : memref<4x16x16x128xf32, #tpu.memory_space<vmem>>, vector<1x1x16x128xf32>
    %508 = vector.shape_cast %507 : vector<1x1x16x128xf32> to vector<16x128xf32>
    %509 = arith.maximumf %505, %508 : vector<16x128xf32>
    %c1_208 = arith.constant 1 : index
    %c3_209 = arith.constant 3 : index
    %510 = arith.index_cast %4 : i32 to index
    %c0_210 = arith.constant 0 : index
    %511 = vector.load %arg3[%c1_208, %c3_209, %510, %c0_210] : memref<4x16x16x128xf32, #tpu.memory_space<vmem>>, vector<1x1x16x128xf32>
    %512 = vector.shape_cast %511 : vector<1x1x16x128xf32> to vector<16x128xf32>
    %513 = arith.maximumf %509, %512 : vector<16x128xf32>
    %c1_211 = arith.constant 1 : index
    %c4_212 = arith.constant 4 : index
    %514 = arith.index_cast %4 : i32 to index
    %c0_213 = arith.constant 0 : index
    %515 = vector.load %arg3[%c1_211, %c4_212, %514, %c0_213] : memref<4x16x16x128xf32, #tpu.memory_space<vmem>>, vector<1x1x16x128xf32>
    %516 = vector.shape_cast %515 : vector<1x1x16x128xf32> to vector<16x128xf32>
    %517 = arith.maximumf %513, %516 : vector<16x128xf32>
    %c1_214 = arith.constant 1 : index
    %c5_215 = arith.constant 5 : index
    %518 = arith.index_cast %4 : i32 to index
    %c0_216 = arith.constant 0 : index
    %519 = vector.load %arg3[%c1_214, %c5_215, %518, %c0_216] : memref<4x16x16x128xf32, #tpu.memory_space<vmem>>, vector<1x1x16x128xf32>
    %520 = vector.shape_cast %519 : vector<1x1x16x128xf32> to vector<16x128xf32>
    %521 = arith.maximumf %517, %520 : vector<16x128xf32>
    %c1_217 = arith.constant 1 : index
    %c6_218 = arith.constant 6 : index
    %522 = arith.index_cast %4 : i32 to index
    %c0_219 = arith.constant 0 : index
    %523 = vector.load %arg3[%c1_217, %c6_218, %522, %c0_219] : memref<4x16x16x128xf32, #tpu.memory_space<vmem>>, vector<1x1x16x128xf32>
    %524 = vector.shape_cast %523 : vector<1x1x16x128xf32> to vector<16x128xf32>
    %525 = arith.maximumf %521, %524 : vector<16x128xf32>
    %c1_220 = arith.constant 1 : index
    %c7_221 = arith.constant 7 : index
    %526 = arith.index_cast %4 : i32 to index
    %c0_222 = arith.constant 0 : index
    %527 = vector.load %arg3[%c1_220, %c7_221, %526, %c0_222] : memref<4x16x16x128xf32, #tpu.memory_space<vmem>>, vector<1x1x16x128xf32>
    %528 = vector.shape_cast %527 : vector<1x1x16x128xf32> to vector<16x128xf32>
    %529 = arith.maximumf %525, %528 : vector<16x128xf32>
    %c1_223 = arith.constant 1 : index
    %c8_224 = arith.constant 8 : index
    %530 = arith.index_cast %4 : i32 to index
    %c0_225 = arith.constant 0 : index
    %531 = vector.load %arg3[%c1_223, %c8_224, %530, %c0_225] : memref<4x16x16x128xf32, #tpu.memory_space<vmem>>, vector<1x1x16x128xf32>
    %532 = vector.shape_cast %531 : vector<1x1x16x128xf32> to vector<16x128xf32>
    %533 = arith.maximumf %529, %532 : vector<16x128xf32>
    %c1_226 = arith.constant 1 : index
    %c9_227 = arith.constant 9 : index
    %534 = arith.index_cast %4 : i32 to index
    %c0_228 = arith.constant 0 : index
    %535 = vector.load %arg3[%c1_226, %c9_227, %534, %c0_228] : memref<4x16x16x128xf32, #tpu.memory_space<vmem>>, vector<1x1x16x128xf32>
    %536 = vector.shape_cast %535 : vector<1x1x16x128xf32> to vector<16x128xf32>
    %537 = arith.maximumf %533, %536 : vector<16x128xf32>
    %c1_229 = arith.constant 1 : index
    %c10_230 = arith.constant 10 : index
    %538 = arith.index_cast %4 : i32 to index
    %c0_231 = arith.constant 0 : index
    %539 = vector.load %arg3[%c1_229, %c10_230, %538, %c0_231] : memref<4x16x16x128xf32, #tpu.memory_space<vmem>>, vector<1x1x16x128xf32>
    %540 = vector.shape_cast %539 : vector<1x1x16x128xf32> to vector<16x128xf32>
    %541 = arith.maximumf %537, %540 : vector<16x128xf32>
    %c1_232 = arith.constant 1 : index
    %c11_233 = arith.constant 11 : index
    %542 = arith.index_cast %4 : i32 to index
    %c0_234 = arith.constant 0 : index
    %543 = vector.load %arg3[%c1_232, %c11_233, %542, %c0_234] : memref<4x16x16x128xf32, #tpu.memory_space<vmem>>, vector<1x1x16x128xf32>
    %544 = vector.shape_cast %543 : vector<1x1x16x128xf32> to vector<16x128xf32>
    %545 = arith.maximumf %541, %544 : vector<16x128xf32>
    %c1_235 = arith.constant 1 : index
    %c12_236 = arith.constant 12 : index
    %546 = arith.index_cast %4 : i32 to index
    %c0_237 = arith.constant 0 : index
    %547 = vector.load %arg3[%c1_235, %c12_236, %546, %c0_237] : memref<4x16x16x128xf32, #tpu.memory_space<vmem>>, vector<1x1x16x128xf32>
    %548 = vector.shape_cast %547 : vector<1x1x16x128xf32> to vector<16x128xf32>
    %549 = arith.maximumf %545, %548 : vector<16x128xf32>
    %c1_238 = arith.constant 1 : index
    %c13_239 = arith.constant 13 : index
    %550 = arith.index_cast %4 : i32 to index
    %c0_240 = arith.constant 0 : index
    %551 = vector.load %arg3[%c1_238, %c13_239, %550, %c0_240] : memref<4x16x16x128xf32, #tpu.memory_space<vmem>>, vector<1x1x16x128xf32>
    %552 = vector.shape_cast %551 : vector<1x1x16x128xf32> to vector<16x128xf32>
    %553 = arith.maximumf %549, %552 : vector<16x128xf32>
    %c1_241 = arith.constant 1 : index
    %c14_242 = arith.constant 14 : index
    %554 = arith.index_cast %4 : i32 to index
    %c0_243 = arith.constant 0 : index
    %555 = vector.load %arg3[%c1_241, %c14_242, %554, %c0_243] : memref<4x16x16x128xf32, #tpu.memory_space<vmem>>, vector<1x1x16x128xf32>
    %556 = vector.shape_cast %555 : vector<1x1x16x128xf32> to vector<16x128xf32>
    %557 = arith.maximumf %553, %556 : vector<16x128xf32>
    %c1_244 = arith.constant 1 : index
    %c15_245 = arith.constant 15 : index
    %558 = arith.index_cast %4 : i32 to index
    %c0_246 = arith.constant 0 : index
    %559 = vector.load %arg3[%c1_244, %c15_245, %558, %c0_246] : memref<4x16x16x128xf32, #tpu.memory_space<vmem>>, vector<1x1x16x128xf32>
    %560 = vector.shape_cast %559 : vector<1x1x16x128xf32> to vector<16x128xf32>
    %561 = arith.maximumf %557, %560 : vector<16x128xf32>
    %cst_247 = arith.constant 0.000000e+00 : f32
    %562 = vector.broadcast %cst_247 : f32 to vector<16x128xf32>
    %cst_248 = arith.constant 0.000000e+00 : f32
    %563 = vector.broadcast %cst_248 : f32 to vector<16x128xf32>
    %c1_249 = arith.constant 1 : index
    %c0_250 = arith.constant 0 : index
    %564 = arith.index_cast %4 : i32 to index
    %c0_251 = arith.constant 0 : index
    %565 = vector.load %arg3[%c1_249, %c0_250, %564, %c0_251] : memref<4x16x16x128xf32, #tpu.memory_space<vmem>>, vector<1x1x16x128xf32>
    %566 = vector.shape_cast %565 : vector<1x1x16x128xf32> to vector<16x128xf32>
    %567 = arith.subf %566, %561 : vector<16x128xf32>
    %568 = math.exp %567 : vector<16x128xf32>
    %569 = arith.addf %562, %568 : vector<16x128xf32>
    %cst_252 = arith.constant 0.000000e+00 : f32
    %570 = vector.broadcast %cst_252 : f32 to vector<16x128xf32>
    %571 = arith.subf %176, %570 : vector<16x128xf32>
    %572 = math.absf %571 : vector<16x128xf32>
    %cst_253 = arith.constant 1.000000e+00 : f32
    %573 = vector.broadcast %cst_253 : f32 to vector<16x128xf32>
    %574 = arith.subf %573, %572 : vector<16x128xf32>
    %cst_254 = arith.constant 0.000000e+00 : f32
    %575 = vector.broadcast %cst_254 : f32 to vector<16x128xf32>
    %576 = arith.maximumf %574, %575 : vector<16x128xf32>
    %577 = arith.mulf %566, %576 : vector<16x128xf32>
    %578 = arith.addf %563, %577 : vector<16x128xf32>
    %c1_255 = arith.constant 1 : index
    %c1_256 = arith.constant 1 : index
    %579 = arith.index_cast %4 : i32 to index
    %c0_257 = arith.constant 0 : index
    %580 = vector.load %arg3[%c1_255, %c1_256, %579, %c0_257] : memref<4x16x16x128xf32, #tpu.memory_space<vmem>>, vector<1x1x16x128xf32>
    %581 = vector.shape_cast %580 : vector<1x1x16x128xf32> to vector<16x128xf32>
    %582 = arith.subf %581, %561 : vector<16x128xf32>
    %583 = math.exp %582 : vector<16x128xf32>
    %584 = arith.addf %569, %583 : vector<16x128xf32>
    %cst_258 = arith.constant 1.000000e+00 : f32
    %585 = vector.broadcast %cst_258 : f32 to vector<16x128xf32>
    %586 = arith.subf %176, %585 : vector<16x128xf32>
    %587 = math.absf %586 : vector<16x128xf32>
    %cst_259 = arith.constant 1.000000e+00 : f32
    %588 = vector.broadcast %cst_259 : f32 to vector<16x128xf32>
    %589 = arith.subf %588, %587 : vector<16x128xf32>
    %cst_260 = arith.constant 0.000000e+00 : f32
    %590 = vector.broadcast %cst_260 : f32 to vector<16x128xf32>
    %591 = arith.maximumf %589, %590 : vector<16x128xf32>
    %592 = arith.mulf %581, %591 : vector<16x128xf32>
    %593 = arith.addf %578, %592 : vector<16x128xf32>
    %c1_261 = arith.constant 1 : index
    %c2_262 = arith.constant 2 : index
    %594 = arith.index_cast %4 : i32 to index
    %c0_263 = arith.constant 0 : index
    %595 = vector.load %arg3[%c1_261, %c2_262, %594, %c0_263] : memref<4x16x16x128xf32, #tpu.memory_space<vmem>>, vector<1x1x16x128xf32>
    %596 = vector.shape_cast %595 : vector<1x1x16x128xf32> to vector<16x128xf32>
    %597 = arith.subf %596, %561 : vector<16x128xf32>
    %598 = math.exp %597 : vector<16x128xf32>
    %599 = arith.addf %584, %598 : vector<16x128xf32>
    %cst_264 = arith.constant 2.000000e+00 : f32
    %600 = vector.broadcast %cst_264 : f32 to vector<16x128xf32>
    %601 = arith.subf %176, %600 : vector<16x128xf32>
    %602 = math.absf %601 : vector<16x128xf32>
    %cst_265 = arith.constant 1.000000e+00 : f32
    %603 = vector.broadcast %cst_265 : f32 to vector<16x128xf32>
    %604 = arith.subf %603, %602 : vector<16x128xf32>
    %cst_266 = arith.constant 0.000000e+00 : f32
    %605 = vector.broadcast %cst_266 : f32 to vector<16x128xf32>
    %606 = arith.maximumf %604, %605 : vector<16x128xf32>
    %607 = arith.mulf %596, %606 : vector<16x128xf32>
    %608 = arith.addf %593, %607 : vector<16x128xf32>
    %c1_267 = arith.constant 1 : index
    %c3_268 = arith.constant 3 : index
    %609 = arith.index_cast %4 : i32 to index
    %c0_269 = arith.constant 0 : index
    %610 = vector.load %arg3[%c1_267, %c3_268, %609, %c0_269] : memref<4x16x16x128xf32, #tpu.memory_space<vmem>>, vector<1x1x16x128xf32>
    %611 = vector.shape_cast %610 : vector<1x1x16x128xf32> to vector<16x128xf32>
    %612 = arith.subf %611, %561 : vector<16x128xf32>
    %613 = math.exp %612 : vector<16x128xf32>
    %614 = arith.addf %599, %613 : vector<16x128xf32>
    %cst_270 = arith.constant 3.000000e+00 : f32
    %615 = vector.broadcast %cst_270 : f32 to vector<16x128xf32>
    %616 = arith.subf %176, %615 : vector<16x128xf32>
    %617 = math.absf %616 : vector<16x128xf32>
    %cst_271 = arith.constant 1.000000e+00 : f32
    %618 = vector.broadcast %cst_271 : f32 to vector<16x128xf32>
    %619 = arith.subf %618, %617 : vector<16x128xf32>
    %cst_272 = arith.constant 0.000000e+00 : f32
    %620 = vector.broadcast %cst_272 : f32 to vector<16x128xf32>
    %621 = arith.maximumf %619, %620 : vector<16x128xf32>
    %622 = arith.mulf %611, %621 : vector<16x128xf32>
    %623 = arith.addf %608, %622 : vector<16x128xf32>
    %c1_273 = arith.constant 1 : index
    %c4_274 = arith.constant 4 : index
    %624 = arith.index_cast %4 : i32 to index
    %c0_275 = arith.constant 0 : index
    %625 = vector.load %arg3[%c1_273, %c4_274, %624, %c0_275] : memref<4x16x16x128xf32, #tpu.memory_space<vmem>>, vector<1x1x16x128xf32>
    %626 = vector.shape_cast %625 : vector<1x1x16x128xf32> to vector<16x128xf32>
    %627 = arith.subf %626, %561 : vector<16x128xf32>
    %628 = math.exp %627 : vector<16x128xf32>
    %629 = arith.addf %614, %628 : vector<16x128xf32>
    %cst_276 = arith.constant 4.000000e+00 : f32
    %630 = vector.broadcast %cst_276 : f32 to vector<16x128xf32>
    %631 = arith.subf %176, %630 : vector<16x128xf32>
    %632 = math.absf %631 : vector<16x128xf32>
    %cst_277 = arith.constant 1.000000e+00 : f32
    %633 = vector.broadcast %cst_277 : f32 to vector<16x128xf32>
    %634 = arith.subf %633, %632 : vector<16x128xf32>
    %cst_278 = arith.constant 0.000000e+00 : f32
    %635 = vector.broadcast %cst_278 : f32 to vector<16x128xf32>
    %636 = arith.maximumf %634, %635 : vector<16x128xf32>
    %637 = arith.mulf %626, %636 : vector<16x128xf32>
    %638 = arith.addf %623, %637 : vector<16x128xf32>
    %c1_279 = arith.constant 1 : index
    %c5_280 = arith.constant 5 : index
    %639 = arith.index_cast %4 : i32 to index
    %c0_281 = arith.constant 0 : index
    %640 = vector.load %arg3[%c1_279, %c5_280, %639, %c0_281] : memref<4x16x16x128xf32, #tpu.memory_space<vmem>>, vector<1x1x16x128xf32>
    %641 = vector.shape_cast %640 : vector<1x1x16x128xf32> to vector<16x128xf32>
    %642 = arith.subf %641, %561 : vector<16x128xf32>
    %643 = math.exp %642 : vector<16x128xf32>
    %644 = arith.addf %629, %643 : vector<16x128xf32>
    %cst_282 = arith.constant 5.000000e+00 : f32
    %645 = vector.broadcast %cst_282 : f32 to vector<16x128xf32>
    %646 = arith.subf %176, %645 : vector<16x128xf32>
    %647 = math.absf %646 : vector<16x128xf32>
    %cst_283 = arith.constant 1.000000e+00 : f32
    %648 = vector.broadcast %cst_283 : f32 to vector<16x128xf32>
    %649 = arith.subf %648, %647 : vector<16x128xf32>
    %cst_284 = arith.constant 0.000000e+00 : f32
    %650 = vector.broadcast %cst_284 : f32 to vector<16x128xf32>
    %651 = arith.maximumf %649, %650 : vector<16x128xf32>
    %652 = arith.mulf %641, %651 : vector<16x128xf32>
    %653 = arith.addf %638, %652 : vector<16x128xf32>
    %c1_285 = arith.constant 1 : index
    %c6_286 = arith.constant 6 : index
    %654 = arith.index_cast %4 : i32 to index
    %c0_287 = arith.constant 0 : index
    %655 = vector.load %arg3[%c1_285, %c6_286, %654, %c0_287] : memref<4x16x16x128xf32, #tpu.memory_space<vmem>>, vector<1x1x16x128xf32>
    %656 = vector.shape_cast %655 : vector<1x1x16x128xf32> to vector<16x128xf32>
    %657 = arith.subf %656, %561 : vector<16x128xf32>
    %658 = math.exp %657 : vector<16x128xf32>
    %659 = arith.addf %644, %658 : vector<16x128xf32>
    %cst_288 = arith.constant 6.000000e+00 : f32
    %660 = vector.broadcast %cst_288 : f32 to vector<16x128xf32>
    %661 = arith.subf %176, %660 : vector<16x128xf32>
    %662 = math.absf %661 : vector<16x128xf32>
    %cst_289 = arith.constant 1.000000e+00 : f32
    %663 = vector.broadcast %cst_289 : f32 to vector<16x128xf32>
    %664 = arith.subf %663, %662 : vector<16x128xf32>
    %cst_290 = arith.constant 0.000000e+00 : f32
    %665 = vector.broadcast %cst_290 : f32 to vector<16x128xf32>
    %666 = arith.maximumf %664, %665 : vector<16x128xf32>
    %667 = arith.mulf %656, %666 : vector<16x128xf32>
    %668 = arith.addf %653, %667 : vector<16x128xf32>
    %c1_291 = arith.constant 1 : index
    %c7_292 = arith.constant 7 : index
    %669 = arith.index_cast %4 : i32 to index
    %c0_293 = arith.constant 0 : index
    %670 = vector.load %arg3[%c1_291, %c7_292, %669, %c0_293] : memref<4x16x16x128xf32, #tpu.memory_space<vmem>>, vector<1x1x16x128xf32>
    %671 = vector.shape_cast %670 : vector<1x1x16x128xf32> to vector<16x128xf32>
    %672 = arith.subf %671, %561 : vector<16x128xf32>
    %673 = math.exp %672 : vector<16x128xf32>
    %674 = arith.addf %659, %673 : vector<16x128xf32>
    %cst_294 = arith.constant 7.000000e+00 : f32
    %675 = vector.broadcast %cst_294 : f32 to vector<16x128xf32>
    %676 = arith.subf %176, %675 : vector<16x128xf32>
    %677 = math.absf %676 : vector<16x128xf32>
    %cst_295 = arith.constant 1.000000e+00 : f32
    %678 = vector.broadcast %cst_295 : f32 to vector<16x128xf32>
    %679 = arith.subf %678, %677 : vector<16x128xf32>
    %cst_296 = arith.constant 0.000000e+00 : f32
    %680 = vector.broadcast %cst_296 : f32 to vector<16x128xf32>
    %681 = arith.maximumf %679, %680 : vector<16x128xf32>
    %682 = arith.mulf %671, %681 : vector<16x128xf32>
    %683 = arith.addf %668, %682 : vector<16x128xf32>
    %c1_297 = arith.constant 1 : index
    %c8_298 = arith.constant 8 : index
    %684 = arith.index_cast %4 : i32 to index
    %c0_299 = arith.constant 0 : index
    %685 = vector.load %arg3[%c1_297, %c8_298, %684, %c0_299] : memref<4x16x16x128xf32, #tpu.memory_space<vmem>>, vector<1x1x16x128xf32>
    %686 = vector.shape_cast %685 : vector<1x1x16x128xf32> to vector<16x128xf32>
    %687 = arith.subf %686, %561 : vector<16x128xf32>
    %688 = math.exp %687 : vector<16x128xf32>
    %689 = arith.addf %674, %688 : vector<16x128xf32>
    %cst_300 = arith.constant 8.000000e+00 : f32
    %690 = vector.broadcast %cst_300 : f32 to vector<16x128xf32>
    %691 = arith.subf %176, %690 : vector<16x128xf32>
    %692 = math.absf %691 : vector<16x128xf32>
    %cst_301 = arith.constant 1.000000e+00 : f32
    %693 = vector.broadcast %cst_301 : f32 to vector<16x128xf32>
    %694 = arith.subf %693, %692 : vector<16x128xf32>
    %cst_302 = arith.constant 0.000000e+00 : f32
    %695 = vector.broadcast %cst_302 : f32 to vector<16x128xf32>
    %696 = arith.maximumf %694, %695 : vector<16x128xf32>
    %697 = arith.mulf %686, %696 : vector<16x128xf32>
    %698 = arith.addf %683, %697 : vector<16x128xf32>
    %c1_303 = arith.constant 1 : index
    %c9_304 = arith.constant 9 : index
    %699 = arith.index_cast %4 : i32 to index
    %c0_305 = arith.constant 0 : index
    %700 = vector.load %arg3[%c1_303, %c9_304, %699, %c0_305] : memref<4x16x16x128xf32, #tpu.memory_space<vmem>>, vector<1x1x16x128xf32>
    %701 = vector.shape_cast %700 : vector<1x1x16x128xf32> to vector<16x128xf32>
    %702 = arith.subf %701, %561 : vector<16x128xf32>
    %703 = math.exp %702 : vector<16x128xf32>
    %704 = arith.addf %689, %703 : vector<16x128xf32>
    %cst_306 = arith.constant 9.000000e+00 : f32
    %705 = vector.broadcast %cst_306 : f32 to vector<16x128xf32>
    %706 = arith.subf %176, %705 : vector<16x128xf32>
    %707 = math.absf %706 : vector<16x128xf32>
    %cst_307 = arith.constant 1.000000e+00 : f32
    %708 = vector.broadcast %cst_307 : f32 to vector<16x128xf32>
    %709 = arith.subf %708, %707 : vector<16x128xf32>
    %cst_308 = arith.constant 0.000000e+00 : f32
    %710 = vector.broadcast %cst_308 : f32 to vector<16x128xf32>
    %711 = arith.maximumf %709, %710 : vector<16x128xf32>
    %712 = arith.mulf %701, %711 : vector<16x128xf32>
    %713 = arith.addf %698, %712 : vector<16x128xf32>
    %c1_309 = arith.constant 1 : index
    %c10_310 = arith.constant 10 : index
    %714 = arith.index_cast %4 : i32 to index
    %c0_311 = arith.constant 0 : index
    %715 = vector.load %arg3[%c1_309, %c10_310, %714, %c0_311] : memref<4x16x16x128xf32, #tpu.memory_space<vmem>>, vector<1x1x16x128xf32>
    %716 = vector.shape_cast %715 : vector<1x1x16x128xf32> to vector<16x128xf32>
    %717 = arith.subf %716, %561 : vector<16x128xf32>
    %718 = math.exp %717 : vector<16x128xf32>
    %719 = arith.addf %704, %718 : vector<16x128xf32>
    %cst_312 = arith.constant 1.000000e+01 : f32
    %720 = vector.broadcast %cst_312 : f32 to vector<16x128xf32>
    %721 = arith.subf %176, %720 : vector<16x128xf32>
    %722 = math.absf %721 : vector<16x128xf32>
    %cst_313 = arith.constant 1.000000e+00 : f32
    %723 = vector.broadcast %cst_313 : f32 to vector<16x128xf32>
    %724 = arith.subf %723, %722 : vector<16x128xf32>
    %cst_314 = arith.constant 0.000000e+00 : f32
    %725 = vector.broadcast %cst_314 : f32 to vector<16x128xf32>
    %726 = arith.maximumf %724, %725 : vector<16x128xf32>
    %727 = arith.mulf %716, %726 : vector<16x128xf32>
    %728 = arith.addf %713, %727 : vector<16x128xf32>
    %c1_315 = arith.constant 1 : index
    %c11_316 = arith.constant 11 : index
    %729 = arith.index_cast %4 : i32 to index
    %c0_317 = arith.constant 0 : index
    %730 = vector.load %arg3[%c1_315, %c11_316, %729, %c0_317] : memref<4x16x16x128xf32, #tpu.memory_space<vmem>>, vector<1x1x16x128xf32>
    %731 = vector.shape_cast %730 : vector<1x1x16x128xf32> to vector<16x128xf32>
    %732 = arith.subf %731, %561 : vector<16x128xf32>
    %733 = math.exp %732 : vector<16x128xf32>
    %734 = arith.addf %719, %733 : vector<16x128xf32>
    %cst_318 = arith.constant 1.100000e+01 : f32
    %735 = vector.broadcast %cst_318 : f32 to vector<16x128xf32>
    %736 = arith.subf %176, %735 : vector<16x128xf32>
    %737 = math.absf %736 : vector<16x128xf32>
    %cst_319 = arith.constant 1.000000e+00 : f32
    %738 = vector.broadcast %cst_319 : f32 to vector<16x128xf32>
    %739 = arith.subf %738, %737 : vector<16x128xf32>
    %cst_320 = arith.constant 0.000000e+00 : f32
    %740 = vector.broadcast %cst_320 : f32 to vector<16x128xf32>
    %741 = arith.maximumf %739, %740 : vector<16x128xf32>
    %742 = arith.mulf %731, %741 : vector<16x128xf32>
    %743 = arith.addf %728, %742 : vector<16x128xf32>
    %c1_321 = arith.constant 1 : index
    %c12_322 = arith.constant 12 : index
    %744 = arith.index_cast %4 : i32 to index
    %c0_323 = arith.constant 0 : index
    %745 = vector.load %arg3[%c1_321, %c12_322, %744, %c0_323] : memref<4x16x16x128xf32, #tpu.memory_space<vmem>>, vector<1x1x16x128xf32>
    %746 = vector.shape_cast %745 : vector<1x1x16x128xf32> to vector<16x128xf32>
    %747 = arith.subf %746, %561 : vector<16x128xf32>
    %748 = math.exp %747 : vector<16x128xf32>
    %749 = arith.addf %734, %748 : vector<16x128xf32>
    %cst_324 = arith.constant 1.200000e+01 : f32
    %750 = vector.broadcast %cst_324 : f32 to vector<16x128xf32>
    %751 = arith.subf %176, %750 : vector<16x128xf32>
    %752 = math.absf %751 : vector<16x128xf32>
    %cst_325 = arith.constant 1.000000e+00 : f32
    %753 = vector.broadcast %cst_325 : f32 to vector<16x128xf32>
    %754 = arith.subf %753, %752 : vector<16x128xf32>
    %cst_326 = arith.constant 0.000000e+00 : f32
    %755 = vector.broadcast %cst_326 : f32 to vector<16x128xf32>
    %756 = arith.maximumf %754, %755 : vector<16x128xf32>
    %757 = arith.mulf %746, %756 : vector<16x128xf32>
    %758 = arith.addf %743, %757 : vector<16x128xf32>
    %c1_327 = arith.constant 1 : index
    %c13_328 = arith.constant 13 : index
    %759 = arith.index_cast %4 : i32 to index
    %c0_329 = arith.constant 0 : index
    %760 = vector.load %arg3[%c1_327, %c13_328, %759, %c0_329] : memref<4x16x16x128xf32, #tpu.memory_space<vmem>>, vector<1x1x16x128xf32>
    %761 = vector.shape_cast %760 : vector<1x1x16x128xf32> to vector<16x128xf32>
    %762 = arith.subf %761, %561 : vector<16x128xf32>
    %763 = math.exp %762 : vector<16x128xf32>
    %764 = arith.addf %749, %763 : vector<16x128xf32>
    %cst_330 = arith.constant 1.300000e+01 : f32
    %765 = vector.broadcast %cst_330 : f32 to vector<16x128xf32>
    %766 = arith.subf %176, %765 : vector<16x128xf32>
    %767 = math.absf %766 : vector<16x128xf32>
    %cst_331 = arith.constant 1.000000e+00 : f32
    %768 = vector.broadcast %cst_331 : f32 to vector<16x128xf32>
    %769 = arith.subf %768, %767 : vector<16x128xf32>
    %cst_332 = arith.constant 0.000000e+00 : f32
    %770 = vector.broadcast %cst_332 : f32 to vector<16x128xf32>
    %771 = arith.maximumf %769, %770 : vector<16x128xf32>
    %772 = arith.mulf %761, %771 : vector<16x128xf32>
    %773 = arith.addf %758, %772 : vector<16x128xf32>
    %c1_333 = arith.constant 1 : index
    %c14_334 = arith.constant 14 : index
    %774 = arith.index_cast %4 : i32 to index
    %c0_335 = arith.constant 0 : index
    %775 = vector.load %arg3[%c1_333, %c14_334, %774, %c0_335] : memref<4x16x16x128xf32, #tpu.memory_space<vmem>>, vector<1x1x16x128xf32>
    %776 = vector.shape_cast %775 : vector<1x1x16x128xf32> to vector<16x128xf32>
    %777 = arith.subf %776, %561 : vector<16x128xf32>
    %778 = math.exp %777 : vector<16x128xf32>
    %779 = arith.addf %764, %778 : vector<16x128xf32>
    %cst_336 = arith.constant 1.400000e+01 : f32
    %780 = vector.broadcast %cst_336 : f32 to vector<16x128xf32>
    %781 = arith.subf %176, %780 : vector<16x128xf32>
    %782 = math.absf %781 : vector<16x128xf32>
    %cst_337 = arith.constant 1.000000e+00 : f32
    %783 = vector.broadcast %cst_337 : f32 to vector<16x128xf32>
    %784 = arith.subf %783, %782 : vector<16x128xf32>
    %cst_338 = arith.constant 0.000000e+00 : f32
    %785 = vector.broadcast %cst_338 : f32 to vector<16x128xf32>
    %786 = arith.maximumf %784, %785 : vector<16x128xf32>
    %787 = arith.mulf %776, %786 : vector<16x128xf32>
    %788 = arith.addf %773, %787 : vector<16x128xf32>
    %c1_339 = arith.constant 1 : index
    %c15_340 = arith.constant 15 : index
    %789 = arith.index_cast %4 : i32 to index
    %c0_341 = arith.constant 0 : index
    %790 = vector.load %arg3[%c1_339, %c15_340, %789, %c0_341] : memref<4x16x16x128xf32, #tpu.memory_space<vmem>>, vector<1x1x16x128xf32>
    %791 = vector.shape_cast %790 : vector<1x1x16x128xf32> to vector<16x128xf32>
    %792 = arith.subf %791, %561 : vector<16x128xf32>
    %793 = math.exp %792 : vector<16x128xf32>
    %794 = arith.addf %779, %793 : vector<16x128xf32>
    %cst_342 = arith.constant 1.500000e+01 : f32
    %795 = vector.broadcast %cst_342 : f32 to vector<16x128xf32>
    %796 = arith.subf %176, %795 : vector<16x128xf32>
    %797 = math.absf %796 : vector<16x128xf32>
    %cst_343 = arith.constant 1.000000e+00 : f32
    %798 = vector.broadcast %cst_343 : f32 to vector<16x128xf32>
    %799 = arith.subf %798, %797 : vector<16x128xf32>
    %cst_344 = arith.constant 0.000000e+00 : f32
    %800 = vector.broadcast %cst_344 : f32 to vector<16x128xf32>
    %801 = arith.maximumf %799, %800 : vector<16x128xf32>
    %802 = arith.mulf %791, %801 : vector<16x128xf32>
    %803 = arith.addf %788, %802 : vector<16x128xf32>
    %804 = math.log %794 : vector<16x128xf32>
    %805 = arith.addf %561, %804 : vector<16x128xf32>
    %806 = arith.subf %805, %803 : vector<16x128xf32>
    %807 = arith.addf %498, %806 : vector<16x128xf32>
    %c2_345 = arith.constant 2 : index
    %c0_346 = arith.constant 0 : index
    %808 = arith.index_cast %4 : i32 to index
    %c0_347 = arith.constant 0 : index
    %809 = vector.load %arg3[%c2_345, %c0_346, %808, %c0_347] : memref<4x16x16x128xf32, #tpu.memory_space<vmem>>, vector<1x1x16x128xf32>
    %810 = vector.shape_cast %809 : vector<1x1x16x128xf32> to vector<16x128xf32>
    %c2_348 = arith.constant 2 : index
    %c1_349 = arith.constant 1 : index
    %811 = arith.index_cast %4 : i32 to index
    %c0_350 = arith.constant 0 : index
    %812 = vector.load %arg3[%c2_348, %c1_349, %811, %c0_350] : memref<4x16x16x128xf32, #tpu.memory_space<vmem>>, vector<1x1x16x128xf32>
    %813 = vector.shape_cast %812 : vector<1x1x16x128xf32> to vector<16x128xf32>
    %814 = arith.maximumf %810, %813 : vector<16x128xf32>
    %c2_351 = arith.constant 2 : index
    %c2_352 = arith.constant 2 : index
    %815 = arith.index_cast %4 : i32 to index
    %c0_353 = arith.constant 0 : index
    %816 = vector.load %arg3[%c2_351, %c2_352, %815, %c0_353] : memref<4x16x16x128xf32, #tpu.memory_space<vmem>>, vector<1x1x16x128xf32>
    %817 = vector.shape_cast %816 : vector<1x1x16x128xf32> to vector<16x128xf32>
    %818 = arith.maximumf %814, %817 : vector<16x128xf32>
    %c2_354 = arith.constant 2 : index
    %c3_355 = arith.constant 3 : index
    %819 = arith.index_cast %4 : i32 to index
    %c0_356 = arith.constant 0 : index
    %820 = vector.load %arg3[%c2_354, %c3_355, %819, %c0_356] : memref<4x16x16x128xf32, #tpu.memory_space<vmem>>, vector<1x1x16x128xf32>
    %821 = vector.shape_cast %820 : vector<1x1x16x128xf32> to vector<16x128xf32>
    %822 = arith.maximumf %818, %821 : vector<16x128xf32>
    %c2_357 = arith.constant 2 : index
    %c4_358 = arith.constant 4 : index
    %823 = arith.index_cast %4 : i32 to index
    %c0_359 = arith.constant 0 : index
    %824 = vector.load %arg3[%c2_357, %c4_358, %823, %c0_359] : memref<4x16x16x128xf32, #tpu.memory_space<vmem>>, vector<1x1x16x128xf32>
    %825 = vector.shape_cast %824 : vector<1x1x16x128xf32> to vector<16x128xf32>
    %826 = arith.maximumf %822, %825 : vector<16x128xf32>
    %c2_360 = arith.constant 2 : index
    %c5_361 = arith.constant 5 : index
    %827 = arith.index_cast %4 : i32 to index
    %c0_362 = arith.constant 0 : index
    %828 = vector.load %arg3[%c2_360, %c5_361, %827, %c0_362] : memref<4x16x16x128xf32, #tpu.memory_space<vmem>>, vector<1x1x16x128xf32>
    %829 = vector.shape_cast %828 : vector<1x1x16x128xf32> to vector<16x128xf32>
    %830 = arith.maximumf %826, %829 : vector<16x128xf32>
    %c2_363 = arith.constant 2 : index
    %c6_364 = arith.constant 6 : index
    %831 = arith.index_cast %4 : i32 to index
    %c0_365 = arith.constant 0 : index
    %832 = vector.load %arg3[%c2_363, %c6_364, %831, %c0_365] : memref<4x16x16x128xf32, #tpu.memory_space<vmem>>, vector<1x1x16x128xf32>
    %833 = vector.shape_cast %832 : vector<1x1x16x128xf32> to vector<16x128xf32>
    %834 = arith.maximumf %830, %833 : vector<16x128xf32>
    %c2_366 = arith.constant 2 : index
    %c7_367 = arith.constant 7 : index
    %835 = arith.index_cast %4 : i32 to index
    %c0_368 = arith.constant 0 : index
    %836 = vector.load %arg3[%c2_366, %c7_367, %835, %c0_368] : memref<4x16x16x128xf32, #tpu.memory_space<vmem>>, vector<1x1x16x128xf32>
    %837 = vector.shape_cast %836 : vector<1x1x16x128xf32> to vector<16x128xf32>
    %838 = arith.maximumf %834, %837 : vector<16x128xf32>
    %c2_369 = arith.constant 2 : index
    %c8_370 = arith.constant 8 : index
    %839 = arith.index_cast %4 : i32 to index
    %c0_371 = arith.constant 0 : index
    %840 = vector.load %arg3[%c2_369, %c8_370, %839, %c0_371] : memref<4x16x16x128xf32, #tpu.memory_space<vmem>>, vector<1x1x16x128xf32>
    %841 = vector.shape_cast %840 : vector<1x1x16x128xf32> to vector<16x128xf32>
    %842 = arith.maximumf %838, %841 : vector<16x128xf32>
    %c2_372 = arith.constant 2 : index
    %c9_373 = arith.constant 9 : index
    %843 = arith.index_cast %4 : i32 to index
    %c0_374 = arith.constant 0 : index
    %844 = vector.load %arg3[%c2_372, %c9_373, %843, %c0_374] : memref<4x16x16x128xf32, #tpu.memory_space<vmem>>, vector<1x1x16x128xf32>
    %845 = vector.shape_cast %844 : vector<1x1x16x128xf32> to vector<16x128xf32>
    %846 = arith.maximumf %842, %845 : vector<16x128xf32>
    %c2_375 = arith.constant 2 : index
    %c10_376 = arith.constant 10 : index
    %847 = arith.index_cast %4 : i32 to index
    %c0_377 = arith.constant 0 : index
    %848 = vector.load %arg3[%c2_375, %c10_376, %847, %c0_377] : memref<4x16x16x128xf32, #tpu.memory_space<vmem>>, vector<1x1x16x128xf32>
    %849 = vector.shape_cast %848 : vector<1x1x16x128xf32> to vector<16x128xf32>
    %850 = arith.maximumf %846, %849 : vector<16x128xf32>
    %c2_378 = arith.constant 2 : index
    %c11_379 = arith.constant 11 : index
    %851 = arith.index_cast %4 : i32 to index
    %c0_380 = arith.constant 0 : index
    %852 = vector.load %arg3[%c2_378, %c11_379, %851, %c0_380] : memref<4x16x16x128xf32, #tpu.memory_space<vmem>>, vector<1x1x16x128xf32>
    %853 = vector.shape_cast %852 : vector<1x1x16x128xf32> to vector<16x128xf32>
    %854 = arith.maximumf %850, %853 : vector<16x128xf32>
    %c2_381 = arith.constant 2 : index
    %c12_382 = arith.constant 12 : index
    %855 = arith.index_cast %4 : i32 to index
    %c0_383 = arith.constant 0 : index
    %856 = vector.load %arg3[%c2_381, %c12_382, %855, %c0_383] : memref<4x16x16x128xf32, #tpu.memory_space<vmem>>, vector<1x1x16x128xf32>
    %857 = vector.shape_cast %856 : vector<1x1x16x128xf32> to vector<16x128xf32>
    %858 = arith.maximumf %854, %857 : vector<16x128xf32>
    %c2_384 = arith.constant 2 : index
    %c13_385 = arith.constant 13 : index
    %859 = arith.index_cast %4 : i32 to index
    %c0_386 = arith.constant 0 : index
    %860 = vector.load %arg3[%c2_384, %c13_385, %859, %c0_386] : memref<4x16x16x128xf32, #tpu.memory_space<vmem>>, vector<1x1x16x128xf32>
    %861 = vector.shape_cast %860 : vector<1x1x16x128xf32> to vector<16x128xf32>
    %862 = arith.maximumf %858, %861 : vector<16x128xf32>
    %c2_387 = arith.constant 2 : index
    %c14_388 = arith.constant 14 : index
    %863 = arith.index_cast %4 : i32 to index
    %c0_389 = arith.constant 0 : index
    %864 = vector.load %arg3[%c2_387, %c14_388, %863, %c0_389] : memref<4x16x16x128xf32, #tpu.memory_space<vmem>>, vector<1x1x16x128xf32>
    %865 = vector.shape_cast %864 : vector<1x1x16x128xf32> to vector<16x128xf32>
    %866 = arith.maximumf %862, %865 : vector<16x128xf32>
    %c2_390 = arith.constant 2 : index
    %c15_391 = arith.constant 15 : index
    %867 = arith.index_cast %4 : i32 to index
    %c0_392 = arith.constant 0 : index
    %868 = vector.load %arg3[%c2_390, %c15_391, %867, %c0_392] : memref<4x16x16x128xf32, #tpu.memory_space<vmem>>, vector<1x1x16x128xf32>
    %869 = vector.shape_cast %868 : vector<1x1x16x128xf32> to vector<16x128xf32>
    %870 = arith.maximumf %866, %869 : vector<16x128xf32>
    %cst_393 = arith.constant 0.000000e+00 : f32
    %871 = vector.broadcast %cst_393 : f32 to vector<16x128xf32>
    %cst_394 = arith.constant 0.000000e+00 : f32
    %872 = vector.broadcast %cst_394 : f32 to vector<16x128xf32>
    %c2_395 = arith.constant 2 : index
    %c0_396 = arith.constant 0 : index
    %873 = arith.index_cast %4 : i32 to index
    %c0_397 = arith.constant 0 : index
    %874 = vector.load %arg3[%c2_395, %c0_396, %873, %c0_397] : memref<4x16x16x128xf32, #tpu.memory_space<vmem>>, vector<1x1x16x128xf32>
    %875 = vector.shape_cast %874 : vector<1x1x16x128xf32> to vector<16x128xf32>
    %876 = arith.subf %875, %870 : vector<16x128xf32>
    %877 = math.exp %876 : vector<16x128xf32>
    %878 = arith.addf %871, %877 : vector<16x128xf32>
    %cst_398 = arith.constant 0.000000e+00 : f32
    %879 = vector.broadcast %cst_398 : f32 to vector<16x128xf32>
    %880 = arith.subf %182, %879 : vector<16x128xf32>
    %881 = math.absf %880 : vector<16x128xf32>
    %cst_399 = arith.constant 1.000000e+00 : f32
    %882 = vector.broadcast %cst_399 : f32 to vector<16x128xf32>
    %883 = arith.subf %882, %881 : vector<16x128xf32>
    %cst_400 = arith.constant 0.000000e+00 : f32
    %884 = vector.broadcast %cst_400 : f32 to vector<16x128xf32>
    %885 = arith.maximumf %883, %884 : vector<16x128xf32>
    %886 = arith.mulf %875, %885 : vector<16x128xf32>
    %887 = arith.addf %872, %886 : vector<16x128xf32>
    %c2_401 = arith.constant 2 : index
    %c1_402 = arith.constant 1 : index
    %888 = arith.index_cast %4 : i32 to index
    %c0_403 = arith.constant 0 : index
    %889 = vector.load %arg3[%c2_401, %c1_402, %888, %c0_403] : memref<4x16x16x128xf32, #tpu.memory_space<vmem>>, vector<1x1x16x128xf32>
    %890 = vector.shape_cast %889 : vector<1x1x16x128xf32> to vector<16x128xf32>
    %891 = arith.subf %890, %870 : vector<16x128xf32>
    %892 = math.exp %891 : vector<16x128xf32>
    %893 = arith.addf %878, %892 : vector<16x128xf32>
    %cst_404 = arith.constant 1.000000e+00 : f32
    %894 = vector.broadcast %cst_404 : f32 to vector<16x128xf32>
    %895 = arith.subf %182, %894 : vector<16x128xf32>
    %896 = math.absf %895 : vector<16x128xf32>
    %cst_405 = arith.constant 1.000000e+00 : f32
    %897 = vector.broadcast %cst_405 : f32 to vector<16x128xf32>
    %898 = arith.subf %897, %896 : vector<16x128xf32>
    %cst_406 = arith.constant 0.000000e+00 : f32
    %899 = vector.broadcast %cst_406 : f32 to vector<16x128xf32>
    %900 = arith.maximumf %898, %899 : vector<16x128xf32>
    %901 = arith.mulf %890, %900 : vector<16x128xf32>
    %902 = arith.addf %887, %901 : vector<16x128xf32>
    %c2_407 = arith.constant 2 : index
    %c2_408 = arith.constant 2 : index
    %903 = arith.index_cast %4 : i32 to index
    %c0_409 = arith.constant 0 : index
    %904 = vector.load %arg3[%c2_407, %c2_408, %903, %c0_409] : memref<4x16x16x128xf32, #tpu.memory_space<vmem>>, vector<1x1x16x128xf32>
    %905 = vector.shape_cast %904 : vector<1x1x16x128xf32> to vector<16x128xf32>
    %906 = arith.subf %905, %870 : vector<16x128xf32>
    %907 = math.exp %906 : vector<16x128xf32>
    %908 = arith.addf %893, %907 : vector<16x128xf32>
    %cst_410 = arith.constant 2.000000e+00 : f32
    %909 = vector.broadcast %cst_410 : f32 to vector<16x128xf32>
    %910 = arith.subf %182, %909 : vector<16x128xf32>
    %911 = math.absf %910 : vector<16x128xf32>
    %cst_411 = arith.constant 1.000000e+00 : f32
    %912 = vector.broadcast %cst_411 : f32 to vector<16x128xf32>
    %913 = arith.subf %912, %911 : vector<16x128xf32>
    %cst_412 = arith.constant 0.000000e+00 : f32
    %914 = vector.broadcast %cst_412 : f32 to vector<16x128xf32>
    %915 = arith.maximumf %913, %914 : vector<16x128xf32>
    %916 = arith.mulf %905, %915 : vector<16x128xf32>
    %917 = arith.addf %902, %916 : vector<16x128xf32>
    %c2_413 = arith.constant 2 : index
    %c3_414 = arith.constant 3 : index
    %918 = arith.index_cast %4 : i32 to index
    %c0_415 = arith.constant 0 : index
    %919 = vector.load %arg3[%c2_413, %c3_414, %918, %c0_415] : memref<4x16x16x128xf32, #tpu.memory_space<vmem>>, vector<1x1x16x128xf32>
    %920 = vector.shape_cast %919 : vector<1x1x16x128xf32> to vector<16x128xf32>
    %921 = arith.subf %920, %870 : vector<16x128xf32>
    %922 = math.exp %921 : vector<16x128xf32>
    %923 = arith.addf %908, %922 : vector<16x128xf32>
    %cst_416 = arith.constant 3.000000e+00 : f32
    %924 = vector.broadcast %cst_416 : f32 to vector<16x128xf32>
    %925 = arith.subf %182, %924 : vector<16x128xf32>
    %926 = math.absf %925 : vector<16x128xf32>
    %cst_417 = arith.constant 1.000000e+00 : f32
    %927 = vector.broadcast %cst_417 : f32 to vector<16x128xf32>
    %928 = arith.subf %927, %926 : vector<16x128xf32>
    %cst_418 = arith.constant 0.000000e+00 : f32
    %929 = vector.broadcast %cst_418 : f32 to vector<16x128xf32>
    %930 = arith.maximumf %928, %929 : vector<16x128xf32>
    %931 = arith.mulf %920, %930 : vector<16x128xf32>
    %932 = arith.addf %917, %931 : vector<16x128xf32>
    %c2_419 = arith.constant 2 : index
    %c4_420 = arith.constant 4 : index
    %933 = arith.index_cast %4 : i32 to index
    %c0_421 = arith.constant 0 : index
    %934 = vector.load %arg3[%c2_419, %c4_420, %933, %c0_421] : memref<4x16x16x128xf32, #tpu.memory_space<vmem>>, vector<1x1x16x128xf32>
    %935 = vector.shape_cast %934 : vector<1x1x16x128xf32> to vector<16x128xf32>
    %936 = arith.subf %935, %870 : vector<16x128xf32>
    %937 = math.exp %936 : vector<16x128xf32>
    %938 = arith.addf %923, %937 : vector<16x128xf32>
    %cst_422 = arith.constant 4.000000e+00 : f32
    %939 = vector.broadcast %cst_422 : f32 to vector<16x128xf32>
    %940 = arith.subf %182, %939 : vector<16x128xf32>
    %941 = math.absf %940 : vector<16x128xf32>
    %cst_423 = arith.constant 1.000000e+00 : f32
    %942 = vector.broadcast %cst_423 : f32 to vector<16x128xf32>
    %943 = arith.subf %942, %941 : vector<16x128xf32>
    %cst_424 = arith.constant 0.000000e+00 : f32
    %944 = vector.broadcast %cst_424 : f32 to vector<16x128xf32>
    %945 = arith.maximumf %943, %944 : vector<16x128xf32>
    %946 = arith.mulf %935, %945 : vector<16x128xf32>
    %947 = arith.addf %932, %946 : vector<16x128xf32>
    %c2_425 = arith.constant 2 : index
    %c5_426 = arith.constant 5 : index
    %948 = arith.index_cast %4 : i32 to index
    %c0_427 = arith.constant 0 : index
    %949 = vector.load %arg3[%c2_425, %c5_426, %948, %c0_427] : memref<4x16x16x128xf32, #tpu.memory_space<vmem>>, vector<1x1x16x128xf32>
    %950 = vector.shape_cast %949 : vector<1x1x16x128xf32> to vector<16x128xf32>
    %951 = arith.subf %950, %870 : vector<16x128xf32>
    %952 = math.exp %951 : vector<16x128xf32>
    %953 = arith.addf %938, %952 : vector<16x128xf32>
    %cst_428 = arith.constant 5.000000e+00 : f32
    %954 = vector.broadcast %cst_428 : f32 to vector<16x128xf32>
    %955 = arith.subf %182, %954 : vector<16x128xf32>
    %956 = math.absf %955 : vector<16x128xf32>
    %cst_429 = arith.constant 1.000000e+00 : f32
    %957 = vector.broadcast %cst_429 : f32 to vector<16x128xf32>
    %958 = arith.subf %957, %956 : vector<16x128xf32>
    %cst_430 = arith.constant 0.000000e+00 : f32
    %959 = vector.broadcast %cst_430 : f32 to vector<16x128xf32>
    %960 = arith.maximumf %958, %959 : vector<16x128xf32>
    %961 = arith.mulf %950, %960 : vector<16x128xf32>
    %962 = arith.addf %947, %961 : vector<16x128xf32>
    %c2_431 = arith.constant 2 : index
    %c6_432 = arith.constant 6 : index
    %963 = arith.index_cast %4 : i32 to index
    %c0_433 = arith.constant 0 : index
    %964 = vector.load %arg3[%c2_431, %c6_432, %963, %c0_433] : memref<4x16x16x128xf32, #tpu.memory_space<vmem>>, vector<1x1x16x128xf32>
    %965 = vector.shape_cast %964 : vector<1x1x16x128xf32> to vector<16x128xf32>
    %966 = arith.subf %965, %870 : vector<16x128xf32>
    %967 = math.exp %966 : vector<16x128xf32>
    %968 = arith.addf %953, %967 : vector<16x128xf32>
    %cst_434 = arith.constant 6.000000e+00 : f32
    %969 = vector.broadcast %cst_434 : f32 to vector<16x128xf32>
    %970 = arith.subf %182, %969 : vector<16x128xf32>
    %971 = math.absf %970 : vector<16x128xf32>
    %cst_435 = arith.constant 1.000000e+00 : f32
    %972 = vector.broadcast %cst_435 : f32 to vector<16x128xf32>
    %973 = arith.subf %972, %971 : vector<16x128xf32>
    %cst_436 = arith.constant 0.000000e+00 : f32
    %974 = vector.broadcast %cst_436 : f32 to vector<16x128xf32>
    %975 = arith.maximumf %973, %974 : vector<16x128xf32>
    %976 = arith.mulf %965, %975 : vector<16x128xf32>
    %977 = arith.addf %962, %976 : vector<16x128xf32>
    %c2_437 = arith.constant 2 : index
    %c7_438 = arith.constant 7 : index
    %978 = arith.index_cast %4 : i32 to index
    %c0_439 = arith.constant 0 : index
    %979 = vector.load %arg3[%c2_437, %c7_438, %978, %c0_439] : memref<4x16x16x128xf32, #tpu.memory_space<vmem>>, vector<1x1x16x128xf32>
    %980 = vector.shape_cast %979 : vector<1x1x16x128xf32> to vector<16x128xf32>
    %981 = arith.subf %980, %870 : vector<16x128xf32>
    %982 = math.exp %981 : vector<16x128xf32>
    %983 = arith.addf %968, %982 : vector<16x128xf32>
    %cst_440 = arith.constant 7.000000e+00 : f32
    %984 = vector.broadcast %cst_440 : f32 to vector<16x128xf32>
    %985 = arith.subf %182, %984 : vector<16x128xf32>
    %986 = math.absf %985 : vector<16x128xf32>
    %cst_441 = arith.constant 1.000000e+00 : f32
    %987 = vector.broadcast %cst_441 : f32 to vector<16x128xf32>
    %988 = arith.subf %987, %986 : vector<16x128xf32>
    %cst_442 = arith.constant 0.000000e+00 : f32
    %989 = vector.broadcast %cst_442 : f32 to vector<16x128xf32>
    %990 = arith.maximumf %988, %989 : vector<16x128xf32>
    %991 = arith.mulf %980, %990 : vector<16x128xf32>
    %992 = arith.addf %977, %991 : vector<16x128xf32>
    %c2_443 = arith.constant 2 : index
    %c8_444 = arith.constant 8 : index
    %993 = arith.index_cast %4 : i32 to index
    %c0_445 = arith.constant 0 : index
    %994 = vector.load %arg3[%c2_443, %c8_444, %993, %c0_445] : memref<4x16x16x128xf32, #tpu.memory_space<vmem>>, vector<1x1x16x128xf32>
    %995 = vector.shape_cast %994 : vector<1x1x16x128xf32> to vector<16x128xf32>
    %996 = arith.subf %995, %870 : vector<16x128xf32>
    %997 = math.exp %996 : vector<16x128xf32>
    %998 = arith.addf %983, %997 : vector<16x128xf32>
    %cst_446 = arith.constant 8.000000e+00 : f32
    %999 = vector.broadcast %cst_446 : f32 to vector<16x128xf32>
    %1000 = arith.subf %182, %999 : vector<16x128xf32>
    %1001 = math.absf %1000 : vector<16x128xf32>
    %cst_447 = arith.constant 1.000000e+00 : f32
    %1002 = vector.broadcast %cst_447 : f32 to vector<16x128xf32>
    %1003 = arith.subf %1002, %1001 : vector<16x128xf32>
    %cst_448 = arith.constant 0.000000e+00 : f32
    %1004 = vector.broadcast %cst_448 : f32 to vector<16x128xf32>
    %1005 = arith.maximumf %1003, %1004 : vector<16x128xf32>
    %1006 = arith.mulf %995, %1005 : vector<16x128xf32>
    %1007 = arith.addf %992, %1006 : vector<16x128xf32>
    %c2_449 = arith.constant 2 : index
    %c9_450 = arith.constant 9 : index
    %1008 = arith.index_cast %4 : i32 to index
    %c0_451 = arith.constant 0 : index
    %1009 = vector.load %arg3[%c2_449, %c9_450, %1008, %c0_451] : memref<4x16x16x128xf32, #tpu.memory_space<vmem>>, vector<1x1x16x128xf32>
    %1010 = vector.shape_cast %1009 : vector<1x1x16x128xf32> to vector<16x128xf32>
    %1011 = arith.subf %1010, %870 : vector<16x128xf32>
    %1012 = math.exp %1011 : vector<16x128xf32>
    %1013 = arith.addf %998, %1012 : vector<16x128xf32>
    %cst_452 = arith.constant 9.000000e+00 : f32
    %1014 = vector.broadcast %cst_452 : f32 to vector<16x128xf32>
    %1015 = arith.subf %182, %1014 : vector<16x128xf32>
    %1016 = math.absf %1015 : vector<16x128xf32>
    %cst_453 = arith.constant 1.000000e+00 : f32
    %1017 = vector.broadcast %cst_453 : f32 to vector<16x128xf32>
    %1018 = arith.subf %1017, %1016 : vector<16x128xf32>
    %cst_454 = arith.constant 0.000000e+00 : f32
    %1019 = vector.broadcast %cst_454 : f32 to vector<16x128xf32>
    %1020 = arith.maximumf %1018, %1019 : vector<16x128xf32>
    %1021 = arith.mulf %1010, %1020 : vector<16x128xf32>
    %1022 = arith.addf %1007, %1021 : vector<16x128xf32>
    %c2_455 = arith.constant 2 : index
    %c10_456 = arith.constant 10 : index
    %1023 = arith.index_cast %4 : i32 to index
    %c0_457 = arith.constant 0 : index
    %1024 = vector.load %arg3[%c2_455, %c10_456, %1023, %c0_457] : memref<4x16x16x128xf32, #tpu.memory_space<vmem>>, vector<1x1x16x128xf32>
    %1025 = vector.shape_cast %1024 : vector<1x1x16x128xf32> to vector<16x128xf32>
    %1026 = arith.subf %1025, %870 : vector<16x128xf32>
    %1027 = math.exp %1026 : vector<16x128xf32>
    %1028 = arith.addf %1013, %1027 : vector<16x128xf32>
    %cst_458 = arith.constant 1.000000e+01 : f32
    %1029 = vector.broadcast %cst_458 : f32 to vector<16x128xf32>
    %1030 = arith.subf %182, %1029 : vector<16x128xf32>
    %1031 = math.absf %1030 : vector<16x128xf32>
    %cst_459 = arith.constant 1.000000e+00 : f32
    %1032 = vector.broadcast %cst_459 : f32 to vector<16x128xf32>
    %1033 = arith.subf %1032, %1031 : vector<16x128xf32>
    %cst_460 = arith.constant 0.000000e+00 : f32
    %1034 = vector.broadcast %cst_460 : f32 to vector<16x128xf32>
    %1035 = arith.maximumf %1033, %1034 : vector<16x128xf32>
    %1036 = arith.mulf %1025, %1035 : vector<16x128xf32>
    %1037 = arith.addf %1022, %1036 : vector<16x128xf32>
    %c2_461 = arith.constant 2 : index
    %c11_462 = arith.constant 11 : index
    %1038 = arith.index_cast %4 : i32 to index
    %c0_463 = arith.constant 0 : index
    %1039 = vector.load %arg3[%c2_461, %c11_462, %1038, %c0_463] : memref<4x16x16x128xf32, #tpu.memory_space<vmem>>, vector<1x1x16x128xf32>
    %1040 = vector.shape_cast %1039 : vector<1x1x16x128xf32> to vector<16x128xf32>
    %1041 = arith.subf %1040, %870 : vector<16x128xf32>
    %1042 = math.exp %1041 : vector<16x128xf32>
    %1043 = arith.addf %1028, %1042 : vector<16x128xf32>
    %cst_464 = arith.constant 1.100000e+01 : f32
    %1044 = vector.broadcast %cst_464 : f32 to vector<16x128xf32>
    %1045 = arith.subf %182, %1044 : vector<16x128xf32>
    %1046 = math.absf %1045 : vector<16x128xf32>
    %cst_465 = arith.constant 1.000000e+00 : f32
    %1047 = vector.broadcast %cst_465 : f32 to vector<16x128xf32>
    %1048 = arith.subf %1047, %1046 : vector<16x128xf32>
    %cst_466 = arith.constant 0.000000e+00 : f32
    %1049 = vector.broadcast %cst_466 : f32 to vector<16x128xf32>
    %1050 = arith.maximumf %1048, %1049 : vector<16x128xf32>
    %1051 = arith.mulf %1040, %1050 : vector<16x128xf32>
    %1052 = arith.addf %1037, %1051 : vector<16x128xf32>
    %c2_467 = arith.constant 2 : index
    %c12_468 = arith.constant 12 : index
    %1053 = arith.index_cast %4 : i32 to index
    %c0_469 = arith.constant 0 : index
    %1054 = vector.load %arg3[%c2_467, %c12_468, %1053, %c0_469] : memref<4x16x16x128xf32, #tpu.memory_space<vmem>>, vector<1x1x16x128xf32>
    %1055 = vector.shape_cast %1054 : vector<1x1x16x128xf32> to vector<16x128xf32>
    %1056 = arith.subf %1055, %870 : vector<16x128xf32>
    %1057 = math.exp %1056 : vector<16x128xf32>
    %1058 = arith.addf %1043, %1057 : vector<16x128xf32>
    %cst_470 = arith.constant 1.200000e+01 : f32
    %1059 = vector.broadcast %cst_470 : f32 to vector<16x128xf32>
    %1060 = arith.subf %182, %1059 : vector<16x128xf32>
    %1061 = math.absf %1060 : vector<16x128xf32>
    %cst_471 = arith.constant 1.000000e+00 : f32
    %1062 = vector.broadcast %cst_471 : f32 to vector<16x128xf32>
    %1063 = arith.subf %1062, %1061 : vector<16x128xf32>
    %cst_472 = arith.constant 0.000000e+00 : f32
    %1064 = vector.broadcast %cst_472 : f32 to vector<16x128xf32>
    %1065 = arith.maximumf %1063, %1064 : vector<16x128xf32>
    %1066 = arith.mulf %1055, %1065 : vector<16x128xf32>
    %1067 = arith.addf %1052, %1066 : vector<16x128xf32>
    %c2_473 = arith.constant 2 : index
    %c13_474 = arith.constant 13 : index
    %1068 = arith.index_cast %4 : i32 to index
    %c0_475 = arith.constant 0 : index
    %1069 = vector.load %arg3[%c2_473, %c13_474, %1068, %c0_475] : memref<4x16x16x128xf32, #tpu.memory_space<vmem>>, vector<1x1x16x128xf32>
    %1070 = vector.shape_cast %1069 : vector<1x1x16x128xf32> to vector<16x128xf32>
    %1071 = arith.subf %1070, %870 : vector<16x128xf32>
    %1072 = math.exp %1071 : vector<16x128xf32>
    %1073 = arith.addf %1058, %1072 : vector<16x128xf32>
    %cst_476 = arith.constant 1.300000e+01 : f32
    %1074 = vector.broadcast %cst_476 : f32 to vector<16x128xf32>
    %1075 = arith.subf %182, %1074 : vector<16x128xf32>
    %1076 = math.absf %1075 : vector<16x128xf32>
    %cst_477 = arith.constant 1.000000e+00 : f32
    %1077 = vector.broadcast %cst_477 : f32 to vector<16x128xf32>
    %1078 = arith.subf %1077, %1076 : vector<16x128xf32>
    %cst_478 = arith.constant 0.000000e+00 : f32
    %1079 = vector.broadcast %cst_478 : f32 to vector<16x128xf32>
    %1080 = arith.maximumf %1078, %1079 : vector<16x128xf32>
    %1081 = arith.mulf %1070, %1080 : vector<16x128xf32>
    %1082 = arith.addf %1067, %1081 : vector<16x128xf32>
    %c2_479 = arith.constant 2 : index
    %c14_480 = arith.constant 14 : index
    %1083 = arith.index_cast %4 : i32 to index
    %c0_481 = arith.constant 0 : index
    %1084 = vector.load %arg3[%c2_479, %c14_480, %1083, %c0_481] : memref<4x16x16x128xf32, #tpu.memory_space<vmem>>, vector<1x1x16x128xf32>
    %1085 = vector.shape_cast %1084 : vector<1x1x16x128xf32> to vector<16x128xf32>
    %1086 = arith.subf %1085, %870 : vector<16x128xf32>
    %1087 = math.exp %1086 : vector<16x128xf32>
    %1088 = arith.addf %1073, %1087 : vector<16x128xf32>
    %cst_482 = arith.constant 1.400000e+01 : f32
    %1089 = vector.broadcast %cst_482 : f32 to vector<16x128xf32>
    %1090 = arith.subf %182, %1089 : vector<16x128xf32>
    %1091 = math.absf %1090 : vector<16x128xf32>
    %cst_483 = arith.constant 1.000000e+00 : f32
    %1092 = vector.broadcast %cst_483 : f32 to vector<16x128xf32>
    %1093 = arith.subf %1092, %1091 : vector<16x128xf32>
    %cst_484 = arith.constant 0.000000e+00 : f32
    %1094 = vector.broadcast %cst_484 : f32 to vector<16x128xf32>
    %1095 = arith.maximumf %1093, %1094 : vector<16x128xf32>
    %1096 = arith.mulf %1085, %1095 : vector<16x128xf32>
    %1097 = arith.addf %1082, %1096 : vector<16x128xf32>
    %c2_485 = arith.constant 2 : index
    %c15_486 = arith.constant 15 : index
    %1098 = arith.index_cast %4 : i32 to index
    %c0_487 = arith.constant 0 : index
    %1099 = vector.load %arg3[%c2_485, %c15_486, %1098, %c0_487] : memref<4x16x16x128xf32, #tpu.memory_space<vmem>>, vector<1x1x16x128xf32>
    %1100 = vector.shape_cast %1099 : vector<1x1x16x128xf32> to vector<16x128xf32>
    %1101 = arith.subf %1100, %870 : vector<16x128xf32>
    %1102 = math.exp %1101 : vector<16x128xf32>
    %1103 = arith.addf %1088, %1102 : vector<16x128xf32>
    %cst_488 = arith.constant 1.500000e+01 : f32
    %1104 = vector.broadcast %cst_488 : f32 to vector<16x128xf32>
    %1105 = arith.subf %182, %1104 : vector<16x128xf32>
    %1106 = math.absf %1105 : vector<16x128xf32>
    %cst_489 = arith.constant 1.000000e+00 : f32
    %1107 = vector.broadcast %cst_489 : f32 to vector<16x128xf32>
    %1108 = arith.subf %1107, %1106 : vector<16x128xf32>
    %cst_490 = arith.constant 0.000000e+00 : f32
    %1109 = vector.broadcast %cst_490 : f32 to vector<16x128xf32>
    %1110 = arith.maximumf %1108, %1109 : vector<16x128xf32>
    %1111 = arith.mulf %1100, %1110 : vector<16x128xf32>
    %1112 = arith.addf %1097, %1111 : vector<16x128xf32>
    %1113 = math.log %1103 : vector<16x128xf32>
    %1114 = arith.addf %870, %1113 : vector<16x128xf32>
    %1115 = arith.subf %1114, %1112 : vector<16x128xf32>
    %1116 = arith.addf %807, %1115 : vector<16x128xf32>
    %c3_491 = arith.constant 3 : index
    %c0_492 = arith.constant 0 : index
    %1117 = arith.index_cast %4 : i32 to index
    %c0_493 = arith.constant 0 : index
    %1118 = vector.load %arg3[%c3_491, %c0_492, %1117, %c0_493] : memref<4x16x16x128xf32, #tpu.memory_space<vmem>>, vector<1x1x16x128xf32>
    %1119 = vector.shape_cast %1118 : vector<1x1x16x128xf32> to vector<16x128xf32>
    %c3_494 = arith.constant 3 : index
    %c1_495 = arith.constant 1 : index
    %1120 = arith.index_cast %4 : i32 to index
    %c0_496 = arith.constant 0 : index
    %1121 = vector.load %arg3[%c3_494, %c1_495, %1120, %c0_496] : memref<4x16x16x128xf32, #tpu.memory_space<vmem>>, vector<1x1x16x128xf32>
    %1122 = vector.shape_cast %1121 : vector<1x1x16x128xf32> to vector<16x128xf32>
    %1123 = arith.maximumf %1119, %1122 : vector<16x128xf32>
    %c3_497 = arith.constant 3 : index
    %c2_498 = arith.constant 2 : index
    %1124 = arith.index_cast %4 : i32 to index
    %c0_499 = arith.constant 0 : index
    %1125 = vector.load %arg3[%c3_497, %c2_498, %1124, %c0_499] : memref<4x16x16x128xf32, #tpu.memory_space<vmem>>, vector<1x1x16x128xf32>
    %1126 = vector.shape_cast %1125 : vector<1x1x16x128xf32> to vector<16x128xf32>
    %1127 = arith.maximumf %1123, %1126 : vector<16x128xf32>
    %c3_500 = arith.constant 3 : index
    %c3_501 = arith.constant 3 : index
    %1128 = arith.index_cast %4 : i32 to index
    %c0_502 = arith.constant 0 : index
    %1129 = vector.load %arg3[%c3_500, %c3_501, %1128, %c0_502] : memref<4x16x16x128xf32, #tpu.memory_space<vmem>>, vector<1x1x16x128xf32>
    %1130 = vector.shape_cast %1129 : vector<1x1x16x128xf32> to vector<16x128xf32>
    %1131 = arith.maximumf %1127, %1130 : vector<16x128xf32>
    %c3_503 = arith.constant 3 : index
    %c4_504 = arith.constant 4 : index
    %1132 = arith.index_cast %4 : i32 to index
    %c0_505 = arith.constant 0 : index
    %1133 = vector.load %arg3[%c3_503, %c4_504, %1132, %c0_505] : memref<4x16x16x128xf32, #tpu.memory_space<vmem>>, vector<1x1x16x128xf32>
    %1134 = vector.shape_cast %1133 : vector<1x1x16x128xf32> to vector<16x128xf32>
    %1135 = arith.maximumf %1131, %1134 : vector<16x128xf32>
    %c3_506 = arith.constant 3 : index
    %c5_507 = arith.constant 5 : index
    %1136 = arith.index_cast %4 : i32 to index
    %c0_508 = arith.constant 0 : index
    %1137 = vector.load %arg3[%c3_506, %c5_507, %1136, %c0_508] : memref<4x16x16x128xf32, #tpu.memory_space<vmem>>, vector<1x1x16x128xf32>
    %1138 = vector.shape_cast %1137 : vector<1x1x16x128xf32> to vector<16x128xf32>
    %1139 = arith.maximumf %1135, %1138 : vector<16x128xf32>
    %c3_509 = arith.constant 3 : index
    %c6_510 = arith.constant 6 : index
    %1140 = arith.index_cast %4 : i32 to index
    %c0_511 = arith.constant 0 : index
    %1141 = vector.load %arg3[%c3_509, %c6_510, %1140, %c0_511] : memref<4x16x16x128xf32, #tpu.memory_space<vmem>>, vector<1x1x16x128xf32>
    %1142 = vector.shape_cast %1141 : vector<1x1x16x128xf32> to vector<16x128xf32>
    %1143 = arith.maximumf %1139, %1142 : vector<16x128xf32>
    %c3_512 = arith.constant 3 : index
    %c7_513 = arith.constant 7 : index
    %1144 = arith.index_cast %4 : i32 to index
    %c0_514 = arith.constant 0 : index
    %1145 = vector.load %arg3[%c3_512, %c7_513, %1144, %c0_514] : memref<4x16x16x128xf32, #tpu.memory_space<vmem>>, vector<1x1x16x128xf32>
    %1146 = vector.shape_cast %1145 : vector<1x1x16x128xf32> to vector<16x128xf32>
    %1147 = arith.maximumf %1143, %1146 : vector<16x128xf32>
    %c3_515 = arith.constant 3 : index
    %c8_516 = arith.constant 8 : index
    %1148 = arith.index_cast %4 : i32 to index
    %c0_517 = arith.constant 0 : index
    %1149 = vector.load %arg3[%c3_515, %c8_516, %1148, %c0_517] : memref<4x16x16x128xf32, #tpu.memory_space<vmem>>, vector<1x1x16x128xf32>
    %1150 = vector.shape_cast %1149 : vector<1x1x16x128xf32> to vector<16x128xf32>
    %1151 = arith.maximumf %1147, %1150 : vector<16x128xf32>
    %c3_518 = arith.constant 3 : index
    %c9_519 = arith.constant 9 : index
    %1152 = arith.index_cast %4 : i32 to index
    %c0_520 = arith.constant 0 : index
    %1153 = vector.load %arg3[%c3_518, %c9_519, %1152, %c0_520] : memref<4x16x16x128xf32, #tpu.memory_space<vmem>>, vector<1x1x16x128xf32>
    %1154 = vector.shape_cast %1153 : vector<1x1x16x128xf32> to vector<16x128xf32>
    %1155 = arith.maximumf %1151, %1154 : vector<16x128xf32>
    %c3_521 = arith.constant 3 : index
    %c10_522 = arith.constant 10 : index
    %1156 = arith.index_cast %4 : i32 to index
    %c0_523 = arith.constant 0 : index
    %1157 = vector.load %arg3[%c3_521, %c10_522, %1156, %c0_523] : memref<4x16x16x128xf32, #tpu.memory_space<vmem>>, vector<1x1x16x128xf32>
    %1158 = vector.shape_cast %1157 : vector<1x1x16x128xf32> to vector<16x128xf32>
    %1159 = arith.maximumf %1155, %1158 : vector<16x128xf32>
    %c3_524 = arith.constant 3 : index
    %c11_525 = arith.constant 11 : index
    %1160 = arith.index_cast %4 : i32 to index
    %c0_526 = arith.constant 0 : index
    %1161 = vector.load %arg3[%c3_524, %c11_525, %1160, %c0_526] : memref<4x16x16x128xf32, #tpu.memory_space<vmem>>, vector<1x1x16x128xf32>
    %1162 = vector.shape_cast %1161 : vector<1x1x16x128xf32> to vector<16x128xf32>
    %1163 = arith.maximumf %1159, %1162 : vector<16x128xf32>
    %c3_527 = arith.constant 3 : index
    %c12_528 = arith.constant 12 : index
    %1164 = arith.index_cast %4 : i32 to index
    %c0_529 = arith.constant 0 : index
    %1165 = vector.load %arg3[%c3_527, %c12_528, %1164, %c0_529] : memref<4x16x16x128xf32, #tpu.memory_space<vmem>>, vector<1x1x16x128xf32>
    %1166 = vector.shape_cast %1165 : vector<1x1x16x128xf32> to vector<16x128xf32>
    %1167 = arith.maximumf %1163, %1166 : vector<16x128xf32>
    %c3_530 = arith.constant 3 : index
    %c13_531 = arith.constant 13 : index
    %1168 = arith.index_cast %4 : i32 to index
    %c0_532 = arith.constant 0 : index
    %1169 = vector.load %arg3[%c3_530, %c13_531, %1168, %c0_532] : memref<4x16x16x128xf32, #tpu.memory_space<vmem>>, vector<1x1x16x128xf32>
    %1170 = vector.shape_cast %1169 : vector<1x1x16x128xf32> to vector<16x128xf32>
    %1171 = arith.maximumf %1167, %1170 : vector<16x128xf32>
    %c3_533 = arith.constant 3 : index
    %c14_534 = arith.constant 14 : index
    %1172 = arith.index_cast %4 : i32 to index
    %c0_535 = arith.constant 0 : index
    %1173 = vector.load %arg3[%c3_533, %c14_534, %1172, %c0_535] : memref<4x16x16x128xf32, #tpu.memory_space<vmem>>, vector<1x1x16x128xf32>
    %1174 = vector.shape_cast %1173 : vector<1x1x16x128xf32> to vector<16x128xf32>
    %1175 = arith.maximumf %1171, %1174 : vector<16x128xf32>
    %c3_536 = arith.constant 3 : index
    %c15_537 = arith.constant 15 : index
    %1176 = arith.index_cast %4 : i32 to index
    %c0_538 = arith.constant 0 : index
    %1177 = vector.load %arg3[%c3_536, %c15_537, %1176, %c0_538] : memref<4x16x16x128xf32, #tpu.memory_space<vmem>>, vector<1x1x16x128xf32>
    %1178 = vector.shape_cast %1177 : vector<1x1x16x128xf32> to vector<16x128xf32>
    %1179 = arith.maximumf %1175, %1178 : vector<16x128xf32>
    %cst_539 = arith.constant 0.000000e+00 : f32
    %1180 = vector.broadcast %cst_539 : f32 to vector<16x128xf32>
    %cst_540 = arith.constant 0.000000e+00 : f32
    %1181 = vector.broadcast %cst_540 : f32 to vector<16x128xf32>
    %c3_541 = arith.constant 3 : index
    %c0_542 = arith.constant 0 : index
    %1182 = arith.index_cast %4 : i32 to index
    %c0_543 = arith.constant 0 : index
    %1183 = vector.load %arg3[%c3_541, %c0_542, %1182, %c0_543] : memref<4x16x16x128xf32, #tpu.memory_space<vmem>>, vector<1x1x16x128xf32>
    %1184 = vector.shape_cast %1183 : vector<1x1x16x128xf32> to vector<16x128xf32>
    %1185 = arith.subf %1184, %1179 : vector<16x128xf32>
    %1186 = math.exp %1185 : vector<16x128xf32>
    %1187 = arith.addf %1180, %1186 : vector<16x128xf32>
    %cst_544 = arith.constant 0.000000e+00 : f32
    %1188 = vector.broadcast %cst_544 : f32 to vector<16x128xf32>
    %1189 = arith.subf %188, %1188 : vector<16x128xf32>
    %1190 = math.absf %1189 : vector<16x128xf32>
    %cst_545 = arith.constant 1.000000e+00 : f32
    %1191 = vector.broadcast %cst_545 : f32 to vector<16x128xf32>
    %1192 = arith.subf %1191, %1190 : vector<16x128xf32>
    %cst_546 = arith.constant 0.000000e+00 : f32
    %1193 = vector.broadcast %cst_546 : f32 to vector<16x128xf32>
    %1194 = arith.maximumf %1192, %1193 : vector<16x128xf32>
    %1195 = arith.mulf %1184, %1194 : vector<16x128xf32>
    %1196 = arith.addf %1181, %1195 : vector<16x128xf32>
    %c3_547 = arith.constant 3 : index
    %c1_548 = arith.constant 1 : index
    %1197 = arith.index_cast %4 : i32 to index
    %c0_549 = arith.constant 0 : index
    %1198 = vector.load %arg3[%c3_547, %c1_548, %1197, %c0_549] : memref<4x16x16x128xf32, #tpu.memory_space<vmem>>, vector<1x1x16x128xf32>
    %1199 = vector.shape_cast %1198 : vector<1x1x16x128xf32> to vector<16x128xf32>
    %1200 = arith.subf %1199, %1179 : vector<16x128xf32>
    %1201 = math.exp %1200 : vector<16x128xf32>
    %1202 = arith.addf %1187, %1201 : vector<16x128xf32>
    %cst_550 = arith.constant 1.000000e+00 : f32
    %1203 = vector.broadcast %cst_550 : f32 to vector<16x128xf32>
    %1204 = arith.subf %188, %1203 : vector<16x128xf32>
    %1205 = math.absf %1204 : vector<16x128xf32>
    %cst_551 = arith.constant 1.000000e+00 : f32
    %1206 = vector.broadcast %cst_551 : f32 to vector<16x128xf32>
    %1207 = arith.subf %1206, %1205 : vector<16x128xf32>
    %cst_552 = arith.constant 0.000000e+00 : f32
    %1208 = vector.broadcast %cst_552 : f32 to vector<16x128xf32>
    %1209 = arith.maximumf %1207, %1208 : vector<16x128xf32>
    %1210 = arith.mulf %1199, %1209 : vector<16x128xf32>
    %1211 = arith.addf %1196, %1210 : vector<16x128xf32>
    %c3_553 = arith.constant 3 : index
    %c2_554 = arith.constant 2 : index
    %1212 = arith.index_cast %4 : i32 to index
    %c0_555 = arith.constant 0 : index
    %1213 = vector.load %arg3[%c3_553, %c2_554, %1212, %c0_555] : memref<4x16x16x128xf32, #tpu.memory_space<vmem>>, vector<1x1x16x128xf32>
    %1214 = vector.shape_cast %1213 : vector<1x1x16x128xf32> to vector<16x128xf32>
    %1215 = arith.subf %1214, %1179 : vector<16x128xf32>
    %1216 = math.exp %1215 : vector<16x128xf32>
    %1217 = arith.addf %1202, %1216 : vector<16x128xf32>
    %cst_556 = arith.constant 2.000000e+00 : f32
    %1218 = vector.broadcast %cst_556 : f32 to vector<16x128xf32>
    %1219 = arith.subf %188, %1218 : vector<16x128xf32>
    %1220 = math.absf %1219 : vector<16x128xf32>
    %cst_557 = arith.constant 1.000000e+00 : f32
    %1221 = vector.broadcast %cst_557 : f32 to vector<16x128xf32>
    %1222 = arith.subf %1221, %1220 : vector<16x128xf32>
    %cst_558 = arith.constant 0.000000e+00 : f32
    %1223 = vector.broadcast %cst_558 : f32 to vector<16x128xf32>
    %1224 = arith.maximumf %1222, %1223 : vector<16x128xf32>
    %1225 = arith.mulf %1214, %1224 : vector<16x128xf32>
    %1226 = arith.addf %1211, %1225 : vector<16x128xf32>
    %c3_559 = arith.constant 3 : index
    %c3_560 = arith.constant 3 : index
    %1227 = arith.index_cast %4 : i32 to index
    %c0_561 = arith.constant 0 : index
    %1228 = vector.load %arg3[%c3_559, %c3_560, %1227, %c0_561] : memref<4x16x16x128xf32, #tpu.memory_space<vmem>>, vector<1x1x16x128xf32>
    %1229 = vector.shape_cast %1228 : vector<1x1x16x128xf32> to vector<16x128xf32>
    %1230 = arith.subf %1229, %1179 : vector<16x128xf32>
    %1231 = math.exp %1230 : vector<16x128xf32>
    %1232 = arith.addf %1217, %1231 : vector<16x128xf32>
    %cst_562 = arith.constant 3.000000e+00 : f32
    %1233 = vector.broadcast %cst_562 : f32 to vector<16x128xf32>
    %1234 = arith.subf %188, %1233 : vector<16x128xf32>
    %1235 = math.absf %1234 : vector<16x128xf32>
    %cst_563 = arith.constant 1.000000e+00 : f32
    %1236 = vector.broadcast %cst_563 : f32 to vector<16x128xf32>
    %1237 = arith.subf %1236, %1235 : vector<16x128xf32>
    %cst_564 = arith.constant 0.000000e+00 : f32
    %1238 = vector.broadcast %cst_564 : f32 to vector<16x128xf32>
    %1239 = arith.maximumf %1237, %1238 : vector<16x128xf32>
    %1240 = arith.mulf %1229, %1239 : vector<16x128xf32>
    %1241 = arith.addf %1226, %1240 : vector<16x128xf32>
    %c3_565 = arith.constant 3 : index
    %c4_566 = arith.constant 4 : index
    %1242 = arith.index_cast %4 : i32 to index
    %c0_567 = arith.constant 0 : index
    %1243 = vector.load %arg3[%c3_565, %c4_566, %1242, %c0_567] : memref<4x16x16x128xf32, #tpu.memory_space<vmem>>, vector<1x1x16x128xf32>
    %1244 = vector.shape_cast %1243 : vector<1x1x16x128xf32> to vector<16x128xf32>
    %1245 = arith.subf %1244, %1179 : vector<16x128xf32>
    %1246 = math.exp %1245 : vector<16x128xf32>
    %1247 = arith.addf %1232, %1246 : vector<16x128xf32>
    %cst_568 = arith.constant 4.000000e+00 : f32
    %1248 = vector.broadcast %cst_568 : f32 to vector<16x128xf32>
    %1249 = arith.subf %188, %1248 : vector<16x128xf32>
    %1250 = math.absf %1249 : vector<16x128xf32>
    %cst_569 = arith.constant 1.000000e+00 : f32
    %1251 = vector.broadcast %cst_569 : f32 to vector<16x128xf32>
    %1252 = arith.subf %1251, %1250 : vector<16x128xf32>
    %cst_570 = arith.constant 0.000000e+00 : f32
    %1253 = vector.broadcast %cst_570 : f32 to vector<16x128xf32>
    %1254 = arith.maximumf %1252, %1253 : vector<16x128xf32>
    %1255 = arith.mulf %1244, %1254 : vector<16x128xf32>
    %1256 = arith.addf %1241, %1255 : vector<16x128xf32>
    %c3_571 = arith.constant 3 : index
    %c5_572 = arith.constant 5 : index
    %1257 = arith.index_cast %4 : i32 to index
    %c0_573 = arith.constant 0 : index
    %1258 = vector.load %arg3[%c3_571, %c5_572, %1257, %c0_573] : memref<4x16x16x128xf32, #tpu.memory_space<vmem>>, vector<1x1x16x128xf32>
    %1259 = vector.shape_cast %1258 : vector<1x1x16x128xf32> to vector<16x128xf32>
    %1260 = arith.subf %1259, %1179 : vector<16x128xf32>
    %1261 = math.exp %1260 : vector<16x128xf32>
    %1262 = arith.addf %1247, %1261 : vector<16x128xf32>
    %cst_574 = arith.constant 5.000000e+00 : f32
    %1263 = vector.broadcast %cst_574 : f32 to vector<16x128xf32>
    %1264 = arith.subf %188, %1263 : vector<16x128xf32>
    %1265 = math.absf %1264 : vector<16x128xf32>
    %cst_575 = arith.constant 1.000000e+00 : f32
    %1266 = vector.broadcast %cst_575 : f32 to vector<16x128xf32>
    %1267 = arith.subf %1266, %1265 : vector<16x128xf32>
    %cst_576 = arith.constant 0.000000e+00 : f32
    %1268 = vector.broadcast %cst_576 : f32 to vector<16x128xf32>
    %1269 = arith.maximumf %1267, %1268 : vector<16x128xf32>
    %1270 = arith.mulf %1259, %1269 : vector<16x128xf32>
    %1271 = arith.addf %1256, %1270 : vector<16x128xf32>
    %c3_577 = arith.constant 3 : index
    %c6_578 = arith.constant 6 : index
    %1272 = arith.index_cast %4 : i32 to index
    %c0_579 = arith.constant 0 : index
    %1273 = vector.load %arg3[%c3_577, %c6_578, %1272, %c0_579] : memref<4x16x16x128xf32, #tpu.memory_space<vmem>>, vector<1x1x16x128xf32>
    %1274 = vector.shape_cast %1273 : vector<1x1x16x128xf32> to vector<16x128xf32>
    %1275 = arith.subf %1274, %1179 : vector<16x128xf32>
    %1276 = math.exp %1275 : vector<16x128xf32>
    %1277 = arith.addf %1262, %1276 : vector<16x128xf32>
    %cst_580 = arith.constant 6.000000e+00 : f32
    %1278 = vector.broadcast %cst_580 : f32 to vector<16x128xf32>
    %1279 = arith.subf %188, %1278 : vector<16x128xf32>
    %1280 = math.absf %1279 : vector<16x128xf32>
    %cst_581 = arith.constant 1.000000e+00 : f32
    %1281 = vector.broadcast %cst_581 : f32 to vector<16x128xf32>
    %1282 = arith.subf %1281, %1280 : vector<16x128xf32>
    %cst_582 = arith.constant 0.000000e+00 : f32
    %1283 = vector.broadcast %cst_582 : f32 to vector<16x128xf32>
    %1284 = arith.maximumf %1282, %1283 : vector<16x128xf32>
    %1285 = arith.mulf %1274, %1284 : vector<16x128xf32>
    %1286 = arith.addf %1271, %1285 : vector<16x128xf32>
    %c3_583 = arith.constant 3 : index
    %c7_584 = arith.constant 7 : index
    %1287 = arith.index_cast %4 : i32 to index
    %c0_585 = arith.constant 0 : index
    %1288 = vector.load %arg3[%c3_583, %c7_584, %1287, %c0_585] : memref<4x16x16x128xf32, #tpu.memory_space<vmem>>, vector<1x1x16x128xf32>
    %1289 = vector.shape_cast %1288 : vector<1x1x16x128xf32> to vector<16x128xf32>
    %1290 = arith.subf %1289, %1179 : vector<16x128xf32>
    %1291 = math.exp %1290 : vector<16x128xf32>
    %1292 = arith.addf %1277, %1291 : vector<16x128xf32>
    %cst_586 = arith.constant 7.000000e+00 : f32
    %1293 = vector.broadcast %cst_586 : f32 to vector<16x128xf32>
    %1294 = arith.subf %188, %1293 : vector<16x128xf32>
    %1295 = math.absf %1294 : vector<16x128xf32>
    %cst_587 = arith.constant 1.000000e+00 : f32
    %1296 = vector.broadcast %cst_587 : f32 to vector<16x128xf32>
    %1297 = arith.subf %1296, %1295 : vector<16x128xf32>
    %cst_588 = arith.constant 0.000000e+00 : f32
    %1298 = vector.broadcast %cst_588 : f32 to vector<16x128xf32>
    %1299 = arith.maximumf %1297, %1298 : vector<16x128xf32>
    %1300 = arith.mulf %1289, %1299 : vector<16x128xf32>
    %1301 = arith.addf %1286, %1300 : vector<16x128xf32>
    %c3_589 = arith.constant 3 : index
    %c8_590 = arith.constant 8 : index
    %1302 = arith.index_cast %4 : i32 to index
    %c0_591 = arith.constant 0 : index
    %1303 = vector.load %arg3[%c3_589, %c8_590, %1302, %c0_591] : memref<4x16x16x128xf32, #tpu.memory_space<vmem>>, vector<1x1x16x128xf32>
    %1304 = vector.shape_cast %1303 : vector<1x1x16x128xf32> to vector<16x128xf32>
    %1305 = arith.subf %1304, %1179 : vector<16x128xf32>
    %1306 = math.exp %1305 : vector<16x128xf32>
    %1307 = arith.addf %1292, %1306 : vector<16x128xf32>
    %cst_592 = arith.constant 8.000000e+00 : f32
    %1308 = vector.broadcast %cst_592 : f32 to vector<16x128xf32>
    %1309 = arith.subf %188, %1308 : vector<16x128xf32>
    %1310 = math.absf %1309 : vector<16x128xf32>
    %cst_593 = arith.constant 1.000000e+00 : f32
    %1311 = vector.broadcast %cst_593 : f32 to vector<16x128xf32>
    %1312 = arith.subf %1311, %1310 : vector<16x128xf32>
    %cst_594 = arith.constant 0.000000e+00 : f32
    %1313 = vector.broadcast %cst_594 : f32 to vector<16x128xf32>
    %1314 = arith.maximumf %1312, %1313 : vector<16x128xf32>
    %1315 = arith.mulf %1304, %1314 : vector<16x128xf32>
    %1316 = arith.addf %1301, %1315 : vector<16x128xf32>
    %c3_595 = arith.constant 3 : index
    %c9_596 = arith.constant 9 : index
    %1317 = arith.index_cast %4 : i32 to index
    %c0_597 = arith.constant 0 : index
    %1318 = vector.load %arg3[%c3_595, %c9_596, %1317, %c0_597] : memref<4x16x16x128xf32, #tpu.memory_space<vmem>>, vector<1x1x16x128xf32>
    %1319 = vector.shape_cast %1318 : vector<1x1x16x128xf32> to vector<16x128xf32>
    %1320 = arith.subf %1319, %1179 : vector<16x128xf32>
    %1321 = math.exp %1320 : vector<16x128xf32>
    %1322 = arith.addf %1307, %1321 : vector<16x128xf32>
    %cst_598 = arith.constant 9.000000e+00 : f32
    %1323 = vector.broadcast %cst_598 : f32 to vector<16x128xf32>
    %1324 = arith.subf %188, %1323 : vector<16x128xf32>
    %1325 = math.absf %1324 : vector<16x128xf32>
    %cst_599 = arith.constant 1.000000e+00 : f32
    %1326 = vector.broadcast %cst_599 : f32 to vector<16x128xf32>
    %1327 = arith.subf %1326, %1325 : vector<16x128xf32>
    %cst_600 = arith.constant 0.000000e+00 : f32
    %1328 = vector.broadcast %cst_600 : f32 to vector<16x128xf32>
    %1329 = arith.maximumf %1327, %1328 : vector<16x128xf32>
    %1330 = arith.mulf %1319, %1329 : vector<16x128xf32>
    %1331 = arith.addf %1316, %1330 : vector<16x128xf32>
    %c3_601 = arith.constant 3 : index
    %c10_602 = arith.constant 10 : index
    %1332 = arith.index_cast %4 : i32 to index
    %c0_603 = arith.constant 0 : index
    %1333 = vector.load %arg3[%c3_601, %c10_602, %1332, %c0_603] : memref<4x16x16x128xf32, #tpu.memory_space<vmem>>, vector<1x1x16x128xf32>
    %1334 = vector.shape_cast %1333 : vector<1x1x16x128xf32> to vector<16x128xf32>
    %1335 = arith.subf %1334, %1179 : vector<16x128xf32>
    %1336 = math.exp %1335 : vector<16x128xf32>
    %1337 = arith.addf %1322, %1336 : vector<16x128xf32>
    %cst_604 = arith.constant 1.000000e+01 : f32
    %1338 = vector.broadcast %cst_604 : f32 to vector<16x128xf32>
    %1339 = arith.subf %188, %1338 : vector<16x128xf32>
    %1340 = math.absf %1339 : vector<16x128xf32>
    %cst_605 = arith.constant 1.000000e+00 : f32
    %1341 = vector.broadcast %cst_605 : f32 to vector<16x128xf32>
    %1342 = arith.subf %1341, %1340 : vector<16x128xf32>
    %cst_606 = arith.constant 0.000000e+00 : f32
    %1343 = vector.broadcast %cst_606 : f32 to vector<16x128xf32>
    %1344 = arith.maximumf %1342, %1343 : vector<16x128xf32>
    %1345 = arith.mulf %1334, %1344 : vector<16x128xf32>
    %1346 = arith.addf %1331, %1345 : vector<16x128xf32>
    %c3_607 = arith.constant 3 : index
    %c11_608 = arith.constant 11 : index
    %1347 = arith.index_cast %4 : i32 to index
    %c0_609 = arith.constant 0 : index
    %1348 = vector.load %arg3[%c3_607, %c11_608, %1347, %c0_609] : memref<4x16x16x128xf32, #tpu.memory_space<vmem>>, vector<1x1x16x128xf32>
    %1349 = vector.shape_cast %1348 : vector<1x1x16x128xf32> to vector<16x128xf32>
    %1350 = arith.subf %1349, %1179 : vector<16x128xf32>
    %1351 = math.exp %1350 : vector<16x128xf32>
    %1352 = arith.addf %1337, %1351 : vector<16x128xf32>
    %cst_610 = arith.constant 1.100000e+01 : f32
    %1353 = vector.broadcast %cst_610 : f32 to vector<16x128xf32>
    %1354 = arith.subf %188, %1353 : vector<16x128xf32>
    %1355 = math.absf %1354 : vector<16x128xf32>
    %cst_611 = arith.constant 1.000000e+00 : f32
    %1356 = vector.broadcast %cst_611 : f32 to vector<16x128xf32>
    %1357 = arith.subf %1356, %1355 : vector<16x128xf32>
    %cst_612 = arith.constant 0.000000e+00 : f32
    %1358 = vector.broadcast %cst_612 : f32 to vector<16x128xf32>
    %1359 = arith.maximumf %1357, %1358 : vector<16x128xf32>
    %1360 = arith.mulf %1349, %1359 : vector<16x128xf32>
    %1361 = arith.addf %1346, %1360 : vector<16x128xf32>
    %c3_613 = arith.constant 3 : index
    %c12_614 = arith.constant 12 : index
    %1362 = arith.index_cast %4 : i32 to index
    %c0_615 = arith.constant 0 : index
    %1363 = vector.load %arg3[%c3_613, %c12_614, %1362, %c0_615] : memref<4x16x16x128xf32, #tpu.memory_space<vmem>>, vector<1x1x16x128xf32>
    %1364 = vector.shape_cast %1363 : vector<1x1x16x128xf32> to vector<16x128xf32>
    %1365 = arith.subf %1364, %1179 : vector<16x128xf32>
    %1366 = math.exp %1365 : vector<16x128xf32>
    %1367 = arith.addf %1352, %1366 : vector<16x128xf32>
    %cst_616 = arith.constant 1.200000e+01 : f32
    %1368 = vector.broadcast %cst_616 : f32 to vector<16x128xf32>
    %1369 = arith.subf %188, %1368 : vector<16x128xf32>
    %1370 = math.absf %1369 : vector<16x128xf32>
    %cst_617 = arith.constant 1.000000e+00 : f32
    %1371 = vector.broadcast %cst_617 : f32 to vector<16x128xf32>
    %1372 = arith.subf %1371, %1370 : vector<16x128xf32>
    %cst_618 = arith.constant 0.000000e+00 : f32
    %1373 = vector.broadcast %cst_618 : f32 to vector<16x128xf32>
    %1374 = arith.maximumf %1372, %1373 : vector<16x128xf32>
    %1375 = arith.mulf %1364, %1374 : vector<16x128xf32>
    %1376 = arith.addf %1361, %1375 : vector<16x128xf32>
    %c3_619 = arith.constant 3 : index
    %c13_620 = arith.constant 13 : index
    %1377 = arith.index_cast %4 : i32 to index
    %c0_621 = arith.constant 0 : index
    %1378 = vector.load %arg3[%c3_619, %c13_620, %1377, %c0_621] : memref<4x16x16x128xf32, #tpu.memory_space<vmem>>, vector<1x1x16x128xf32>
    %1379 = vector.shape_cast %1378 : vector<1x1x16x128xf32> to vector<16x128xf32>
    %1380 = arith.subf %1379, %1179 : vector<16x128xf32>
    %1381 = math.exp %1380 : vector<16x128xf32>
    %1382 = arith.addf %1367, %1381 : vector<16x128xf32>
    %cst_622 = arith.constant 1.300000e+01 : f32
    %1383 = vector.broadcast %cst_622 : f32 to vector<16x128xf32>
    %1384 = arith.subf %188, %1383 : vector<16x128xf32>
    %1385 = math.absf %1384 : vector<16x128xf32>
    %cst_623 = arith.constant 1.000000e+00 : f32
    %1386 = vector.broadcast %cst_623 : f32 to vector<16x128xf32>
    %1387 = arith.subf %1386, %1385 : vector<16x128xf32>
    %cst_624 = arith.constant 0.000000e+00 : f32
    %1388 = vector.broadcast %cst_624 : f32 to vector<16x128xf32>
    %1389 = arith.maximumf %1387, %1388 : vector<16x128xf32>
    %1390 = arith.mulf %1379, %1389 : vector<16x128xf32>
    %1391 = arith.addf %1376, %1390 : vector<16x128xf32>
    %c3_625 = arith.constant 3 : index
    %c14_626 = arith.constant 14 : index
    %1392 = arith.index_cast %4 : i32 to index
    %c0_627 = arith.constant 0 : index
    %1393 = vector.load %arg3[%c3_625, %c14_626, %1392, %c0_627] : memref<4x16x16x128xf32, #tpu.memory_space<vmem>>, vector<1x1x16x128xf32>
    %1394 = vector.shape_cast %1393 : vector<1x1x16x128xf32> to vector<16x128xf32>
    %1395 = arith.subf %1394, %1179 : vector<16x128xf32>
    %1396 = math.exp %1395 : vector<16x128xf32>
    %1397 = arith.addf %1382, %1396 : vector<16x128xf32>
    %cst_628 = arith.constant 1.400000e+01 : f32
    %1398 = vector.broadcast %cst_628 : f32 to vector<16x128xf32>
    %1399 = arith.subf %188, %1398 : vector<16x128xf32>
    %1400 = math.absf %1399 : vector<16x128xf32>
    %cst_629 = arith.constant 1.000000e+00 : f32
    %1401 = vector.broadcast %cst_629 : f32 to vector<16x128xf32>
    %1402 = arith.subf %1401, %1400 : vector<16x128xf32>
    %cst_630 = arith.constant 0.000000e+00 : f32
    %1403 = vector.broadcast %cst_630 : f32 to vector<16x128xf32>
    %1404 = arith.maximumf %1402, %1403 : vector<16x128xf32>
    %1405 = arith.mulf %1394, %1404 : vector<16x128xf32>
    %1406 = arith.addf %1391, %1405 : vector<16x128xf32>
    %c3_631 = arith.constant 3 : index
    %c15_632 = arith.constant 15 : index
    %1407 = arith.index_cast %4 : i32 to index
    %c0_633 = arith.constant 0 : index
    %1408 = vector.load %arg3[%c3_631, %c15_632, %1407, %c0_633] : memref<4x16x16x128xf32, #tpu.memory_space<vmem>>, vector<1x1x16x128xf32>
    %1409 = vector.shape_cast %1408 : vector<1x1x16x128xf32> to vector<16x128xf32>
    %1410 = arith.subf %1409, %1179 : vector<16x128xf32>
    %1411 = math.exp %1410 : vector<16x128xf32>
    %1412 = arith.addf %1397, %1411 : vector<16x128xf32>
    %cst_634 = arith.constant 1.500000e+01 : f32
    %1413 = vector.broadcast %cst_634 : f32 to vector<16x128xf32>
    %1414 = arith.subf %188, %1413 : vector<16x128xf32>
    %1415 = math.absf %1414 : vector<16x128xf32>
    %cst_635 = arith.constant 1.000000e+00 : f32
    %1416 = vector.broadcast %cst_635 : f32 to vector<16x128xf32>
    %1417 = arith.subf %1416, %1415 : vector<16x128xf32>
    %cst_636 = arith.constant 0.000000e+00 : f32
    %1418 = vector.broadcast %cst_636 : f32 to vector<16x128xf32>
    %1419 = arith.maximumf %1417, %1418 : vector<16x128xf32>
    %1420 = arith.mulf %1409, %1419 : vector<16x128xf32>
    %1421 = arith.addf %1406, %1420 : vector<16x128xf32>
    %1422 = math.log %1412 : vector<16x128xf32>
    %1423 = arith.addf %1179, %1422 : vector<16x128xf32>
    %1424 = arith.subf %1423, %1421 : vector<16x128xf32>
    %1425 = arith.addf %1116, %1424 : vector<16x128xf32>
    %c0_637 = arith.constant 0 : index
    %c0_638 = arith.constant 0 : index
    %c0_639 = arith.constant 0 : index
    %1426 = vector.load %arg5[%c0_637, %c0_638, %c0_639] : memref<1x16x128xf32, #tpu.memory_space<vmem>>, vector<1x16x128xf32>
    %1427 = vector.shape_cast %1426 : vector<1x16x128xf32> to vector<16x128xf32>
    %cst_640 = arith.constant 2.500000e-01 : f32
    %1428 = vector.broadcast %cst_640 : f32 to vector<16x128xf32>
    %1429 = arith.mulf %1425, %1428 : vector<16x128xf32>
    %1430 = arith.mulf %1429, %43 : vector<16x128xf32>
    %cst_641 = arith.constant 0.000000e+00 : f32
    %1431 = vector.broadcast %cst_641 : f32 to vector<16x128xf32>
    %1432 = arith.select %48, %1430, %1431 : vector<16x128xi1>, vector<16x128xf32>
    %1433 = arith.addf %1427, %1432 : vector<16x128xf32>
    %c0_642 = arith.constant 0 : index
    %c0_643 = arith.constant 0 : index
    %c0_644 = arith.constant 0 : index
    %1434 = vector.load %arg5[%c0_642, %c0_643, %c0_644] : memref<1x16x128xf32, #tpu.memory_space<vmem>>, vector<1x16x128xf32>
    %1435 = vector.shape_cast %1434 : vector<1x16x128xf32> to vector<16x128xf32>
    %1436 = vector.shape_cast %1433 : vector<16x128xf32> to vector<1x16x128xf32>
    tpu.vector_store %arg5[%c0_642, %c0_643, %c0_644], %1436 {strides = array<i32>} : memref<1x16x128xf32, #tpu.memory_space<vmem>>, vector<1x16x128xf32>,
    %c1_i32 = arith.constant 1 : i32
    return
  }
  func.func @transform_0(%arg0: i32, %arg1: i32) -> (i32, i32, i32) {
    %c1_i32 = arith.constant 1 : i32
    %0 = arith.muli %arg0, %c1_i32 : i32
    %1 = arith.addi %0, %arg1 : i32
    %c0_i32 = arith.constant 0 : i32
    %c0_i32_0 = arith.constant 0 : i32
    %c0_i32_1 = arith.constant 0 : i32
    return %c0_i32, %1, %c0_i32_0 : i32, i32, i32
  }
  func.func @transform_1(%arg0: i32, %arg1: i32) -> (i32, i32, i32, i32) {
    %c1_i32 = arith.constant 1 : i32
    %0 = arith.muli %arg0, %c1_i32 : i32
    %1 = arith.addi %0, %arg1 : i32
    %c0_i32 = arith.constant 0 : i32
    %c0_i32_0 = arith.constant 0 : i32
    %c0_i32_1 = arith.constant 0 : i32
    %c0_i32_2 = arith.constant 0 : i32
    return %c0_i32, %c0_i32_0, %1, %c0_i32_1 : i32, i32, i32, i32
  }
  func.func @transform_2(%arg0: i32, %arg1: i32) -> (i32, i32, i32) {
    %c0_i32 = arith.constant 0 : i32
    %c0_i32_0 = arith.constant 0 : i32
    %c0_i32_1 = arith.constant 0 : i32
    return %arg0, %c0_i32, %c0_i32_0 : i32, i32, i32
  }
  func.func @transform_3(%arg0: i32, %arg1: i32) -> (i32, i32, i32) {
    %c0_i32 = arith.constant 0 : i32
    %c0_i32_0 = arith.constant 0 : i32
    %c0_i32_1 = arith.constant 0 : i32
    return %arg0, %c0_i32, %c0_i32_0 : i32, i32, i32
  }
}

</mosaic_0001>

<llo_original>
// kernel: tpu_custom_call.1
$region0: #{tpu_custom_call.1}
  #allocation0 [shape = 'u32[]', space=smem, size = 0x4, offset = 0x4, fixed_abs, tag = 'smem constant byte address 0x4 - core index']
  #allocation1 [shape = 'u32[144,128]{1,0:T(1,128)}', space=vmem, size = 0x12000, scoped, tag = 'internal scratch']
  #allocation10 [shape = 's32[]', space=sflag, size = 0x4, offset = 0, fixed_abs, tag = 'sflag constant byte address 0x0 - dummy sync flag']
  #allocation12 [shape = 's32[]', space=sflag, size = 0x4, offset = 0, fixed_abs, tag = 'sflag constant byte address 0x0 - dummy sync flag']
  %s0 = inlined_call_operand.hbm [shape: f32[14,32,128], index: 0, kind: input, shape index: {}]
  %s1 = inlined_call_operand.hbm [shape: f32[4,16,32,128], index: 1, kind: input, shape index: {}]
  %s2 = inlined_call_operand.hbm [shape: f32[2,16,128], index: 2, kind: output, shape index: {0}]
  %s3 = inlined_call_operand.hbm [shape: f32[2,16,128], index: 3, kind: output, shape index: {1}]
  %4 = xla_tuple %s2, %s3
  %s5 = sld [smem:[#allocation0]]
  $region61: #{tpu_custom_call.1} parent=0
    _
  %s7 = ssub.s32 1, %s5
  %s8 = scalar_select 0, %s7, %s5
  $region1: #{tpu_custom_call.1} parent=0
    #allocation2 [shape = 'u8[229376]{0}', space=vmem, size = 0x38000, scoped, tag = 'input window, operand 0']
    #allocation3 [shape = 's32[2]{0}', space=sflag, size = 0x8, scoped, tag = 'scoped memory for tpu_custom_call.1']
    #allocation4 [shape = 's32[2]{0}', space=sflag, size = 0x8, scoped, tag = 'scoped memory for tpu_custom_call.1']
    #allocation5 [shape = 'u8[1048576]{0}', space=vmem, size = 0x100000, scoped, tag = 'input window, operand 1']
    #allocation6 [shape = 's32[2]{0}', space=sflag, size = 0x8, scoped, tag = 'scoped memory for tpu_custom_call.1']
    #allocation7 [shape = 'u8[16384]{0}', space=vmem, size = 0x4000, scoped, tag = 'output window, operand 0']
    #allocation8 [shape = 'u8[16384]{0}', space=vmem, size = 0x4000, scoped, tag = 'output window, operand 1']
    #allocation9 [shape = 's32[2]{0}', space=sflag, size = 0x8, scoped, tag = 'scoped memory for tpu_custom_call.1']
    %9 = vsyncpa [#allocation3], 0
    %s10 = scalar_lea.sflag [#allocation3], 1
    %11 = vsyncpa %s10, 0
    %12 = vsyncpa [#allocation6], 0
    %s13 = scalar_lea.sflag [#allocation6], 1
    %14 = vsyncpa %s13, 0
    %15 = vsyncpa [#allocation4], 0
    %s16 = scalar_lea.sflag [#allocation4], 1
    %17 = vsyncpa %s16, 0
    %18 = vsyncpa [#allocation9], 0
    %s19 = scalar_lea.sflag [#allocation9], 1
    %20 = vsyncpa %s19, 0
    loop: start=0, step=1, limit=4
    $region2: #{tpu_custom_call.1} parent=1 // loop_pre_header
      _
    $region3: #{tpu_custom_call.1} parent=1 // loop_header
      %s22 = sphi 0, %s26
      %p23 = scmp.ge.s32.totalorder %s22, 4
      %s29 = sphi 0, %s41
      %s30 = sphi 0, %s37
      %s31 = sphi 0, %s29
      %s32 = sphi 0, %s30
      %s33 = sphi 0, %s31
      %s34 = sphi 0, %s32
      %s46 = sphi 0, %s48
      %s49 = sphi 0, %s46
      %s50 = sphi 0, %s49
      %s66 = sphi 0, %s50
      %s74 = sphi 0, %s76
      %s77 = sphi 0, %s74
      %s78 = sphi 0, %s77
      %s94 = sphi 0, %s78
      %s100 = sphi 0, %s102
      %s103 = sphi 0, %s100
      %s104 = sphi 0, %s103
      %s120 = sphi 0, %s104
      %s126 = sphi 0, %s128
      %s129 = sphi 0, %s126
      %s130 = sphi 0, %s129
      %s146 = sphi 0, %s130
    $region4: #{tpu_custom_call.1} parent=1 // loop_header_branch
      %25 = sbr.rel (%p23) target = $region8
    $region5: #{tpu_custom_call.1} parent=1 // loop_body
      %s27 = ssub.s32 %s22, 1
      %s28 = ssub.s32 %s22, 2
      %s35 = sadd.s32 1, %s30
      %p36 = scmp.ge.s32.totalorder %s35, 1
      %s37 = scalar_select %p36, 0, %s35
      %s38 = sadd.s32 1, %s29
      %s39 = scalar_select %p36, %s38, %s29
      %p40 = scmp.ge.s32.totalorder %s39, 2
      %s41 = scalar_select %p40, 0, %s39
      %s42 = sadd.s32 %s29, %s30
      %s43 = sadd.s32 %s41, %s37
      %s44 = ssub.s32 %s42, %s43
      %p45 = scmp.eq.s32.totalorder %s44, 0
      %s47 = sadd.s32 %s46, 1
      %s48 = scalar_select %p45, %s46, %s47
      %p51 = pneg %p45
      %p52 = scmp.eq.s32.totalorder %s22, 1
      %p53 = por %p51, %p52
      %p54 = scmp.ne.s32.totalorder %s46, %s49
      %p55 = scmp.eq.s32.totalorder %s22, 0
      %p56 = por %p54, %p55
      %p57 = scmp.ne.s32.totalorder %s46, %s49
      %p58 = scmp.eq.s32.totalorder %s27, 1
      %p59 = por %p57, %p58
      %p60 = scmp.ne.s32.totalorder %s49, %s50
      %p61 = scmp.eq.s32.totalorder %s27, 0
      %p62 = por %p60, %p61
      %p63 = scmp.ne.s32.totalorder %s49, %s50
      %p64 = scmp.eq.s32.totalorder %s28, 1
      %p65 = por %p63, %p64
      %p67 = scmp.ne.s32.totalorder %s50, %s66
      %p68 = scmp.eq.s32.totalorder %s28, 0
      %p69 = por %p67, %p68
      %s70 = sadd.s32 %s29, %s30
      %s71 = sadd.s32 %s41, %s37
      %s72 = ssub.s32 %s70, %s71
      %p73 = scmp.eq.s32.totalorder %s72, 0
      %s75 = sadd.s32 %s74, 1
      %s76 = scalar_select %p73, %s74, %s75
      %p79 = pneg %p73
      %p80 = scmp.eq.s32.totalorder %s22, 1
      %p81 = por %p79, %p80
      %p82 = scmp.ne.s32.totalorder %s74, %s77
      %p83 = scmp.eq.s32.totalorder %s22, 0
      %p84 = por %p82, %p83
      %p85 = scmp.ne.s32.totalorder %s74, %s77
      %p86 = scmp.eq.s32.totalorder %s27, 1
      %p87 = por %p85, %p86
      %p88 = scmp.ne.s32.totalorder %s77, %s78
      %p89 = scmp.eq.s32.totalorder %s27, 0
      %p90 = por %p88, %p89
      %p91 = scmp.ne.s32.totalorder %s77, %s78
      %p92 = scmp.eq.s32.totalorder %s28, 1
      %p93 = por %p91, %p92
      %p95 = scmp.ne.s32.totalorder %s78, %s94
      %p96 = scmp.eq.s32.totalorder %s28, 0
      %p97 = por %p95, %p96
      %s98 = ssub.s32 %s29, %s41
      %p99 = scmp.eq.s32.totalorder %s98, 0
      %s101 = sadd.s32 %s100, 1
      %s102 = scalar_select %p99, %s100, %s101
      %p105 = pneg %p99
      %p106 = scmp.eq.s32.totalorder %s22, 1
      %p107 = por %p105, %p106
      %p108 = scmp.ne.s32.totalorder %s100, %s103
      %p109 = scmp.eq.s32.totalorder %s22, 0
      %p110 = por %p108, %p109
      %p111 = scmp.ne.s32.totalorder %s100, %s103
      %p112 = scmp.eq.s32.totalorder %s27, 1
      %p113 = por %p111, %p112
      %p114 = scmp.ne.s32.totalorder %s103, %s104
      %p115 = scmp.eq.s32.totalorder %s27, 0
      %p116 = por %p114, %p115
      %p117 = scmp.ne.s32.totalorder %s103, %s104
      %p118 = scmp.eq.s32.totalorder %s28, 1
      %p119 = por %p117, %p118
      %p121 = scmp.ne.s32.totalorder %s104, %s120
      %p122 = scmp.eq.s32.totalorder %s28, 0
      %p123 = por %p121, %p122
      %s124 = ssub.s32 %s29, %s41
      %p125 = scmp.eq.s32.totalorder %s124, 0
      %s127 = sadd.s32 %s126, 1
      %s128 = scalar_select %p125, %s126, %s127
      %p131 = pneg %p125
      %p132 = scmp.eq.s32.totalorder %s22, 1
      %p133 = por %p131, %p132
      %p134 = scmp.ne.s32.totalorder %s126, %s129
      %p135 = scmp.eq.s32.totalorder %s22, 0
      %p136 = por %p134, %p135
      %p137 = scmp.ne.s32.totalorder %s126, %s129
      %p138 = scmp.eq.s32.totalorder %s27, 1
      %p139 = por %p137, %p138
      %p140 = scmp.ne.s32.totalorder %s129, %s130
      %p141 = scmp.eq.s32.totalorder %s27, 0
      %p142 = por %p140, %p141
      %p143 = scmp.ne.s32.totalorder %s129, %s130
      %p144 = scmp.eq.s32.totalorder %s28, 1
      %p145 = por %p143, %p144
      %p147 = scmp.ne.s32.totalorder %s130, %s146
      %p148 = scmp.eq.s32.totalorder %s28, 0
      %p149 = por %p147, %p148
      %p150 = scmp.le.s32.totalorder 1, %s22
      %p151 = scmp.lt.s32.totalorder %s22, 3
      %p152 = pnand %p150, %p151
      %p153 = pneg %p152
      // Predicated region
      $region9: #{tpu_custom_call.1} parent=5 // pred_check
        _
      $region10: #{tpu_custom_call.1} parent=5 // pred_check_branch
        %155 = sbr.rel (%p152) target = $region12
      $region11: #{tpu_custom_call.1} parent=5 // pred_region
        %s156 = ssub.s32 %s22, 1
      $region12: #{tpu_custom_call.1} parent=5 // pred_fallthru
        _
      %p157 = scmp.lt.s32.totalorder %s22, 2
      // Predicated region
      $region13: #{tpu_custom_call.1} parent=5 // pred_check
        %p158 = pneg %p157
      $region14: #{tpu_custom_call.1} parent=5 // pred_check_branch
        %160 = sbr.rel (%p158) target = $region16
      $region15: #{tpu_custom_call.1} parent=5 // pred_region
        // Predicated region
        $region17: #{tpu_custom_call.1} parent=15 // pred_check
          %p161 = pneg %p56
        $region18: #{tpu_custom_call.1} parent=15 // pred_check_branch
          %163 = sbr.rel (%p161) target = $region20
        $region19: #{tpu_custom_call.1} parent=15 // pred_region
          #allocation11 [shape = 'u32[6]{0}', space=smem, size = 0x18, scoped, tag = 'DMA stride descriptor']
          %s164 = sand.u32 %s46, 1
          %s165 = scalar_lea.sflag [#allocation3], %s164
          %s166 = sand.u32 %s46, 1
          %s167 = smul.addr %s166, 224
          %s168 = scalar_lea.vmem [#allocation2], %s167
          %s169 = sadd.s32 %s29, %s30
          %s170 = smul.u32 2, %s169
          %s172 = ssub.s32 3584, 3584
          %173 = vsyncadd %s165, %s172
          %s174 = smul.addr %s170, 128
          %s175 = scalar_lea.hbm %s0, %s174
          %s177 = sshll.u32 1, 14
          %s178 = sxor.u32 4294967295, %s177
          %s180 = sld [smem:[#allocation0]]
          %s181 = sadd.s32 2, %s180
          %s183 = sshll.u32 7, 26
          %s184 = sxor.u32 4294967295, %s183
          %s185 = sand.u32 0, %s184
          %s186 = sshll.u32 %s181, 26
          %s187 = sor.u32 %s185, %s186
          %s188 = sshll.u32 %s168, 4
          %s189 = int_to_ptr.vmem [resolvable:$true] %s188
          %195 = sst [smem:[#allocation11]] 512
          %s196 = scalar_lea.smem [#allocation11], 1
          %197 = sst [smem:[%s196]] 256
          %s198 = scalar_lea.smem [#allocation11], 2
          %199 = sst [smem:[%s198]] 2
          %s200 = scalar_lea.smem [#allocation11], 3
          %201 = sst [smem:[%s200]] 128
          %s202 = scalar_lea.smem [#allocation11], 4
          %203 = sst [smem:[%s202]] 128
          %s204 = scalar_lea.smem [#allocation11], 5
          %205 = sst [smem:[%s204]] 8
          %207 = dma.general %s175, 3584, %s189, %s165, [#allocation10], [#allocation11], %s187, 0
        $region20: #{tpu_custom_call.1} parent=15 // pred_fallthru
          _
        // Predicated region
        $region21: #{tpu_custom_call.1} parent=15 // pred_check
          %p208 = pneg %p84
        $region22: #{tpu_custom_call.1} parent=15 // pred_check_branch
          %210 = sbr.rel (%p208) target = $region24
        $region23: #{tpu_custom_call.1} parent=15 // pred_region
          #allocation13 [shape = 'u32[6]{0}', space=smem, size = 0x18, scoped, tag = 'DMA stride descriptor']
          %s211 = sand.u32 %s74, 1
          %s212 = scalar_lea.sflag [#allocation6], %s211
          %s213 = sand.u32 %s74, 1
          %s214 = smul.addr %s213, 1024
          %s215 = scalar_lea.vmem [#allocation5], %s214
          %s216 = sadd.s32 %s29, %s30
          %s217 = smul.u32 2, %s216
          %s219 = ssub.s32 16384, 16384
          %220 = vsyncadd %s212, %s219
          %s221 = smul.addr %s217, 128
          %s222 = scalar_lea.hbm %s1, %s221
          %s224 = sshll.u32 1, 14
          %s225 = sxor.u32 4294967295, %s224
          %s227 = sld [smem:[#allocation0]]
          %s228 = sadd.s32 2, %s227
          %s230 = sshll.u32 7, 26
          %s231 = sxor.u32 4294967295, %s230
          %s232 = sand.u32 0, %s231
          %s233 = sshll.u32 %s228, 26
          %s234 = sor.u32 %s232, %s233
          %s235 = sshll.u32 %s215, 4
          %s236 = int_to_ptr.vmem [resolvable:$true] %s235
          %242 = sst [smem:[#allocation13]] 512
          %s243 = scalar_lea.smem [#allocation13], 1
          %244 = sst [smem:[%s243]] 256
          %s245 = scalar_lea.smem [#allocation13], 2
          %246 = sst [smem:[%s245]] 2
          %s247 = scalar_lea.smem [#allocation13], 3
          %248 = sst [smem:[%s247]] 128
          %s249 = scalar_lea.smem [#allocation13], 4
          %250 = sst [smem:[%s249]] 128
          %s251 = scalar_lea.smem [#allocation13], 5
          %252 = sst [smem:[%s251]] 8
          %254 = dma.general %s222, 16384, %s236, %s212, [#allocation12], [#allocation13], %s234, 0
        $region24: #{tpu_custom_call.1} parent=15 // pred_fallthru
          _
      $region16: #{tpu_custom_call.1} parent=5 // pred_fallthru
        _
      %p255 = scmp.le.s32.totalorder 1, %s22
      %p256 = scmp.lt.s32.totalorder %s22, 3
      %p257 = pnand %p255, %p256
      %p258 = pneg %p257
      // Predicated region
      $region25: #{tpu_custom_call.1} parent=5 // pred_check
        _
      $region26: #{tpu_custom_call.1} parent=5 // pred_check_branch
        %260 = sbr.rel (%p257) target = $region28
      $region27: #{tpu_custom_call.1} parent=5 // pred_region
        %s261 = ssub.s32 %s22, 1
        %s262 = sand.u32 %s49, 1
        %s263 = scalar_lea.sflag [#allocation3], %s262
        %s264 = sand.u32 %s49, 1
        %s265 = smul.addr %s264, 224
        %s266 = scalar_lea.vmem [#allocation2], %s265
        // Predicated region
        $region29: #{tpu_custom_call.1} parent=27 // pred_check
          %p267 = pneg %p62
        $region30: #{tpu_custom_call.1} parent=27 // pred_check_branch
          %269 = sbr.rel (%p267) target = $region32
        $region31: #{tpu_custom_call.1} parent=27 // pred_region
          %270 = dma.done %s263, 3584
        $region32: #{tpu_custom_call.1} parent=27 // pred_fallthru
          _
        %s271 = sand.u32 %s77, 1
        %s272 = scalar_lea.sflag [#allocation6], %s271
        %s273 = sand.u32 %s77, 1
        %s274 = smul.addr %s273, 1024
        %s275 = scalar_lea.vmem [#allocation5], %s274
        // Predicated region
        $region33: #{tpu_custom_call.1} parent=27 // pred_check
          %p276 = pneg %p90
        $region34: #{tpu_custom_call.1} parent=27 // pred_check_branch
          %278 = sbr.rel (%p276) target = $region36
        $region35: #{tpu_custom_call.1} parent=27 // pred_region
          %279 = dma.done %s272, 16384
        $region36: #{tpu_custom_call.1} parent=27 // pred_fallthru
          _
        %s280 = sand.u32 %s49, 1
        %s281 = scalar_lea.sflag [#allocation3], %s280
        %s282 = sand.u32 %s49, 1
        %s283 = smul.addr %s282, 224
        %s284 = scalar_lea.vmem [#allocation2], %s283
        %p285 = pneg %p62
        %p286 = pneg %p59
        %s287 = sand.u32 %s77, 1
        %s288 = scalar_lea.sflag [#allocation6], %s287
        %s289 = sand.u32 %s77, 1
        %s290 = smul.addr %s289, 1024
        %s291 = scalar_lea.vmem [#allocation5], %s290
        %p292 = pneg %p90
        %p293 = pneg %p87
        %p294 = pneg %p116
        %p295 = pneg %p113
        %s296 = sand.u32 %s103, 1
        %s297 = scalar_lea.sflag [#allocation4], %s296
        %s298 = sand.u32 %s103, 1
        %s299 = smul.addr %s298, 16
        %s300 = scalar_lea.vmem [#allocation7], %s299
        %p301 = pneg %p142
        %p302 = pneg %p139
        %s303 = sand.u32 %s129, 1
        %s304 = scalar_lea.sflag [#allocation9], %s303
        %s305 = sand.u32 %s129, 1
        %s306 = smul.addr %s305, 16
        %s307 = scalar_lea.vmem [#allocation8], %s306
        %s308 = sadd.s32 %s31, %s32
        %s309 = smul.u32 2, %s308
        %s310 = sadd.s32 %s31, %s32
        %s311 = smul.u32 2, %s310
        %p312 = scmp.eq.s32.totalorder %s32, 0
        // Predicated region
        $region37: #{tpu_custom_call.1} parent=27 // pred_check
          %p313 = pneg %p312
        $region38: #{tpu_custom_call.1} parent=27 // pred_check_branch
          %315 = sbr.rel (%p313) target = $region40
        $region39: #{tpu_custom_call.1} parent=27 // pred_region
          %316 = vst [vmem:[%s300] sm:$0xff] 0.0
          %317 = vst [vmem:[%s300 + $0x8] sm:$0xff] 0.0
          %318 = vst [vmem:[%s307] sm:$0xff] 0.0
          %319 = vst [vmem:[%s307 + $0x8] sm:$0xff] 0.0
        $region40: #{tpu_custom_call.1} parent=27 // pred_fallthru
          _
        %v320 = vld [vmem:[%s266] sm:$0xff]
        %v321 = vld [vmem:[%s266 + $0x8] sm:$0xff]
        %s322 = sadd.s32 0, 16
        %s323 = scalar_lea.vmem %s266, %s322 [#allocation2]
        %v324 = vld [vmem:[%s323] sm:$0xff]
        %v325 = vld [vmem:[%s323 + $0x8] sm:$0xff]
        %s326 = sadd.s32 0, 32
        %s327 = scalar_lea.vmem %s266, %s326 [#allocation2]
        %v328 = vld [vmem:[%s327] sm:$0xff]
        %v329 = vld [vmem:[%s327 + $0x8] sm:$0xff]
        %s330 = sadd.s32 0, 48
        %s331 = scalar_lea.vmem %s266, %s330 [#allocation2]
        %v332 = vld [vmem:[%s331] sm:$0xff]
        %v333 = vld [vmem:[%s331 + $0x8] sm:$0xff]
        %s334 = sadd.s32 0, 64
        %s335 = scalar_lea.vmem %s266, %s334 [#allocation2]
        %v336 = vld [vmem:[%s335] sm:$0xff]
        %v337 = vld [vmem:[%s335 + $0x8] sm:$0xff]
        %s338 = sadd.s32 0, 80
        %s339 = scalar_lea.vmem %s266, %s338 [#allocation2]
        %v340 = vld [vmem:[%s339] sm:$0xff]
        %v341 = vld [vmem:[%s339 + $0x8] sm:$0xff]
        %s342 = sadd.s32 0, 96
        %s343 = scalar_lea.vmem %s266, %s342 [#allocation2]
        %v344 = vld [vmem:[%s343] sm:$0xff]
        %v345 = vld [vmem:[%s343 + $0x8] sm:$0xff]
        %s346 = sadd.s32 0, 112
        %s347 = scalar_lea.vmem %s266, %s346 [#allocation2]
        %v348 = vld [vmem:[%s347] sm:$0xff]
        %v349 = vld [vmem:[%s347 + $0x8] sm:$0xff]
        %s350 = sadd.s32 0, 128
        %s351 = scalar_lea.vmem %s266, %s350 [#allocation2]
        %v352 = vld [vmem:[%s351] sm:$0xff]
        %v353 = vld [vmem:[%s351 + $0x8] sm:$0xff]
        %s354 = sadd.s32 0, 144
        %s355 = scalar_lea.vmem %s266, %s354 [#allocation2]
        %v356 = vld [vmem:[%s355] sm:$0xff]
        %v357 = vld [vmem:[%s355 + $0x8] sm:$0xff]
        %s358 = sadd.s32 0, 160
        %s359 = scalar_lea.vmem %s266, %s358 [#allocation2]
        %v360 = vld [vmem:[%s359] sm:$0xff]
        %v361 = vld [vmem:[%s359 + $0x8] sm:$0xff]
        %s362 = sadd.s32 0, 176
        %s363 = scalar_lea.vmem %s266, %s362 [#allocation2]
        %v364 = vld [vmem:[%s363] sm:$0xff]
        %v365 = vld [vmem:[%s363 + $0x8] sm:$0xff]
        %s366 = sadd.s32 0, 192
        %s367 = scalar_lea.vmem %s266, %s366 [#allocation2]
        %v368 = vld [vmem:[%s367] sm:$0xff]
        %v369 = vld [vmem:[%s367 + $0x8] sm:$0xff]
        %s370 = sadd.s32 0, 208
        %s371 = scalar_lea.vmem %s266, %s370 [#allocation2]
        %v372 = vld [vmem:[%s371] sm:$0xff]
        %v373 = vld [vmem:[%s371 + $0x8] sm:$0xff]
        %vm374 = vcmp.gt.f32.partialorder %v372, 0.5
        %vm375 = vcmp.gt.f32.partialorder %v373, 0.5
        %v376 = vmul.f32 %v328, %v328
        %v377 = vmul.f32 %v329, %v329
        %v378 = vmul.f32 %v376, 0.083333336
        %v379 = vmul.f32 %v377, 0.083333336
        %v380 = vmul.f32 %v332, %v332
        %v381 = vmul.f32 %v333, %v333
        %v382 = vmul.f32 %v380, 0.083333336
        %v383 = vmul.f32 %v381, 0.083333336
        %v384 = vand.u32 2147483647, %v336
        %vm385 = vcmp.le.f32.partialorder %v384, 0.7853982
        %vm386 = vcmp.lt.s32.totalorder %v336, 0
        %v387 = vand.u32 %v336, 2139095040
        %v388 = vshrl.u32 %v387, 23
        %v389 = vsub.s32 %v388, 127
        %v390 = vand.u32 2147483647, %v336
        %v391 = vand.u32 %v390, 8388607
        %v392 = vor.u32 %v391, 8388608
        %v393 = vsub.s32 0, %v392
        %v394 = vadd.s32 %v389, 1
        %vm395 = vcmp.gt.s32.totalorder %v394, 0
        %v396 = vsel %vm395, %v394, 0
        %v397 = vshrl.u32 %v396, 5
        %v398 = vand.u32 %v396, 31
        %v399 = vsub.s32 32, %v398
        %v400 = vshrl.u32 683565275, %v399
        %v401 = vshll.u32 683565275, %v398
        %v402 = vshrl.u32 2475754826, %v399
        %v403 = vor.u32 %v401, %v402
        %v404 = vshll.u32 2475754826, %v398
        %v405 = vshrl.u32 2131351028, %v399
        %v406 = vor.u32 %v404, %v405
        %v407 = vshll.u32 2131351028, %v398
        %v408 = vshrl.u32 2102212464, %v399
        %v409 = vor.u32 %v407, %v408
        %v410 = vshll.u32 2102212464, %v398
        %v411 = vshrl.u32 920167782, %v399
        %v412 = vor.u32 %v410, %v411
        %v413 = vshll.u32 920167782, %v398
        %v414 = vshrl.u32 1326507024, %v399
        %v415 = vor.u32 %v413, %v414
        %vm416 = vcmp.lt.s32.totalorder %v397, 1
        %vm417 = vcmp.lt.s32.totalorder %v397, 2
        %vm418 = vcmp.lt.s32.totalorder %v397, 3
        %vm419 = vcmp.lt.s32.totalorder %v397, 4
        %v420 = vsel %vm416, %v400, %v403
        %v421 = vsel %vm419, %v409, 2102212464
        %v422 = vsel %vm418, %v406, %v421
        %v423 = vsel %vm417, %v420, %v422
        %v424 = vsel %vm416, %v403, %v406
        %v425 = vsel %vm419, %v412, 920167782
        %v426 = vsel %vm418, %v409, %v425
        %v427 = vsel %vm417, %v424, %v426
        %v428 = vsel %vm416, %v406, %v409
        %v429 = vsel %vm419, %v415, 1326507024
        %v430 = vsel %vm418, %v412, %v429
        %v431 = vsel %vm417, %v428, %v430
        %v432 = vshll.u32 %v392, 8
        %v433 = vmul.u32.u64.compose %v432, %v431
        %v434 = vextract.low.u32 %v433
        %v435 = vextract.high.u32 %v433
        %v436 = vmul.u32.u64.compose %v432, %v427
        %v437 = vextract.low.u32 %v436
        %v438 = vextract.high.u32 %v436
        %v439 = vmul.u32 %v432, %v423
        %v440 = vadd.s32 %v435, %v437
        %vm441 = vc.u32 %v435, %v437
        %v442 = vadd.s32 %v438, 1
        %v443 = vsel %vm441, %v442, %v438
        %v444 = vadd.s32 %v439, %v443
        %v445 = vadd.s32 %v444, 536870912
        %v446 = vshrl.u32 %v445, 30
        %v447 = vshll.u32 %v446, 30
        %v448 = vsub.s32 %v444, %v447
        %vm449 = vcmp.lt.s32.totalorder %v448, 0
        %v450 = vsub.s32 0, %v448
        %v451 = vsel %vm449, %v450, %v448
        %v452 = vclz %v451
        %v453 = vsub.s32 %v452, 2
        %vm454 = vcmp.gt.s32.totalorder 0, %v453
        %v455 = vsel %vm454, 0, %v453
        %v456 = vsub.s32 32, %v455
        %v457 = vshll.u32 %v448, %v455
        %v458 = vshrl.u32 %v440, %v456
        %v459 = vor.u32 %v457, %v458
        %v460 = vsub.s32 4294967266, %v455
        %v461 = vadd.s32 %v460, 127
        %v462 = vshll.u32 %v461, 23
        %v463 = vor.u32 4788187, %v462
        %v464 = vand.u32 2147483647, %v463
        %v466 = vcvt.s32.f32 %v459
        %v467 = vmul.f32 %v466, %v464
        %v468 = vxor.u32 %v467, 2147483648
        %v469 = vsel %vm386, %v468, %v467
        %v470 = vsub.s32 4, %v446
        %v471 = vsel %vm386, %v470, %v446
        %v472 = vsel %vm385, %v336, %v469
        %v473 = vsel %vm385, 0, %v471
        %v474 = vcosq.f32.pop %v472
        %v475 = vsinq.f32.pop %v472
        %vm476 = vweird.f32 %v336
        %v477 = vand.u32 %v473, 3
        %vm478 = vcmp.lt.s32.totalorder %v477, 2
        %vm479 = vcmp.eq.s32.totalorder %v477, 0
        %v480 = vxor.u32 %v475, 2147483648
        %v481 = vsel %vm479, %v474, %v480
        %vm482 = vcmp.eq.s32.totalorder %v477, 2
        %v483 = vxor.u32 %v474, 2147483648
        %v484 = vsel %vm482, %v483, %v475
        %v485 = vsel %vm478, %v481, %v484
        %v486 = vsel %vm476, nan, %v485
        %v487 = vand.u32 2147483647, %v337
        %vm488 = vcmp.le.f32.partialorder %v487, 0.7853982
        %vm489 = vcmp.lt.s32.totalorder %v337, 0
        %v490 = vand.u32 %v337, 2139095040
        %v491 = vshrl.u32 %v490, 23
        %v492 = vsub.s32 %v491, 127
        %v493 = vand.u32 2147483647, %v337
        %v494 = vand.u32 %v493, 8388607
        %v495 = vor.u32 %v494, 8388608
        %v496 = vsub.s32 0, %v495
        %v497 = vadd.s32 %v492, 1
        %vm498 = vcmp.gt.s32.totalorder %v497, 0
        %v499 = vsel %vm498, %v497, 0
        %v500 = vshrl.u32 %v499, 5
        %v501 = vand.u32 %v499, 31
        %v502 = vsub.s32 32, %v501
        %v503 = vshrl.u32 683565275, %v502
        %v504 = vshll.u32 683565275, %v501
        %v505 = vshrl.u32 2475754826, %v502
        %v506 = vor.u32 %v504, %v505
        %v507 = vshll.u32 2475754826, %v501
        %v508 = vshrl.u32 2131351028, %v502
        %v509 = vor.u32 %v507, %v508
        %v510 = vshll.u32 2131351028, %v501
        %v511 = vshrl.u32 2102212464, %v502
        %v512 = vor.u32 %v510, %v511
        %v513 = vshll.u32 2102212464, %v501
        %v514 = vshrl.u32 920167782, %v502
        %v515 = vor.u32 %v513, %v514
        %v516 = vshll.u32 920167782, %v501
        %v517 = vshrl.u32 1326507024, %v502
        %v518 = vor.u32 %v516, %v517
        %vm519 = vcmp.lt.s32.totalorder %v500, 1
        %vm520 = vcmp.lt.s32.totalorder %v500, 2
        %vm521 = vcmp.lt.s32.totalorder %v500, 3
        %vm522 = vcmp.lt.s32.totalorder %v500, 4
        %v523 = vsel %vm519, %v503, %v506
        %v524 = vsel %vm522, %v512, 2102212464
        %v525 = vsel %vm521, %v509, %v524
        %v526 = vsel %vm520, %v523, %v525
        %v527 = vsel %vm519, %v506, %v509
        %v528 = vsel %vm522, %v515, 920167782
        %v529 = vsel %vm521, %v512, %v528
        %v530 = vsel %vm520, %v527, %v529
        %v531 = vsel %vm519, %v509, %v512
        %v532 = vsel %vm522, %v518, 1326507024
        %v533 = vsel %vm521, %v515, %v532
        %v534 = vsel %vm520, %v531, %v533
        %v535 = vshll.u32 %v495, 8
        %v536 = vmul.u32.u64.compose %v535, %v534
        %v537 = vextract.low.u32 %v536
        %v538 = vextract.high.u32 %v536
        %v539 = vmul.u32.u64.compose %v535, %v530
        %v540 = vextract.low.u32 %v539
        %v541 = vextract.high.u32 %v539
        %v542 = vmul.u32 %v535, %v526
        %v543 = vadd.s32 %v538, %v540
        %vm544 = vc.u32 %v538, %v540
        %v545 = vadd.s32 %v541, 1
        %v546 = vsel %vm544, %v545, %v541
        %v547 = vadd.s32 %v542, %v546
        %v548 = vadd.s32 %v547, 536870912
        %v549 = vshrl.u32 %v548, 30
        %v550 = vshll.u32 %v549, 30
        %v551 = vsub.s32 %v547, %v550
        %vm552 = vcmp.lt.s32.totalorder %v551, 0
        %v553 = vsub.s32 0, %v551
        %v554 = vsel %vm552, %v553, %v551
        %v555 = vclz %v554
        %v556 = vsub.s32 %v555, 2
        %vm557 = vcmp.gt.s32.totalorder 0, %v556
        %v558 = vsel %vm557, 0, %v556
        %v559 = vsub.s32 32, %v558
        %v560 = vshll.u32 %v551, %v558
        %v561 = vshrl.u32 %v543, %v559
        %v562 = vor.u32 %v560, %v561
        %v563 = vsub.s32 4294967266, %v558
        %v564 = vadd.s32 %v563, 127
        %v565 = vshll.u32 %v564, 23
        %v566 = vor.u32 4788187, %v565
        %v567 = vand.u32 2147483647, %v566
        %v569 = vcvt.s32.f32 %v562
        %v570 = vmul.f32 %v569, %v567
        %v571 = vxor.u32 %v570, 2147483648
        %v572 = vsel %vm489, %v571, %v570
        %v573 = vsub.s32 4, %v549
        %v574 = vsel %vm489, %v573, %v549
        %v575 = vsel %vm488, %v337, %v572
        %v576 = vsel %vm488, 0, %v574
        %v577 = vcosq.f32.pop %v575
        %v578 = vsinq.f32.pop %v575
        %vm579 = vweird.f32 %v337
        %v580 = vand.u32 %v576, 3
        %vm581 = vcmp.lt.s32.totalorder %v580, 2
        %vm582 = vcmp.eq.s32.totalorder %v580, 0
        %v583 = vxor.u32 %v578, 2147483648
        %v584 = vsel %vm582, %v577, %v583
        %vm585 = vcmp.eq.s32.totalorder %v580, 2
        %v586 = vxor.u32 %v577, 2147483648
        %v587 = vsel %vm585, %v586, %v578
        %v588 = vsel %vm581, %v584, %v587
        %v589 = vsel %vm579, nan, %v588
        %v590 = vand.u32 2147483647, %v336
        %vm591 = vcmp.le.f32.partialorder %v590, 0.7853982
        %vm592 = vcmp.lt.s32.totalorder %v336, 0
        %v593 = vand.u32 %v336, 2139095040
        %v594 = vshrl.u32 %v593, 23
        %v595 = vsub.s32 %v594, 127
        %v596 = vand.u32 2147483647, %v336
        %v597 = vand.u32 %v596, 8388607
        %v598 = vor.u32 %v597, 8388608
        %v599 = vsub.s32 0, %v598
        %v600 = vadd.s32 %v595, 1
        %vm601 = vcmp.gt.s32.totalorder %v600, 0
        %v602 = vsel %vm601, %v600, 0
        %v603 = vshrl.u32 %v602, 5
        %v604 = vand.u32 %v602, 31
        %v605 = vsub.s32 32, %v604
        %v606 = vshrl.u32 683565275, %v605
        %v607 = vshll.u32 683565275, %v604
        %v608 = vshrl.u32 2475754826, %v605
        %v609 = vor.u32 %v607, %v608
        %v610 = vshll.u32 2475754826, %v604
        %v611 = vshrl.u32 2131351028, %v605
        %v612 = vor.u32 %v610, %v611
        %v613 = vshll.u32 2131351028, %v604
        %v614 = vshrl.u32 2102212464, %v605
        %v615 = vor.u32 %v613, %v614
        %v616 = vshll.u32 2102212464, %v604
        %v617 = vshrl.u32 920167782, %v605
        %v618 = vor.u32 %v616, %v617
        %v619 = vshll.u32 920167782, %v604
        %v620 = vshrl.u32 1326507024, %v605
        %v621 = vor.u32 %v619, %v620
        %vm622 = vcmp.lt.s32.totalorder %v603, 1
        %vm623 = vcmp.lt.s32.totalorder %v603, 2
        %vm624 = vcmp.lt.s32.totalorder %v603, 3
        %vm625 = vcmp.lt.s32.totalorder %v603, 4
        %v626 = vsel %vm622, %v606, %v609
        %v627 = vsel %vm625, %v615, 2102212464
        %v628 = vsel %vm624, %v612, %v627
        %v629 = vsel %vm623, %v626, %v628
        %v630 = vsel %vm622, %v609, %v612
        %v631 = vsel %vm625, %v618, 920167782
        %v632 = vsel %vm624, %v615, %v631
        %v633 = vsel %vm623, %v630, %v632
        %v634 = vsel %vm622, %v612, %v615
        %v635 = vsel %vm625, %v621, 1326507024
        %v636 = vsel %vm624, %v618, %v635
        %v637 = vsel %vm623, %v634, %v636
        %v638 = vshll.u32 %v598, 8
        %v639 = vmul.u32.u64.compose %v638, %v637
        %v640 = vextract.low.u32 %v639
        %v641 = vextract.high.u32 %v639
        %v642 = vmul.u32.u64.compose %v638, %v633
        %v643 = vextract.low.u32 %v642
        %v644 = vextract.high.u32 %v642
        %v645 = vmul.u32 %v638, %v629
        %v646 = vadd.s32 %v641, %v643
        %vm647 = vc.u32 %v641, %v643
        %v648 = vadd.s32 %v644, 1
        %v649 = vsel %vm647, %v648, %v644
        %v650 = vadd.s32 %v645, %v649
        %v651 = vadd.s32 %v650, 536870912
        %v652 = vshrl.u32 %v651, 30
        %v653 = vshll.u32 %v652, 30
        %v654 = vsub.s32 %v650, %v653
        %vm655 = vcmp.lt.s32.totalorder %v654, 0
        %v656 = vsub.s32 0, %v654
        %v657 = vsel %vm655, %v656, %v654
        %v658 = vclz %v657
        %v659 = vsub.s32 %v658, 2
        %vm660 = vcmp.gt.s32.totalorder 0, %v659
        %v661 = vsel %vm660, 0, %v659
        %v662 = vsub.s32 32, %v661
        %v663 = vshll.u32 %v654, %v661
        %v664 = vshrl.u32 %v646, %v662
        %v665 = vor.u32 %v663, %v664
        %v666 = vsub.s32 4294967266, %v661
        %v667 = vadd.s32 %v666, 127
        %v668 = vshll.u32 %v667, 23
        %v669 = vor.u32 4788187, %v668
        %v670 = vand.u32 2147483647, %v669
        %v672 = vcvt.s32.f32 %v665
        %v673 = vmul.f32 %v672, %v670
        %v674 = vxor.u32 %v673, 2147483648
        %v675 = vsel %vm592, %v674, %v673
        %v676 = vsub.s32 4, %v652
        %v677 = vsel %vm592, %v676, %v652
        %v678 = vsel %vm591, %v336, %v675
        %v679 = vsel %vm591, 0, %v677
        %v680 = vcosq.f32.pop %v678
        %v681 = vsinq.f32.pop %v678
        %vm682 = vweird.f32 %v336
        %v683 = vadd.s32 %v679, 3
        %v684 = vand.u32 %v683, 3
        %vm685 = vcmp.lt.s32.totalorder %v684, 2
        %vm686 = vcmp.eq.s32.totalorder %v684, 0
        %v687 = vxor.u32 %v681, 2147483648
        %v688 = vsel %vm686, %v680, %v687
        %vm689 = vcmp.eq.s32.totalorder %v684, 2
        %v690 = vxor.u32 %v680, 2147483648
        %v691 = vsel %vm689, %v690, %v681
        %v692 = vsel %vm685, %v688, %v691
        %v693 = vsel %vm682, nan, %v692
        %v694 = vand.u32 2147483647, %v337
        %vm695 = vcmp.le.f32.partialorder %v694, 0.7853982
        %vm696 = vcmp.lt.s32.totalorder %v337, 0
        %v697 = vand.u32 %v337, 2139095040
        %v698 = vshrl.u32 %v697, 23
        %v699 = vsub.s32 %v698, 127
        %v700 = vand.u32 2147483647, %v337
        %v701 = vand.u32 %v700, 8388607
        %v702 = vor.u32 %v701, 8388608
        %v703 = vsub.s32 0, %v702
        %v704 = vadd.s32 %v699, 1
        %vm705 = vcmp.gt.s32.totalorder %v704, 0
        %v706 = vsel %vm705, %v704, 0
        %v707 = vshrl.u32 %v706, 5
        %v708 = vand.u32 %v706, 31
        %v709 = vsub.s32 32, %v708
        %v710 = vshrl.u32 683565275, %v709
        %v711 = vshll.u32 683565275, %v708
        %v712 = vshrl.u32 2475754826, %v709
        %v713 = vor.u32 %v711, %v712
        %v714 = vshll.u32 2475754826, %v708
        %v715 = vshrl.u32 2131351028, %v709
        %v716 = vor.u32 %v714, %v715
        %v717 = vshll.u32 2131351028, %v708
        %v718 = vshrl.u32 2102212464, %v709
        %v719 = vor.u32 %v717, %v718
        %v720 = vshll.u32 2102212464, %v708
        %v721 = vshrl.u32 920167782, %v709
        %v722 = vor.u32 %v720, %v721
        %v723 = vshll.u32 920167782, %v708
        %v724 = vshrl.u32 1326507024, %v709
        %v725 = vor.u32 %v723, %v724
        %vm726 = vcmp.lt.s32.totalorder %v707, 1
        %vm727 = vcmp.lt.s32.totalorder %v707, 2
        %vm728 = vcmp.lt.s32.totalorder %v707, 3
        %vm729 = vcmp.lt.s32.totalorder %v707, 4
        %v730 = vsel %vm726, %v710, %v713
        %v731 = vsel %vm729, %v719, 2102212464
        %v732 = vsel %vm728, %v716, %v731
        %v733 = vsel %vm727, %v730, %v732
        %v734 = vsel %vm726, %v713, %v716
        %v735 = vsel %vm729, %v722, 920167782
        %v736 = vsel %vm728, %v719, %v735
        %v737 = vsel %vm727, %v734, %v736
        %v738 = vsel %vm726, %v716, %v719
        %v739 = vsel %vm729, %v725, 1326507024
        %v740 = vsel %vm728, %v722, %v739
        %v741 = vsel %vm727, %v738, %v740
        %v742 = vshll.u32 %v702, 8
        %v743 = vmul.u32.u64.compose %v742, %v741
        %v744 = vextract.low.u32 %v743
        %v745 = vextract.high.u32 %v743
        %v746 = vmul.u32.u64.compose %v742, %v737
        %v747 = vextract.low.u32 %v746
        %v748 = vextract.high.u32 %v746
        %v749 = vmul.u32 %v742, %v733
        %v750 = vadd.s32 %v745, %v747
        %vm751 = vc.u32 %v745, %v747
        %v752 = vadd.s32 %v748, 1
        %v753 = vsel %vm751, %v752, %v748
        %v754 = vadd.s32 %v749, %v753
        %v755 = vadd.s32 %v754, 536870912
        %v756 = vshrl.u32 %v755, 30
        %v757 = vshll.u32 %v756, 30
        %v758 = vsub.s32 %v754, %v757
        %vm759 = vcmp.lt.s32.totalorder %v758, 0
        %v760 = vsub.s32 0, %v758
        %v761 = vsel %vm759, %v760, %v758
        %v762 = vclz %v761
        %v763 = vsub.s32 %v762, 2
        %vm764 = vcmp.gt.s32.totalorder 0, %v763
        %v765 = vsel %vm764, 0, %v763
        %v766 = vsub.s32 32, %v765
        %v767 = vshll.u32 %v758, %v765
        %v768 = vshrl.u32 %v750, %v766
        %v769 = vor.u32 %v767, %v768
        %v770 = vsub.s32 4294967266, %v765
        %v771 = vadd.s32 %v770, 127
        %v772 = vshll.u32 %v771, 23
        %v773 = vor.u32 4788187, %v772
        %v774 = vand.u32 2147483647, %v773
        %v776 = vcvt.s32.f32 %v769
        %v777 = vmul.f32 %v776, %v774
        %v778 = vxor.u32 %v777, 2147483648
        %v779 = vsel %vm696, %v778, %v777
        %v780 = vsub.s32 4, %v756
        %v781 = vsel %vm696, %v780, %v756
        %v782 = vsel %vm695, %v337, %v779
        %v783 = vsel %vm695, 0, %v781
        %v784 = vcosq.f32.pop %v782
        %v785 = vsinq.f32.pop %v782
        %vm786 = vweird.f32 %v337
        %v787 = vadd.s32 %v783, 3
        %v788 = vand.u32 %v787, 3
        %vm789 = vcmp.lt.s32.totalorder %v788, 2
        %vm790 = vcmp.eq.s32.totalorder %v788, 0
        %v791 = vxor.u32 %v785, 2147483648
        %v792 = vsel %vm790, %v784, %v791
        %vm793 = vcmp.eq.s32.totalorder %v788, 2
        %v794 = vxor.u32 %v784, 2147483648
        %v795 = vsel %vm793, %v794, %v785
        %v796 = vsel %vm789, %v792, %v795
        %v797 = vsel %vm786, nan, %v796
        %v798 = vmul.f32 %v486, %v486
        %v799 = vmul.f32 %v589, %v589
        %v800 = vmul.f32 %v693, %v693
        %v801 = vmul.f32 %v797, %v797
        %v802 = vmul.f32 %v378, %v798
        %v803 = vmul.f32 %v379, %v799
        %v804 = vmul.f32 %v382, %v800
        %v805 = vmul.f32 %v383, %v801
        %v806 = vadd.f32 %v802, %v804
        %v807 = vadd.f32 %v803, %v805
        %v808 = vmul.f32 %v378, %v800
        %v809 = vmul.f32 %v379, %v801
        %v810 = vmul.f32 %v382, %v798
        %v811 = vmul.f32 %v383, %v799
        %v812 = vadd.f32 %v808, %v810
        %v813 = vadd.f32 %v809, %v811
        %v814 = vsub.f32 %v378, %v382
        %v815 = vsub.f32 %v379, %v383
        %v816 = vmul.f32 %v814, %v486
        %v817 = vmul.f32 %v815, %v589
        %v818 = vmul.f32 %v816, %v693
        %v819 = vmul.f32 %v817, %v797
        %v820 = vmul.f32 %v348, %v348
        %v821 = vmul.f32 %v349, %v349
        %v822 = vmul.f32 %v820, 0.083333336
        %v823 = vmul.f32 %v821, 0.083333336
        %v824 = vmul.f32 %v352, %v352
        %v825 = vmul.f32 %v353, %v353
        %v826 = vmul.f32 %v824, 0.083333336
        %v827 = vmul.f32 %v825, 0.083333336
        %v828 = vand.u32 2147483647, %v356
        %vm829 = vcmp.le.f32.partialorder %v828, 0.7853982
        %vm830 = vcmp.lt.s32.totalorder %v356, 0
        %v831 = vand.u32 %v356, 2139095040
        %v832 = vshrl.u32 %v831, 23
        %v833 = vsub.s32 %v832, 127
        %v834 = vand.u32 2147483647, %v356
        %v835 = vand.u32 %v834, 8388607
        %v836 = vor.u32 %v835, 8388608
        %v837 = vsub.s32 0, %v836
        %v838 = vadd.s32 %v833, 1
        %vm839 = vcmp.gt.s32.totalorder %v838, 0
        %v840 = vsel %vm839, %v838, 0
        %v841 = vshrl.u32 %v840, 5
        %v842 = vand.u32 %v840, 31
        %v843 = vsub.s32 32, %v842
        %v844 = vshrl.u32 683565275, %v843
        %v845 = vshll.u32 683565275, %v842
        %v846 = vshrl.u32 2475754826, %v843
        %v847 = vor.u32 %v845, %v846
        %v848 = vshll.u32 2475754826, %v842
        %v849 = vshrl.u32 2131351028, %v843
        %v850 = vor.u32 %v848, %v849
        %v851 = vshll.u32 2131351028, %v842
        %v852 = vshrl.u32 2102212464, %v843
        %v853 = vor.u32 %v851, %v852
        %v854 = vshll.u32 2102212464, %v842
        %v855 = vshrl.u32 920167782, %v843
        %v856 = vor.u32 %v854, %v855
        %v857 = vshll.u32 920167782, %v842
        %v858 = vshrl.u32 1326507024, %v843
        %v859 = vor.u32 %v857, %v858
        %vm860 = vcmp.lt.s32.totalorder %v841, 1
        %vm861 = vcmp.lt.s32.totalorder %v841, 2
        %vm862 = vcmp.lt.s32.totalorder %v841, 3
        %vm863 = vcmp.lt.s32.totalorder %v841, 4
        %v864 = vsel %vm860, %v844, %v847
        %v865 = vsel %vm863, %v853, 2102212464
        %v866 = vsel %vm862, %v850, %v865
        %v867 = vsel %vm861, %v864, %v866
        %v868 = vsel %vm860, %v847, %v850
        %v869 = vsel %vm863, %v856, 920167782
        %v870 = vsel %vm862, %v853, %v869
        %v871 = vsel %vm861, %v868, %v870
        %v872 = vsel %vm860, %v850, %v853
        %v873 = vsel %vm863, %v859, 1326507024
        %v874 = vsel %vm862, %v856, %v873
        %v875 = vsel %vm861, %v872, %v874
        %v876 = vshll.u32 %v836, 8
        %v877 = vmul.u32.u64.compose %v876, %v875
        %v878 = vextract.low.u32 %v877
        %v879 = vextract.high.u32 %v877
        %v880 = vmul.u32.u64.compose %v876, %v871
        %v881 = vextract.low.u32 %v880
        %v882 = vextract.high.u32 %v880
        %v883 = vmul.u32 %v876, %v867
        %v884 = vadd.s32 %v879, %v881
        %vm885 = vc.u32 %v879, %v881
        %v886 = vadd.s32 %v882, 1
        %v887 = vsel %vm885, %v886, %v882
        %v888 = vadd.s32 %v883, %v887
        %v889 = vadd.s32 %v888, 536870912
        %v890 = vshrl.u32 %v889, 30
        %v891 = vshll.u32 %v890, 30
        %v892 = vsub.s32 %v888, %v891
        %vm893 = vcmp.lt.s32.totalorder %v892, 0
        %v894 = vsub.s32 0, %v892
        %v895 = vsel %vm893, %v894, %v892
        %v896 = vclz %v895
        %v897 = vsub.s32 %v896, 2
        %vm898 = vcmp.gt.s32.totalorder 0, %v897
        %v899 = vsel %vm898, 0, %v897
        %v900 = vsub.s32 32, %v899
        %v901 = vshll.u32 %v892, %v899
        %v902 = vshrl.u32 %v884, %v900
        %v903 = vor.u32 %v901, %v902
        %v904 = vsub.s32 4294967266, %v899
        %v905 = vadd.s32 %v904, 127
        %v906 = vshll.u32 %v905, 23
        %v907 = vor.u32 4788187, %v906
        %v908 = vand.u32 2147483647, %v907
        %v910 = vcvt.s32.f32 %v903
        %v911 = vmul.f32 %v910, %v908
        %v912 = vxor.u32 %v911, 2147483648
        %v913 = vsel %vm830, %v912, %v911
        %v914 = vsub.s32 4, %v890
        %v915 = vsel %vm830, %v914, %v890
        %v916 = vsel %vm829, %v356, %v913
        %v917 = vsel %vm829, 0, %v915
        %v918 = vcosq.f32.pop %v916
        %v919 = vsinq.f32.pop %v916
        %vm920 = vweird.f32 %v356
        %v921 = vand.u32 %v917, 3
        %vm922 = vcmp.lt.s32.totalorder %v921, 2
        %vm923 = vcmp.eq.s32.totalorder %v921, 0
        %v924 = vxor.u32 %v919, 2147483648
        %v925 = vsel %vm923, %v918, %v924
        %vm926 = vcmp.eq.s32.totalorder %v921, 2
        %v927 = vxor.u32 %v918, 2147483648
        %v928 = vsel %vm926, %v927, %v919
        %v929 = vsel %vm922, %v925, %v928
        %v930 = vsel %vm920, nan, %v929
        %v931 = vand.u32 2147483647, %v357
        %vm932 = vcmp.le.f32.partialorder %v931, 0.7853982
        %vm933 = vcmp.lt.s32.totalorder %v357, 0
        %v934 = vand.u32 %v357, 2139095040
        %v935 = vshrl.u32 %v934, 23
        %v936 = vsub.s32 %v935, 127
        %v937 = vand.u32 2147483647, %v357
        %v938 = vand.u32 %v937, 8388607
        %v939 = vor.u32 %v938, 8388608
        %v940 = vsub.s32 0, %v939
        %v941 = vadd.s32 %v936, 1
        %vm942 = vcmp.gt.s32.totalorder %v941, 0
        %v943 = vsel %vm942, %v941, 0
        %v944 = vshrl.u32 %v943, 5
        %v945 = vand.u32 %v943, 31
        %v946 = vsub.s32 32, %v945
        %v947 = vshrl.u32 683565275, %v946
        %v948 = vshll.u32 683565275, %v945
        %v949 = vshrl.u32 2475754826, %v946
        %v950 = vor.u32 %v948, %v949
        %v951 = vshll.u32 2475754826, %v945
        %v952 = vshrl.u32 2131351028, %v946
        %v953 = vor.u32 %v951, %v952
        %v954 = vshll.u32 2131351028, %v945
        %v955 = vshrl.u32 2102212464, %v946
        %v956 = vor.u32 %v954, %v955
        %v957 = vshll.u32 2102212464, %v945
        %v958 = vshrl.u32 920167782, %v946
        %v959 = vor.u32 %v957, %v958
        %v960 = vshll.u32 920167782, %v945
        %v961 = vshrl.u32 1326507024, %v946
        %v962 = vor.u32 %v960, %v961
        %vm963 = vcmp.lt.s32.totalorder %v944, 1
        %vm964 = vcmp.lt.s32.totalorder %v944, 2
        %vm965 = vcmp.lt.s32.totalorder %v944, 3
        %vm966 = vcmp.lt.s32.totalorder %v944, 4
        %v967 = vsel %vm963, %v947, %v950
        %v968 = vsel %vm966, %v956, 2102212464
        %v969 = vsel %vm965, %v953, %v968
        %v970 = vsel %vm964, %v967, %v969
        %v971 = vsel %vm963, %v950, %v953
        %v972 = vsel %vm966, %v959, 920167782
        %v973 = vsel %vm965, %v956, %v972
        %v974 = vsel %vm964, %v971, %v973
        %v975 = vsel %vm963, %v953, %v956
        %v976 = vsel %vm966, %v962, 1326507024
        %v977 = vsel %vm965, %v959, %v976
        %v978 = vsel %vm964, %v975, %v977
        %v979 = vshll.u32 %v939, 8
        %v980 = vmul.u32.u64.compose %v979, %v978
        %v981 = vextract.low.u32 %v980
        %v982 = vextract.high.u32 %v980
        %v983 = vmul.u32.u64.compose %v979, %v974
        %v984 = vextract.low.u32 %v983
        %v985 = vextract.high.u32 %v983
        %v986 = vmul.u32 %v979, %v970
        %v987 = vadd.s32 %v982, %v984
        %vm988 = vc.u32 %v982, %v984
        %v989 = vadd.s32 %v985, 1
        %v990 = vsel %vm988, %v989, %v985
        %v991 = vadd.s32 %v986, %v990
        %v992 = vadd.s32 %v991, 536870912
        %v993 = vshrl.u32 %v992, 30
        %v994 = vshll.u32 %v993, 30
        %v995 = vsub.s32 %v991, %v994
        %vm996 = vcmp.lt.s32.totalorder %v995, 0
        %v997 = vsub.s32 0, %v995
        %v998 = vsel %vm996, %v997, %v995
        %v999 = vclz %v998
        %v1000 = vsub.s32 %v999, 2
        %vm1001 = vcmp.gt.s32.totalorder 0, %v1000
        %v1002 = vsel %vm1001, 0, %v1000
        %v1003 = vsub.s32 32, %v1002
        %v1004 = vshll.u32 %v995, %v1002
        %v1005 = vshrl.u32 %v987, %v1003
        %v1006 = vor.u32 %v1004, %v1005
        %v1007 = vsub.s32 4294967266, %v1002
        %v1008 = vadd.s32 %v1007, 127
        %v1009 = vshll.u32 %v1008, 23
        %v1010 = vor.u32 4788187, %v1009
        %v1011 = vand.u32 2147483647, %v1010
        %v1013 = vcvt.s32.f32 %v1006
        %v1014 = vmul.f32 %v1013, %v1011
        %v1015 = vxor.u32 %v1014, 2147483648
        %v1016 = vsel %vm933, %v1015, %v1014
        %v1017 = vsub.s32 4, %v993
        %v1018 = vsel %vm933, %v1017, %v993
        %v1019 = vsel %vm932, %v357, %v1016
        %v1020 = vsel %vm932, 0, %v1018
        %v1021 = vcosq.f32.pop %v1019
        %v1022 = vsinq.f32.pop %v1019
        %vm1023 = vweird.f32 %v357
        %v1024 = vand.u32 %v1020, 3
        %vm1025 = vcmp.lt.s32.totalorder %v1024, 2
        %vm1026 = vcmp.eq.s32.totalorder %v1024, 0
        %v1027 = vxor.u32 %v1022, 2147483648
        %v1028 = vsel %vm1026, %v1021, %v1027
        %vm1029 = vcmp.eq.s32.totalorder %v1024, 2
        %v1030 = vxor.u32 %v1021, 2147483648
        %v1031 = vsel %vm1029, %v1030, %v1022
        %v1032 = vsel %vm1025, %v1028, %v1031
        %v1033 = vsel %vm1023, nan, %v1032
        %v1034 = vand.u32 2147483647, %v356
        %vm1035 = vcmp.le.f32.partialorder %v1034, 0.7853982
        %vm1036 = vcmp.lt.s32.totalorder %v356, 0
        %v1037 = vand.u32 %v356, 2139095040
        %v1038 = vshrl.u32 %v1037, 23
        %v1039 = vsub.s32 %v1038, 127
        %v1040 = vand.u32 2147483647, %v356
        %v1041 = vand.u32 %v1040, 8388607
        %v1042 = vor.u32 %v1041, 8388608
        %v1043 = vsub.s32 0, %v1042
        %v1044 = vadd.s32 %v1039, 1
        %vm1045 = vcmp.gt.s32.totalorder %v1044, 0
        %v1046 = vsel %vm1045, %v1044, 0
        %v1047 = vshrl.u32 %v1046, 5
        %v1048 = vand.u32 %v1046, 31
        %v1049 = vsub.s32 32, %v1048
        %v1050 = vshrl.u32 683565275, %v1049
        %v1051 = vshll.u32 683565275, %v1048
        %v1052 = vshrl.u32 2475754826, %v1049
        %v1053 = vor.u32 %v1051, %v1052
        %v1054 = vshll.u32 2475754826, %v1048
        %v1055 = vshrl.u32 2131351028, %v1049
        %v1056 = vor.u32 %v1054, %v1055
        %v1057 = vshll.u32 2131351028, %v1048
        %v1058 = vshrl.u32 2102212464, %v1049
        %v1059 = vor.u32 %v1057, %v1058
        %v1060 = vshll.u32 2102212464, %v1048
        %v1061 = vshrl.u32 920167782, %v1049
        %v1062 = vor.u32 %v1060, %v1061
        %v1063 = vshll.u32 920167782, %v1048
        %v1064 = vshrl.u32 1326507024, %v1049
        %v1065 = vor.u32 %v1063, %v1064
        %vm1066 = vcmp.lt.s32.totalorder %v1047, 1
        %vm1067 = vcmp.lt.s32.totalorder %v1047, 2
        %vm1068 = vcmp.lt.s32.totalorder %v1047, 3
        %vm1069 = vcmp.lt.s32.totalorder %v1047, 4
        %v1070 = vsel %vm1066, %v1050, %v1053
        %v1071 = vsel %vm1069, %v1059, 2102212464
        %v1072 = vsel %vm1068, %v1056, %v1071
        %v1073 = vsel %vm1067, %v1070, %v1072
        %v1074 = vsel %vm1066, %v1053, %v1056
        %v1075 = vsel %vm1069, %v1062, 920167782
        %v1076 = vsel %vm1068, %v1059, %v1075
        %v1077 = vsel %vm1067, %v1074, %v1076
        %v1078 = vsel %vm1066, %v1056, %v1059
        %v1079 = vsel %vm1069, %v1065, 1326507024
        %v1080 = vsel %vm1068, %v1062, %v1079
        %v1081 = vsel %vm1067, %v1078, %v1080
        %v1082 = vshll.u32 %v1042, 8
        %v1083 = vmul.u32.u64.compose %v1082, %v1081
        %v1084 = vextract.low.u32 %v1083
        %v1085 = vextract.high.u32 %v1083
        %v1086 = vmul.u32.u64.compose %v1082, %v1077
        %v1087 = vextract.low.u32 %v1086
        %v1088 = vextract.high.u32 %v1086
        %v1089 = vmul.u32 %v1082, %v1073
        %v1090 = vadd.s32 %v1085, %v1087
        %vm1091 = vc.u32 %v1085, %v1087
        %v1092 = vadd.s32 %v1088, 1
        %v1093 = vsel %vm1091, %v1092, %v1088
        %v1094 = vadd.s32 %v1089, %v1093
        %v1095 = vadd.s32 %v1094, 536870912
        %v1096 = vshrl.u32 %v1095, 30
        %v1097 = vshll.u32 %v1096, 30
        %v1098 = vsub.s32 %v1094, %v1097
        %vm1099 = vcmp.lt.s32.totalorder %v1098, 0
        %v1100 = vsub.s32 0, %v1098
        %v1101 = vsel %vm1099, %v1100, %v1098
        %v1102 = vclz %v1101
        %v1103 = vsub.s32 %v1102, 2
        %vm1104 = vcmp.gt.s32.totalorder 0, %v1103
        %v1105 = vsel %vm1104, 0, %v1103
        %v1106 = vsub.s32 32, %v1105
        %v1107 = vshll.u32 %v1098, %v1105
        %v1108 = vshrl.u32 %v1090, %v1106
        %v1109 = vor.u32 %v1107, %v1108
        %v1110 = vsub.s32 4294967266, %v1105
        %v1111 = vadd.s32 %v1110, 127
        %v1112 = vshll.u32 %v1111, 23
        %v1113 = vor.u32 4788187, %v1112
        %v1114 = vand.u32 2147483647, %v1113
        %v1116 = vcvt.s32.f32 %v1109
        %v1117 = vmul.f32 %v1116, %v1114
        %v1118 = vxor.u32 %v1117, 2147483648
        %v1119 = vsel %vm1036, %v1118, %v1117
        %v1120 = vsub.s32 4, %v1096
        %v1121 = vsel %vm1036, %v1120, %v1096
        %v1122 = vsel %vm1035, %v356, %v1119
        %v1123 = vsel %vm1035, 0, %v1121
        %v1124 = vcosq.f32.pop %v1122
        %v1125 = vsinq.f32.pop %v1122
        %vm1126 = vweird.f32 %v356
        %v1127 = vadd.s32 %v1123, 3
        %v1128 = vand.u32 %v1127, 3
        %vm1129 = vcmp.lt.s32.totalorder %v1128, 2
        %vm1130 = vcmp.eq.s32.totalorder %v1128, 0
        %v1131 = vxor.u32 %v1125, 2147483648
        %v1132 = vsel %vm1130, %v1124, %v1131
        %vm1133 = vcmp.eq.s32.totalorder %v1128, 2
        %v1134 = vxor.u32 %v1124, 2147483648
        %v1135 = vsel %vm1133, %v1134, %v1125
        %v1136 = vsel %vm1129, %v1132, %v1135
        %v1137 = vsel %vm1126, nan, %v1136
        %v1138 = vand.u32 2147483647, %v357
        %vm1139 = vcmp.le.f32.partialorder %v1138, 0.7853982
        %vm1140 = vcmp.lt.s32.totalorder %v357, 0
        %v1141 = vand.u32 %v357, 2139095040
        %v1142 = vshrl.u32 %v1141, 23
        %v1143 = vsub.s32 %v1142, 127
        %v1144 = vand.u32 2147483647, %v357
        %v1145 = vand.u32 %v1144, 8388607
        %v1146 = vor.u32 %v1145, 8388608
        %v1147 = vsub.s32 0, %v1146
        %v1148 = vadd.s32 %v1143, 1
        %vm1149 = vcmp.gt.s32.totalorder %v1148, 0
        %v1150 = vsel %vm1149, %v1148, 0
        %v1151 = vshrl.u32 %v1150, 5
        %v1152 = vand.u32 %v1150, 31
        %v1153 = vsub.s32 32, %v1152
        %v1154 = vshrl.u32 683565275, %v1153
        %v1155 = vshll.u32 683565275, %v1152
        %v1156 = vshrl.u32 2475754826, %v1153
        %v1157 = vor.u32 %v1155, %v1156
        %v1158 = vshll.u32 2475754826, %v1152
        %v1159 = vshrl.u32 2131351028, %v1153
        %v1160 = vor.u32 %v1158, %v1159
        %v1161 = vshll.u32 2131351028, %v1152
        %v1162 = vshrl.u32 2102212464, %v1153
        %v1163 = vor.u32 %v1161, %v1162
        %v1164 = vshll.u32 2102212464, %v1152
        %v1165 = vshrl.u32 920167782, %v1153
        %v1166 = vor.u32 %v1164, %v1165
        %v1167 = vshll.u32 920167782, %v1152
        %v1168 = vshrl.u32 1326507024, %v1153
        %v1169 = vor.u32 %v1167, %v1168
        %vm1170 = vcmp.lt.s32.totalorder %v1151, 1
        %vm1171 = vcmp.lt.s32.totalorder %v1151, 2
        %vm1172 = vcmp.lt.s32.totalorder %v1151, 3
        %vm1173 = vcmp.lt.s32.totalorder %v1151, 4
        %v1174 = vsel %vm1170, %v1154, %v1157
        %v1175 = vsel %vm1173, %v1163, 2102212464
        %v1176 = vsel %vm1172, %v1160, %v1175
        %v1177 = vsel %vm1171, %v1174, %v1176
        %v1178 = vsel %vm1170, %v1157, %v1160
        %v1179 = vsel %vm1173, %v1166, 920167782
        %v1180 = vsel %vm1172, %v1163, %v1179
        %v1181 = vsel %vm1171, %v1178, %v1180
        %v1182 = vsel %vm1170, %v1160, %v1163
        %v1183 = vsel %vm1173, %v1169, 1326507024
        %v1184 = vsel %vm1172, %v1166, %v1183
        %v1185 = vsel %vm1171, %v1182, %v1184
        %v1186 = vshll.u32 %v1146, 8
        %v1187 = vmul.u32.u64.compose %v1186, %v1185
        %v1188 = vextract.low.u32 %v1187
        %v1189 = vextract.high.u32 %v1187
        %v1190 = vmul.u32.u64.compose %v1186, %v1181
        %v1191 = vextract.low.u32 %v1190
        %v1192 = vextract.high.u32 %v1190
        %v1193 = vmul.u32 %v1186, %v1177
        %v1194 = vadd.s32 %v1189, %v1191
        %vm1195 = vc.u32 %v1189, %v1191
        %v1196 = vadd.s32 %v1192, 1
        %v1197 = vsel %vm1195, %v1196, %v1192
        %v1198 = vadd.s32 %v1193, %v1197
        %v1199 = vadd.s32 %v1198, 536870912
        %v1200 = vshrl.u32 %v1199, 30
        %v1201 = vshll.u32 %v1200, 30
        %v1202 = vsub.s32 %v1198, %v1201
        %vm1203 = vcmp.lt.s32.totalorder %v1202, 0
        %v1204 = vsub.s32 0, %v1202
        %v1205 = vsel %vm1203, %v1204, %v1202
        %v1206 = vclz %v1205
        %v1207 = vsub.s32 %v1206, 2
        %vm1208 = vcmp.gt.s32.totalorder 0, %v1207
        %v1209 = vsel %vm1208, 0, %v1207
        %v1210 = vsub.s32 32, %v1209
        %v1211 = vshll.u32 %v1202, %v1209
        %v1212 = vshrl.u32 %v1194, %v1210
        %v1213 = vor.u32 %v1211, %v1212
        %v1214 = vsub.s32 4294967266, %v1209
        %v1215 = vadd.s32 %v1214, 127
        %v1216 = vshll.u32 %v1215, 23
        %v1217 = vor.u32 4788187, %v1216
        %v1218 = vand.u32 2147483647, %v1217
        %v1220 = vcvt.s32.f32 %v1213
        %v1221 = vmul.f32 %v1220, %v1218
        %v1222 = vxor.u32 %v1221, 2147483648
        %v1223 = vsel %vm1140, %v1222, %v1221
        %v1224 = vsub.s32 4, %v1200
        %v1225 = vsel %vm1140, %v1224, %v1200
        %v1226 = vsel %vm1139, %v357, %v1223
        %v1227 = vsel %vm1139, 0, %v1225
        %v1228 = vcosq.f32.pop %v1226
        %v1229 = vsinq.f32.pop %v1226
        %vm1230 = vweird.f32 %v357
        %v1231 = vadd.s32 %v1227, 3
        %v1232 = vand.u32 %v1231, 3
        %vm1233 = vcmp.lt.s32.totalorder %v1232, 2
        %vm1234 = vcmp.eq.s32.totalorder %v1232, 0
        %v1235 = vxor.u32 %v1229, 2147483648
        %v1236 = vsel %vm1234, %v1228, %v1235
        %vm1237 = vcmp.eq.s32.totalorder %v1232, 2
        %v1238 = vxor.u32 %v1228, 2147483648
        %v1239 = vsel %vm1237, %v1238, %v1229
        %v1240 = vsel %vm1233, %v1236, %v1239
        %v1241 = vsel %vm1230, nan, %v1240
        %v1242 = vmul.f32 %v930, %v930
        %v1243 = vmul.f32 %v1033, %v1033
        %v1244 = vmul.f32 %v1137, %v1137
        %v1245 = vmul.f32 %v1241, %v1241
        %v1246 = vmul.f32 %v822, %v1242
        %v1247 = vmul.f32 %v823, %v1243
        %v1248 = vmul.f32 %v826, %v1244
        %v1249 = vmul.f32 %v827, %v1245
        %v1250 = vadd.f32 %v1246, %v1248
        %v1251 = vadd.f32 %v1247, %v1249
        %v1252 = vmul.f32 %v822, %v1244
        %v1253 = vmul.f32 %v823, %v1245
        %v1254 = vmul.f32 %v826, %v1242
        %v1255 = vmul.f32 %v827, %v1243
        %v1256 = vadd.f32 %v1252, %v1254
        %v1257 = vadd.f32 %v1253, %v1255
        %v1258 = vsub.f32 %v822, %v826
        %v1259 = vsub.f32 %v823, %v827
        %v1260 = vmul.f32 %v1258, %v930
        %v1261 = vmul.f32 %v1259, %v1033
        %v1262 = vmul.f32 %v1260, %v1137
        %v1263 = vmul.f32 %v1261, %v1241
        %v1264 = vadd.f32 %v806, %v1250
        %v1265 = vadd.f32 %v807, %v1251
        %v1266 = vadd.f32 %v812, %v1256
        %v1267 = vadd.f32 %v813, %v1257
        %v1268 = vadd.f32 %v818, %v1262
        %v1269 = vadd.f32 %v819, %v1263
        %v1270 = vmul.f32 %v1264, %v1266
        %v1271 = vmul.f32 %v1265, %v1267
        %v1272 = vmul.f32 %v1268, %v1268
        %v1273 = vmul.f32 %v1269, %v1269
        %v1274 = vsub.f32 %v1270, %v1272
        %v1275 = vsub.f32 %v1271, %v1273
        %v1276 = vmax.f32 %v1274, 0.0
        %v1277 = vmax.f32 %v1275, 0.0
        %v1278 = vadd.f32 %v1276, 1e-07
        %v1279 = vadd.f32 %v1277, 1e-07
        %v1280 = vrcp.pop %v1278
        %v1281 = vmul.f32 1.0, %v1280
        %v1282 = vrcp.pop %v1279
        %v1283 = vmul.f32 1.0, %v1282
        %v1284 = vsub.f32 %v320, %v340
        %v1285 = vsub.f32 %v321, %v341
        %v1286 = vsub.f32 %v324, %v344
        %v1287 = vsub.f32 %v325, %v345
        %v1288 = vmul.f32 %v1264, %v1286
        %v1289 = vmul.f32 %v1265, %v1287
        %v1290 = vmul.f32 %v1288, %v1286
        %v1291 = vmul.f32 %v1289, %v1287
        %v1292 = vmul.f32 %v1266, %v1284
        %v1293 = vmul.f32 %v1267, %v1285
        %v1294 = vmul.f32 %v1292, %v1284
        %v1295 = vmul.f32 %v1293, %v1285
        %v1296 = vadd.f32 %v1290, %v1294
        %v1297 = vadd.f32 %v1291, %v1295
        %v1298 = vmul.f32 %v1296, %v1281
        %v1299 = vmul.f32 %v1297, %v1283
        %v1300 = vmul.f32 %v1298, 0.25
        %v1301 = vmul.f32 %v1299, 0.25
        %v1302 = vsub.f32 0.0, %v1284
        %v1303 = vsub.f32 0.0, %v1285
        %v1304 = vmul.f32 %v1268, %v1302
        %v1305 = vmul.f32 %v1269, %v1303
        %v1306 = vmul.f32 %v1304, %v1286
        %v1307 = vmul.f32 %v1305, %v1287
        %v1308 = vmul.f32 %v1306, %v1281
        %v1309 = vmul.f32 %v1307, %v1283
        %v1310 = vmul.f32 %v1308, 0.5
        %v1311 = vmul.f32 %v1309, 0.5
        %v1312 = vmul.f32 %v806, %v812
        %v1313 = vmul.f32 %v807, %v813
        %v1314 = vmul.f32 %v818, %v818
        %v1315 = vmul.f32 %v819, %v819
        %v1316 = vsub.f32 %v1312, %v1314
        %v1317 = vsub.f32 %v1313, %v1315
        %v1318 = vmax.f32 %v1316, 0.0
        %v1319 = vmax.f32 %v1317, 0.0
        %v1320 = vmul.f32 %v1250, %v1256
        %v1321 = vmul.f32 %v1251, %v1257
        %v1322 = vmul.f32 %v1262, %v1262
        %v1323 = vmul.f32 %v1263, %v1263
        %v1324 = vsub.f32 %v1320, %v1322
        %v1325 = vsub.f32 %v1321, %v1323
        %v1326 = vmax.f32 %v1324, 0.0
        %v1327 = vmax.f32 %v1325, 0.0
        %v1328 = vmul.f32 %v1318, %v1326
        %v1329 = vmul.f32 %v1319, %v1327
        %v1330 = vrsqrt.pop %v1328
        %v1331 = vmul.f32 %v1328, %v1330
        %vm1332 = vcmp.eq.f32.partialorder %v1328, inf
        %v1333 = vsel %vm1332, %v1328, %v1331
        %vm1334 = vcmp.eq.f32.partialorder %v1328, 0.0
        %v1335 = vand.u32 %v1328, 2147483648
        %v1336 = vsel %vm1334, %v1335, %v1333
        %v1337 = vrsqrt.pop %v1329
        %v1338 = vmul.f32 %v1329, %v1337
        %vm1339 = vcmp.eq.f32.partialorder %v1329, inf
        %v1340 = vsel %vm1339, %v1329, %v1338
        %vm1341 = vcmp.eq.f32.partialorder %v1329, 0.0
        %v1342 = vand.u32 %v1329, 2147483648
        %v1343 = vsel %vm1341, %v1342, %v1340
        %v1344 = vmul.f32 %v1336, 4.0
        %v1345 = vmul.f32 %v1343, 4.0
        %v1346 = vadd.f32 %v1344, 1e-07
        %v1347 = vadd.f32 %v1345, 1e-07
        %v1348 = vrcp.pop %v1346
        %v1349 = vmul.f32 %v1276, %v1348
        %v1350 = vrcp.pop %v1347
        %v1351 = vmul.f32 %v1277, %v1350
        %v1352 = vadd.f32 %v1349, 1e-07
        %v1353 = vadd.f32 %v1351, 1e-07
        %v1354 = vlog2.pop %v1352
        %v1355 = vmul.f32 %v1354, 0.6931472
        %v1356 = vlog2.pop %v1353
        %v1357 = vmul.f32 %v1356, 0.6931472
        %v1358 = vmul.f32 %v1355, 0.5
        %v1359 = vmul.f32 %v1357, 0.5
        %v1360 = vadd.f32 %v1300, %v1310
        %v1361 = vadd.f32 %v1301, %v1311
        %v1362 = vadd.f32 %v1360, %v1358
        %v1363 = vadd.f32 %v1361, %v1359
        %v1364 = vmax.f32 %v1362, 1e-07
        %v1365 = vmax.f32 %v1363, 1e-07
        %v1366 = vmin.f32 %v1364, 100.0
        %v1367 = vmin.f32 %v1365, 100.0
        %v1368 = vsub.f32 0.0, %v1366
        %v1369 = vsub.f32 0.0, %v1367
        %v1370 = vmul.f32 %v1368, 1.442695
        %v1371 = vpow.pop %v1370
        %v1372 = vmul.f32 %v1369, 1.442695
        %v1373 = vpow.pop %v1372
        %v1374 = vsub.f32 1.0, %v1371
        %v1375 = vsub.f32 1.0, %v1373
        %v1376 = vadd.f32 %v1374, 1e-07
        %v1377 = vadd.f32 %v1375, 1e-07
        %v1378 = vrsqrt.pop %v1376
        %v1379 = vmul.f32 %v1376, %v1378
        %vm1380 = vcmp.eq.f32.partialorder %v1376, inf
        %v1381 = vsel %vm1380, %v1376, %v1379
        %vm1382 = vcmp.eq.f32.partialorder %v1376, 0.0
        %v1383 = vand.u32 %v1376, 2147483648
        %v1384 = vsel %vm1382, %v1383, %v1381
        %v1385 = vrsqrt.pop %v1377
        %v1386 = vmul.f32 %v1377, %v1385
        %vm1387 = vcmp.eq.f32.partialorder %v1377, inf
        %v1388 = vsel %vm1387, %v1377, %v1386
        %vm1389 = vcmp.eq.f32.partialorder %v1377, 0.0
        %v1390 = vand.u32 %v1377, 2147483648
        %v1391 = vsel %vm1389, %v1390, %v1388
        %v1392 = vld [vmem:[%s300] sm:$0xff]
        %v1393 = vld [vmem:[%s300 + $0x8] sm:$0xff]
        %v1394 = vmul.f32 %v1384, %v368
        %v1395 = vmul.f32 %v1391, %v369
        %v1396 = vsel %vm374, %v1394, 0.0
        %v1397 = vsel %vm375, %v1395, 0.0
        %v1398 = vadd.f32 %v1392, %v1396
        %v1399 = vadd.f32 %v1393, %v1397
        %1400 = vst [vmem:[%s300] sm:$0xff] %v1398
        %1401 = vst [vmem:[%s300 + $0x8] sm:$0xff] %v1399
        %v1402 = vmul.f32 %v348, 0.5
        %v1403 = vmul.f32 %v349, 0.5
        %v1404 = vmul.f32 %v352, 0.5
        %v1405 = vmul.f32 %v353, 0.5
        %v1406 = vsub.f32 %v340, %v1402
        %v1407 = vsub.f32 %v341, %v1403
        %v1408 = vsub.f32 %v360, %v1406
        %v1409 = vsub.f32 %v361, %v1407
        %v1410 = vmax.f32 %v1408, 0.0
        %v1411 = vmax.f32 %v1409, 0.0
        %v1412 = vmin.f32 %v1410, 14.99
        %v1413 = vmin.f32 %v1411, 14.99
        %v1414 = vsub.f32 %v344, %v1404
        %v1415 = vsub.f32 %v345, %v1405
        %v1416 = vsub.f32 %v364, %v1414
        %v1417 = vsub.f32 %v365, %v1415
        %v1418 = vmax.f32 %v1416, 0.0
        %v1419 = vmax.f32 %v1417, 0.0
        %v1420 = vmin.f32 %v1418, 14.99
        %v1421 = vmin.f32 %v1419, 14.99
        %v1422 = vadd.f32 %v340, %v1402
        %v1423 = vadd.f32 %v341, %v1403
        %v1424 = vsub.f32 %v1422, %v360
        %v1425 = vsub.f32 %v1423, %v361
        %v1426 = vmax.f32 %v1424, 0.0
        %v1427 = vmax.f32 %v1425, 0.0
        %v1428 = vmin.f32 %v1426, 14.99
        %v1429 = vmin.f32 %v1427, 14.99
        %v1430 = vadd.f32 %v344, %v1404
        %v1431 = vadd.f32 %v345, %v1405
        %v1432 = vsub.f32 %v1430, %v364
        %v1433 = vsub.f32 %v1431, %v365
        %v1434 = vmax.f32 %v1432, 0.0
        %v1435 = vmax.f32 %v1433, 0.0
        %v1436 = vmin.f32 %v1434, 14.99
        %v1437 = vmin.f32 %v1435, 14.99
        %v1438 = vld [vmem:[%s275] sm:$0xff]
        %v1439 = vld [vmem:[%s275 + $0x8] sm:$0xff]
        %s1440 = scalar_lea.vmem %s275, %s322 [#allocation5]
        %v1441 = vld [vmem:[%s1440] sm:$0xff]
        %v1442 = vld [vmem:[%s1440 + $0x8] sm:$0xff]
        %v1443 = vmax.f32 %v1438, %v1441
        %v1444 = vmax.f32 %v1439, %v1442
        %s1445 = scalar_lea.vmem %s275, %s326 [#allocation5]
        %v1446 = vld [vmem:[%s1445] sm:$0xff]
        %v1447 = vld [vmem:[%s1445 + $0x8] sm:$0xff]
        %v1448 = vmax.f32 %v1443, %v1446
        %v1449 = vmax.f32 %v1444, %v1447
        %s1450 = scalar_lea.vmem %s275, %s330 [#allocation5]
        %v1451 = vld [vmem:[%s1450] sm:$0xff]
        %v1452 = vld [vmem:[%s1450 + $0x8] sm:$0xff]
        %v1453 = vmax.f32 %v1448, %v1451
        %v1454 = vmax.f32 %v1449, %v1452
        %s1455 = scalar_lea.vmem %s275, %s334 [#allocation5]
        %v1456 = vld [vmem:[%s1455] sm:$0xff]
        %v1457 = vld [vmem:[%s1455 + $0x8] sm:$0xff]
        %v1458 = vmax.f32 %v1453, %v1456
        %v1459 = vmax.f32 %v1454, %v1457
        %s1460 = scalar_lea.vmem %s275, %s338 [#allocation5]
        %v1461 = vld [vmem:[%s1460] sm:$0xff]
        %v1462 = vld [vmem:[%s1460 + $0x8] sm:$0xff]
        %v1463 = vmax.f32 %v1458, %v1461
        %v1464 = vmax.f32 %v1459, %v1462
        %s1465 = scalar_lea.vmem %s275, %s342 [#allocation5]
        %v1466 = vld [vmem:[%s1465] sm:$0xff]
        %v1467 = vld [vmem:[%s1465 + $0x8] sm:$0xff]
        %v1468 = vmax.f32 %v1463, %v1466
        %v1469 = vmax.f32 %v1464, %v1467
        %s1470 = scalar_lea.vmem %s275, %s346 [#allocation5]
        %v1471 = vld [vmem:[%s1470] sm:$0xff]
        %v1472 = vld [vmem:[%s1470 + $0x8] sm:$0xff]
        %v1473 = vmax.f32 %v1468, %v1471
        %v1474 = vmax.f32 %v1469, %v1472
        %s1475 = scalar_lea.vmem %s275, %s350 [#allocation5]
        %v1476 = vld [vmem:[%s1475] sm:$0xff]
        %v1477 = vld [vmem:[%s1475 + $0x8] sm:$0xff]
        %v1478 = vmax.f32 %v1473, %v1476
        %v1479 = vmax.f32 %v1474, %v1477
        %s1480 = scalar_lea.vmem %s275, %s354 [#allocation5]
        %v1481 = vld [vmem:[%s1480] sm:$0xff]
        %v1482 = vld [vmem:[%s1480 + $0x8] sm:$0xff]
        %v1483 = vmax.f32 %v1478, %v1481
        %v1484 = vmax.f32 %v1479, %v1482
        %s1485 = scalar_lea.vmem %s275, %s358 [#allocation5]
        %v1486 = vld [vmem:[%s1485] sm:$0xff]
        %v1487 = vld [vmem:[%s1485 + $0x8] sm:$0xff]
        %v1488 = vmax.f32 %v1483, %v1486
        %v1489 = vmax.f32 %v1484, %v1487
        %s1490 = scalar_lea.vmem %s275, %s362 [#allocation5]
        %v1491 = vld [vmem:[%s1490] sm:$0xff]
        %v1492 = vld [vmem:[%s1490 + $0x8] sm:$0xff]
        %v1493 = vmax.f32 %v1488, %v1491
        %v1494 = vmax.f32 %v1489, %v1492
        %s1495 = scalar_lea.vmem %s275, %s366 [#allocation5]
        %v1496 = vld [vmem:[%s1495] sm:$0xff]
        %v1497 = vld [vmem:[%s1495 + $0x8] sm:$0xff]
        %v1498 = vmax.f32 %v1493, %v1496
        %v1499 = vmax.f32 %v1494, %v1497
        %s1500 = scalar_lea.vmem %s275, %s370 [#allocation5]
        %v1501 = vld [vmem:[%s1500] sm:$0xff]
        %v1502 = vld [vmem:[%s1500 + $0x8] sm:$0xff]
        %v1503 = vmax.f32 %v1498, %v1501
        %v1504 = vmax.f32 %v1499, %v1502
        %s1505 = sadd.s32 0, 224
        %s1506 = scalar_lea.vmem %s275, %s1505 [#allocation5]
        %v1507 = vld [vmem:[%s1506] sm:$0xff]
        %v1508 = vld [vmem:[%s1506 + $0x8] sm:$0xff]
        %v1509 = vmax.f32 %v1503, %v1507
        %v1510 = vmax.f32 %v1504, %v1508
        %s1511 = sadd.s32 0, 240
        %s1512 = scalar_lea.vmem %s275, %s1511 [#allocation5]
        %v1513 = vld [vmem:[%s1512] sm:$0xff]
        %v1514 = vld [vmem:[%s1512 + $0x8] sm:$0xff]
        %v1515 = vmax.f32 %v1509, %v1513
        %v1516 = vmax.f32 %v1510, %v1514
        %v1517 = vsub.f32 %v1438, %v1515
        %v1518 = vsub.f32 %v1439, %v1516
        %v1519 = vmul.f32 %v1517, 1.442695
        %v1520 = vpow.pop %v1519
        %v1521 = vmul.f32 %v1518, 1.442695
        %v1522 = vpow.pop %v1521
        %v1523 = vadd.f32 %v1520, 0.0
        %v1524 = vadd.f32 %v1522, 0.0
        %v1525 = vand.u32 2147483647, %v1412
        %v1526 = vand.u32 2147483647, %v1413
        %v1527 = vsub.f32 1.0, %v1525
        %v1528 = vsub.f32 1.0, %v1526
        %v1529 = vmax.f32 %v1527, 0.0
        %v1530 = vmax.f32 %v1528, 0.0
        %v1531 = vmul.f32 %v1438, %v1529
        %v1532 = vmul.f32 %v1439, %v1530
        %v1533 = vadd.f32 %v1531, 0.0
        %v1534 = vadd.f32 %v1532, 0.0
        %v1535 = vsub.f32 %v1441, %v1515
        %v1536 = vsub.f32 %v1442, %v1516
        %v1537 = vmul.f32 %v1535, 1.442695
        %v1538 = vpow.pop %v1537
        %v1539 = vmul.f32 %v1536, 1.442695
        %v1540 = vpow.pop %v1539
        %v1541 = vadd.f32 %v1523, %v1538
        %v1542 = vadd.f32 %v1524, %v1540
        %v1543 = vsub.f32 %v1412, 1.0
        %v1544 = vsub.f32 %v1413, 1.0
        %v1545 = vand.u32 2147483647, %v1543
        %v1546 = vand.u32 2147483647, %v1544
        %v1547 = vsub.f32 1.0, %v1545
        %v1548 = vsub.f32 1.0, %v1546
        %v1549 = vmax.f32 %v1547, 0.0
        %v1550 = vmax.f32 %v1548, 0.0
        %v1551 = vmul.f32 %v1441, %v1549
        %v1552 = vmul.f32 %v1442, %v1550
        %v1553 = vadd.f32 %v1533, %v1551
        %v1554 = vadd.f32 %v1534, %v1552
        %v1555 = vsub.f32 %v1446, %v1515
        %v1556 = vsub.f32 %v1447, %v1516
        %v1557 = vmul.f32 %v1555, 1.442695
        %v1558 = vpow.pop %v1557
        %v1559 = vmul.f32 %v1556, 1.442695
        %v1560 = vpow.pop %v1559
        %v1561 = vadd.f32 %v1541, %v1558
        %v1562 = vadd.f32 %v1542, %v1560
        %v1563 = vsub.f32 %v1412, 2.0
        %v1564 = vsub.f32 %v1413, 2.0
        %v1565 = vand.u32 2147483647, %v1563
        %v1566 = vand.u32 2147483647, %v1564
        %v1567 = vsub.f32 1.0, %v1565
        %v1568 = vsub.f32 1.0, %v1566
        %v1569 = vmax.f32 %v1567, 0.0
        %v1570 = vmax.f32 %v1568, 0.0
        %v1571 = vmul.f32 %v1446, %v1569
        %v1572 = vmul.f32 %v1447, %v1570
        %v1573 = vadd.f32 %v1553, %v1571
        %v1574 = vadd.f32 %v1554, %v1572
        %v1575 = vsub.f32 %v1451, %v1515
        %v1576 = vsub.f32 %v1452, %v1516
        %v1577 = vmul.f32 %v1575, 1.442695
        %v1578 = vpow.pop %v1577
        %v1579 = vmul.f32 %v1576, 1.442695
        %v1580 = vpow.pop %v1579
        %v1581 = vadd.f32 %v1561, %v1578
        %v1582 = vadd.f32 %v1562, %v1580
        %v1583 = vsub.f32 %v1412, 3.0
        %v1584 = vsub.f32 %v1413, 3.0
        %v1585 = vand.u32 2147483647, %v1583
        %v1586 = vand.u32 2147483647, %v1584
        %v1587 = vsub.f32 1.0, %v1585
        %v1588 = vsub.f32 1.0, %v1586
        %v1589 = vmax.f32 %v1587, 0.0
        %v1590 = vmax.f32 %v1588, 0.0
        %v1591 = vmul.f32 %v1451, %v1589
        %v1592 = vmul.f32 %v1452, %v1590
        %v1593 = vadd.f32 %v1573, %v1591
        %v1594 = vadd.f32 %v1574, %v1592
        %v1595 = vsub.f32 %v1456, %v1515
        %v1596 = vsub.f32 %v1457, %v1516
        %v1597 = vmul.f32 %v1595, 1.442695
        %v1598 = vpow.pop %v1597
        %v1599 = vmul.f32 %v1596, 1.442695
        %v1600 = vpow.pop %v1599
        %v1601 = vadd.f32 %v1581, %v1598
        %v1602 = vadd.f32 %v1582, %v1600
        %v1603 = vsub.f32 %v1412, 4.0
        %v1604 = vsub.f32 %v1413, 4.0
        %v1605 = vand.u32 2147483647, %v1603
        %v1606 = vand.u32 2147483647, %v1604
        %v1607 = vsub.f32 1.0, %v1605
        %v1608 = vsub.f32 1.0, %v1606
        %v1609 = vmax.f32 %v1607, 0.0
        %v1610 = vmax.f32 %v1608, 0.0
        %v1611 = vmul.f32 %v1456, %v1609
        %v1612 = vmul.f32 %v1457, %v1610
        %v1613 = vadd.f32 %v1593, %v1611
        %v1614 = vadd.f32 %v1594, %v1612
        %v1615 = vsub.f32 %v1461, %v1515
        %v1616 = vsub.f32 %v1462, %v1516
        %v1617 = vmul.f32 %v1615, 1.442695
        %v1618 = vpow.pop %v1617
        %v1619 = vmul.f32 %v1616, 1.442695
        %v1620 = vpow.pop %v1619
        %v1621 = vadd.f32 %v1601, %v1618
        %v1622 = vadd.f32 %v1602, %v1620
        %v1623 = vsub.f32 %v1412, 5.0
        %v1624 = vsub.f32 %v1413, 5.0
        %v1625 = vand.u32 2147483647, %v1623
        %v1626 = vand.u32 2147483647, %v1624
        %v1627 = vsub.f32 1.0, %v1625
        %v1628 = vsub.f32 1.0, %v1626
        %v1629 = vmax.f32 %v1627, 0.0
        %v1630 = vmax.f32 %v1628, 0.0
        %v1631 = vmul.f32 %v1461, %v1629
        %v1632 = vmul.f32 %v1462, %v1630
        %v1633 = vadd.f32 %v1613, %v1631
        %v1634 = vadd.f32 %v1614, %v1632
        %v1635 = vsub.f32 %v1466, %v1515
        %v1636 = vsub.f32 %v1467, %v1516
        %v1637 = vmul.f32 %v1635, 1.442695
        %v1638 = vpow.pop %v1637
        %v1639 = vmul.f32 %v1636, 1.442695
        %v1640 = vpow.pop %v1639
        %v1641 = vadd.f32 %v1621, %v1638
        %v1642 = vadd.f32 %v1622, %v1640
        %v1643 = vsub.f32 %v1412, 6.0
        %v1644 = vsub.f32 %v1413, 6.0
        %v1645 = vand.u32 2147483647, %v1643
        %v1646 = vand.u32 2147483647, %v1644
        %v1647 = vsub.f32 1.0, %v1645
        %v1648 = vsub.f32 1.0, %v1646
        %v1649 = vmax.f32 %v1647, 0.0
        %v1650 = vmax.f32 %v1648, 0.0
        %v1651 = vmul.f32 %v1466, %v1649
        %v1652 = vmul.f32 %v1467, %v1650
        %v1653 = vadd.f32 %v1633, %v1651
        %v1654 = vadd.f32 %v1634, %v1652
        %v1655 = vsub.f32 %v1471, %v1515
        %v1656 = vsub.f32 %v1472, %v1516
        %v1657 = vmul.f32 %v1655, 1.442695
        %v1658 = vpow.pop %v1657
        %v1659 = vmul.f32 %v1656, 1.442695
        %v1660 = vpow.pop %v1659
        %v1661 = vadd.f32 %v1641, %v1658
        %v1662 = vadd.f32 %v1642, %v1660
        %v1663 = vsub.f32 %v1412, 7.0
        %v1664 = vsub.f32 %v1413, 7.0
        %v1665 = vand.u32 2147483647, %v1663
        %v1666 = vand.u32 2147483647, %v1664
        %v1667 = vsub.f32 1.0, %v1665
        %v1668 = vsub.f32 1.0, %v1666
        %v1669 = vmax.f32 %v1667, 0.0
        %v1670 = vmax.f32 %v1668, 0.0
        %v1671 = vmul.f32 %v1471, %v1669
        %v1672 = vmul.f32 %v1472, %v1670
        %v1673 = vadd.f32 %v1653, %v1671
        %v1674 = vadd.f32 %v1654, %v1672
        %v1675 = vsub.f32 %v1476, %v1515
        %v1676 = vsub.f32 %v1477, %v1516
        %v1677 = vmul.f32 %v1675, 1.442695
        %v1678 = vpow.pop %v1677
        %v1679 = vmul.f32 %v1676, 1.442695
        %v1680 = vpow.pop %v1679
        %v1681 = vadd.f32 %v1661, %v1678
        %v1682 = vadd.f32 %v1662, %v1680
        %v1683 = vsub.f32 %v1412, 8.0
        %v1684 = vsub.f32 %v1413, 8.0
        %v1685 = vand.u32 2147483647, %v1683
        %v1686 = vand.u32 2147483647, %v1684
        %v1687 = vsub.f32 1.0, %v1685
        %v1688 = vsub.f32 1.0, %v1686
        %v1689 = vmax.f32 %v1687, 0.0
        %v1690 = vmax.f32 %v1688, 0.0
        %v1691 = vmul.f32 %v1476, %v1689
        %v1692 = vmul.f32 %v1477, %v1690
        %v1693 = vadd.f32 %v1673, %v1691
        %v1694 = vadd.f32 %v1674, %v1692
        %v1695 = vsub.f32 %v1481, %v1515
        %v1696 = vsub.f32 %v1482, %v1516
        %v1697 = vmul.f32 %v1695, 1.442695
        %v1698 = vpow.pop %v1697
        %v1699 = vmul.f32 %v1696, 1.442695
        %v1700 = vpow.pop %v1699
        %v1701 = vadd.f32 %v1681, %v1698
        %v1702 = vadd.f32 %v1682, %v1700
        %v1703 = vsub.f32 %v1412, 9.0
        %v1704 = vsub.f32 %v1413, 9.0
        %v1705 = vand.u32 2147483647, %v1703
        %v1706 = vand.u32 2147483647, %v1704
        %v1707 = vsub.f32 1.0, %v1705
        %v1708 = vsub.f32 1.0, %v1706
        %v1709 = vmax.f32 %v1707, 0.0
        %v1710 = vmax.f32 %v1708, 0.0
        %v1711 = vmul.f32 %v1481, %v1709
        %v1712 = vmul.f32 %v1482, %v1710
        %v1713 = vadd.f32 %v1693, %v1711
        %v1714 = vadd.f32 %v1694, %v1712
        %v1715 = vsub.f32 %v1486, %v1515
        %v1716 = vsub.f32 %v1487, %v1516
        %v1717 = vmul.f32 %v1715, 1.442695
        %v1718 = vpow.pop %v1717
        %v1719 = vmul.f32 %v1716, 1.442695
        %v1720 = vpow.pop %v1719
        %v1721 = vadd.f32 %v1701, %v1718
        %v1722 = vadd.f32 %v1702, %v1720
        %v1723 = vsub.f32 %v1412, 10.0
        %v1724 = vsub.f32 %v1413, 10.0
        %v1725 = vand.u32 2147483647, %v1723
        %v1726 = vand.u32 2147483647, %v1724
        %v1727 = vsub.f32 1.0, %v1725
        %v1728 = vsub.f32 1.0, %v1726
        %v1729 = vmax.f32 %v1727, 0.0
        %v1730 = vmax.f32 %v1728, 0.0
        %v1731 = vmul.f32 %v1486, %v1729
        %v1732 = vmul.f32 %v1487, %v1730
        %v1733 = vadd.f32 %v1713, %v1731
        %v1734 = vadd.f32 %v1714, %v1732
        %v1735 = vsub.f32 %v1491, %v1515
        %v1736 = vsub.f32 %v1492, %v1516
        %v1737 = vmul.f32 %v1735, 1.442695
        %v1738 = vpow.pop %v1737
        %v1739 = vmul.f32 %v1736, 1.442695
        %v1740 = vpow.pop %v1739
        %v1741 = vadd.f32 %v1721, %v1738
        %v1742 = vadd.f32 %v1722, %v1740
        %v1743 = vsub.f32 %v1412, 11.0
        %v1744 = vsub.f32 %v1413, 11.0
        %v1745 = vand.u32 2147483647, %v1743
        %v1746 = vand.u32 2147483647, %v1744
        %v1747 = vsub.f32 1.0, %v1745
        %v1748 = vsub.f32 1.0, %v1746
        %v1749 = vmax.f32 %v1747, 0.0
        %v1750 = vmax.f32 %v1748, 0.0
        %v1751 = vmul.f32 %v1491, %v1749
        %v1752 = vmul.f32 %v1492, %v1750
        %v1753 = vadd.f32 %v1733, %v1751
        %v1754 = vadd.f32 %v1734, %v1752
        %v1755 = vsub.f32 %v1496, %v1515
        %v1756 = vsub.f32 %v1497, %v1516
        %v1757 = vmul.f32 %v1755, 1.442695
        %v1758 = vpow.pop %v1757
        %v1759 = vmul.f32 %v1756, 1.442695
        %v1760 = vpow.pop %v1759
        %v1761 = vadd.f32 %v1741, %v1758
        %v1762 = vadd.f32 %v1742, %v1760
        %v1763 = vsub.f32 %v1412, 12.0
        %v1764 = vsub.f32 %v1413, 12.0
        %v1765 = vand.u32 2147483647, %v1763
        %v1766 = vand.u32 2147483647, %v1764
        %v1767 = vsub.f32 1.0, %v1765
        %v1768 = vsub.f32 1.0, %v1766
        %v1769 = vmax.f32 %v1767, 0.0
        %v1770 = vmax.f32 %v1768, 0.0
        %v1771 = vmul.f32 %v1496, %v1769
        %v1772 = vmul.f32 %v1497, %v1770
        %v1773 = vadd.f32 %v1753, %v1771
        %v1774 = vadd.f32 %v1754, %v1772
        %v1775 = vsub.f32 %v1501, %v1515
        %v1776 = vsub.f32 %v1502, %v1516
        %v1777 = vmul.f32 %v1775, 1.442695
        %v1778 = vpow.pop %v1777
        %v1779 = vmul.f32 %v1776, 1.442695
        %v1780 = vpow.pop %v1779
        %v1781 = vadd.f32 %v1761, %v1778
        %v1782 = vadd.f32 %v1762, %v1780
        %v1783 = vsub.f32 %v1412, 13.0
        %v1784 = vsub.f32 %v1413, 13.0
        %v1785 = vand.u32 2147483647, %v1783
        %v1786 = vand.u32 2147483647, %v1784
        %v1787 = vsub.f32 1.0, %v1785
        %v1788 = vsub.f32 1.0, %v1786
        %v1789 = vmax.f32 %v1787, 0.0
        %v1790 = vmax.f32 %v1788, 0.0
        %v1791 = vmul.f32 %v1501, %v1789
        %v1792 = vmul.f32 %v1502, %v1790
        %v1793 = vadd.f32 %v1773, %v1791
        %v1794 = vadd.f32 %v1774, %v1792
        %v1795 = vsub.f32 %v1507, %v1515
        %v1796 = vsub.f32 %v1508, %v1516
        %v1797 = vmul.f32 %v1795, 1.442695
        %v1798 = vpow.pop %v1797
        %v1799 = vmul.f32 %v1796, 1.442695
        %v1800 = vpow.pop %v1799
        %v1801 = vadd.f32 %v1781, %v1798
        %v1802 = vadd.f32 %v1782, %v1800
        %v1803 = vsub.f32 %v1412, 14.0
        %v1804 = vsub.f32 %v1413, 14.0
        %v1805 = vand.u32 2147483647, %v1803
        %v1806 = vand.u32 2147483647, %v1804
        %v1807 = vsub.f32 1.0, %v1805
        %v1808 = vsub.f32 1.0, %v1806
        %v1809 = vmax.f32 %v1807, 0.0
        %v1810 = vmax.f32 %v1808, 0.0
        %v1811 = vmul.f32 %v1507, %v1809
        %v1812 = vmul.f32 %v1508, %v1810
        %v1813 = vadd.f32 %v1793, %v1811
        %v1814 = vadd.f32 %v1794, %v1812
        %v1815 = vsub.f32 %v1513, %v1515
        %v1816 = vsub.f32 %v1514, %v1516
        %v1817 = vmul.f32 %v1815, 1.442695
        %v1818 = vpow.pop %v1817
        %v1819 = vmul.f32 %v1816, 1.442695
        %v1820 = vpow.pop %v1819
        %v1821 = vadd.f32 %v1801, %v1818
        %v1822 = vadd.f32 %v1802, %v1820
        %v1823 = vsub.f32 %v1412, 15.0
        %v1824 = vsub.f32 %v1413, 15.0
        %v1825 = vand.u32 2147483647, %v1823
        %v1826 = vand.u32 2147483647, %v1824
        %v1827 = vsub.f32 1.0, %v1825
        %v1828 = vsub.f32 1.0, %v1826
        %v1829 = vmax.f32 %v1827, 0.0
        %v1830 = vmax.f32 %v1828, 0.0
        %v1831 = vmul.f32 %v1513, %v1829
        %v1832 = vmul.f32 %v1514, %v1830
        %v1833 = vadd.f32 %v1813, %v1831
        %v1834 = vadd.f32 %v1814, %v1832
        %v1835 = vlog2.pop %v1821
        %v1836 = vmul.f32 %v1835, 0.6931472
        %v1837 = vlog2.pop %v1822
        %v1838 = vmul.f32 %v1837, 0.6931472
        %v1839 = vadd.f32 %v1515, %v1836
        %v1840 = vadd.f32 %v1516, %v1838
        %v1841 = vsub.f32 %v1839, %v1833
        %v1842 = vsub.f32 %v1840, %v1834
        %v1843 = vadd.f32 %v1841, 0.0
        %v1844 = vadd.f32 %v1842, 0.0
        %s1845 = sadd.s32 0, 256
        %s1846 = scalar_lea.vmem %s275, %s1845 [#allocation5]
        %v1847 = vld [vmem:[%s1846] sm:$0xff]
        %v1848 = vld [vmem:[%s1846 + $0x8] sm:$0xff]
        %s1849 = sadd.s32 %s322, 256
        %s1850 = scalar_lea.vmem %s275, %s1849 [#allocation5]
        %v1851 = vld [vmem:[%s1850] sm:$0xff]
        %v1852 = vld [vmem:[%s1850 + $0x8] sm:$0xff]
        %v1853 = vmax.f32 %v1847, %v1851
        %v1854 = vmax.f32 %v1848, %v1852
        %s1855 = sadd.s32 %s326, 256
        %s1856 = scalar_lea.vmem %s275, %s1855 [#allocation5]
        %v1857 = vld [vmem:[%s1856] sm:$0xff]
        %v1858 = vld [vmem:[%s1856 + $0x8] sm:$0xff]
        %v1859 = vmax.f32 %v1853, %v1857
        %v1860 = vmax.f32 %v1854, %v1858
        %s1861 = sadd.s32 %s330, 256
        %s1862 = scalar_lea.vmem %s275, %s1861 [#allocation5]
        %v1863 = vld [vmem:[%s1862] sm:$0xff]
        %v1864 = vld [vmem:[%s1862 + $0x8] sm:$0xff]
        %v1865 = vmax.f32 %v1859, %v1863
        %v1866 = vmax.f32 %v1860, %v1864
        %s1867 = sadd.s32 %s334, 256
        %s1868 = scalar_lea.vmem %s275, %s1867 [#allocation5]
        %v1869 = vld [vmem:[%s1868] sm:$0xff]
        %v1870 = vld [vmem:[%s1868 + $0x8] sm:$0xff]
        %v1871 = vmax.f32 %v1865, %v1869
        %v1872 = vmax.f32 %v1866, %v1870
        %s1873 = sadd.s32 %s338, 256
        %s1874 = scalar_lea.vmem %s275, %s1873 [#allocation5]
        %v1875 = vld [vmem:[%s1874] sm:$0xff]
        %v1876 = vld [vmem:[%s1874 + $0x8] sm:$0xff]
        %v1877 = vmax.f32 %v1871, %v1875
        %v1878 = vmax.f32 %v1872, %v1876
        %s1879 = sadd.s32 %s342, 256
        %s1880 = scalar_lea.vmem %s275, %s1879 [#allocation5]
        %v1881 = vld [vmem:[%s1880] sm:$0xff]
        %v1882 = vld [vmem:[%s1880 + $0x8] sm:$0xff]
        %v1883 = vmax.f32 %v1877, %v1881
        %v1884 = vmax.f32 %v1878, %v1882
        %s1885 = sadd.s32 %s346, 256
        %s1886 = scalar_lea.vmem %s275, %s1885 [#allocation5]
        %v1887 = vld [vmem:[%s1886] sm:$0xff]
        %v1888 = vld [vmem:[%s1886 + $0x8] sm:$0xff]
        %v1889 = vmax.f32 %v1883, %v1887
        %v1890 = vmax.f32 %v1884, %v1888
        %s1891 = sadd.s32 %s350, 256
        %s1892 = scalar_lea.vmem %s275, %s1891 [#allocation5]
        %v1893 = vld [vmem:[%s1892] sm:$0xff]
        %v1894 = vld [vmem:[%s1892 + $0x8] sm:$0xff]
        %v1895 = vmax.f32 %v1889, %v1893
        %v1896 = vmax.f32 %v1890, %v1894
        %s1897 = sadd.s32 %s354, 256
        %s1898 = scalar_lea.vmem %s275, %s1897 [#allocation5]
        %v1899 = vld [vmem:[%s1898] sm:$0xff]
        %v1900 = vld [vmem:[%s1898 + $0x8] sm:$0xff]
        %v1901 = vmax.f32 %v1895, %v1899
        %v1902 = vmax.f32 %v1896, %v1900
        %s1903 = sadd.s32 %s358, 256
        %s1904 = scalar_lea.vmem %s275, %s1903 [#allocation5]
        %v1905 = vld [vmem:[%s1904] sm:$0xff]
        %v1906 = vld [vmem:[%s1904 + $0x8] sm:$0xff]
        %v1907 = vmax.f32 %v1901, %v1905
        %v1908 = vmax.f32 %v1902, %v1906
        %s1909 = sadd.s32 %s362, 256
        %s1910 = scalar_lea.vmem %s275, %s1909 [#allocation5]
        %v1911 = vld [vmem:[%s1910] sm:$0xff]
        %v1912 = vld [vmem:[%s1910 + $0x8] sm:$0xff]
        %v1913 = vmax.f32 %v1907, %v1911
        %v1914 = vmax.f32 %v1908, %v1912
        %s1915 = sadd.s32 %s366, 256
        %s1916 = scalar_lea.vmem %s275, %s1915 [#allocation5]
        %v1917 = vld [vmem:[%s1916] sm:$0xff]
        %v1918 = vld [vmem:[%s1916 + $0x8] sm:$0xff]
        %v1919 = vmax.f32 %v1913, %v1917
        %v1920 = vmax.f32 %v1914, %v1918
        %s1921 = sadd.s32 %s370, 256
        %s1922 = scalar_lea.vmem %s275, %s1921 [#allocation5]
        %v1923 = vld [vmem:[%s1922] sm:$0xff]
        %v1924 = vld [vmem:[%s1922 + $0x8] sm:$0xff]
        %v1925 = vmax.f32 %v1919, %v1923
        %v1926 = vmax.f32 %v1920, %v1924
        %s1927 = sadd.s32 %s1505, 256
        %s1928 = scalar_lea.vmem %s275, %s1927 [#allocation5]
        %v1929 = vld [vmem:[%s1928] sm:$0xff]
        %v1930 = vld [vmem:[%s1928 + $0x8] sm:$0xff]
        %v1931 = vmax.f32 %v1925, %v1929
        %v1932 = vmax.f32 %v1926, %v1930
        %s1933 = sadd.s32 %s1511, 256
        %s1934 = scalar_lea.vmem %s275, %s1933 [#allocation5]
        %v1935 = vld [vmem:[%s1934] sm:$0xff]
        %v1936 = vld [vmem:[%s1934 + $0x8] sm:$0xff]
        %v1937 = vmax.f32 %v1931, %v1935
        %v1938 = vmax.f32 %v1932, %v1936
        %v1939 = vsub.f32 %v1847, %v1937
        %v1940 = vsub.f32 %v1848, %v1938
        %v1941 = vmul.f32 %v1939, 1.442695
        %v1942 = vpow.pop %v1941
        %v1943 = vmul.f32 %v1940, 1.442695
        %v1944 = vpow.pop %v1943
        %v1945 = vadd.f32 %v1942, 0.0
        %v1946 = vadd.f32 %v1944, 0.0
        %v1947 = vand.u32 2147483647, %v1420
        %v1948 = vand.u32 2147483647, %v1421
        %v1949 = vsub.f32 1.0, %v1947
        %v1950 = vsub.f32 1.0, %v1948
        %v1951 = vmax.f32 %v1949, 0.0
        %v1952 = vmax.f32 %v1950, 0.0
        %v1953 = vmul.f32 %v1847, %v1951
        %v1954 = vmul.f32 %v1848, %v1952
        %v1955 = vadd.f32 %v1953, 0.0
        %v1956 = vadd.f32 %v1954, 0.0
        %v1957 = vsub.f32 %v1851, %v1937
        %v1958 = vsub.f32 %v1852, %v1938
        %v1959 = vmul.f32 %v1957, 1.442695
        %v1960 = vpow.pop %v1959
        %v1961 = vmul.f32 %v1958, 1.442695
        %v1962 = vpow.pop %v1961
        %v1963 = vadd.f32 %v1945, %v1960
        %v1964 = vadd.f32 %v1946, %v1962
        %v1965 = vsub.f32 %v1420, 1.0
        %v1966 = vsub.f32 %v1421, 1.0
        %v1967 = vand.u32 2147483647, %v1965
        %v1968 = vand.u32 2147483647, %v1966
        %v1969 = vsub.f32 1.0, %v1967
        %v1970 = vsub.f32 1.0, %v1968
        %v1971 = vmax.f32 %v1969, 0.0
        %v1972 = vmax.f32 %v1970, 0.0
        %v1973 = vmul.f32 %v1851, %v1971
        %v1974 = vmul.f32 %v1852, %v1972
        %v1975 = vadd.f32 %v1955, %v1973
        %v1976 = vadd.f32 %v1956, %v1974
        %v1977 = vsub.f32 %v1857, %v1937
        %v1978 = vsub.f32 %v1858, %v1938
        %v1979 = vmul.f32 %v1977, 1.442695
        %v1980 = vpow.pop %v1979
        %v1981 = vmul.f32 %v1978, 1.442695
        %v1982 = vpow.pop %v1981
        %v1983 = vadd.f32 %v1963, %v1980
        %v1984 = vadd.f32 %v1964, %v1982
        %v1985 = vsub.f32 %v1420, 2.0
        %v1986 = vsub.f32 %v1421, 2.0
        %v1987 = vand.u32 2147483647, %v1985
        %v1988 = vand.u32 2147483647, %v1986
        %v1989 = vsub.f32 1.0, %v1987
        %v1990 = vsub.f32 1.0, %v1988
        %v1991 = vmax.f32 %v1989, 0.0
        %v1992 = vmax.f32 %v1990, 0.0
        %v1993 = vmul.f32 %v1857, %v1991
        %v1994 = vmul.f32 %v1858, %v1992
        %v1995 = vadd.f32 %v1975, %v1993
        %v1996 = vadd.f32 %v1976, %v1994
        %v1997 = vsub.f32 %v1863, %v1937
        %v1998 = vsub.f32 %v1864, %v1938
        %v1999 = vmul.f32 %v1997, 1.442695
        %v2000 = vpow.pop %v1999
        %v2001 = vmul.f32 %v1998, 1.442695
        %v2002 = vpow.pop %v2001
        %v2003 = vadd.f32 %v1983, %v2000
        %v2004 = vadd.f32 %v1984, %v2002
        %v2005 = vsub.f32 %v1420, 3.0
        %v2006 = vsub.f32 %v1421, 3.0
        %v2007 = vand.u32 2147483647, %v2005
        %v2008 = vand.u32 2147483647, %v2006
        %v2009 = vsub.f32 1.0, %v2007
        %v2010 = vsub.f32 1.0, %v2008
        %v2011 = vmax.f32 %v2009, 0.0
        %v2012 = vmax.f32 %v2010, 0.0
        %v2013 = vmul.f32 %v1863, %v2011
        %v2014 = vmul.f32 %v1864, %v2012
        %v2015 = vadd.f32 %v1995, %v2013
        %v2016 = vadd.f32 %v1996, %v2014
        %v2017 = vsub.f32 %v1869, %v1937
        %v2018 = vsub.f32 %v1870, %v1938
        %v2019 = vmul.f32 %v2017, 1.442695
        %v2020 = vpow.pop %v2019
        %v2021 = vmul.f32 %v2018, 1.442695
        %v2022 = vpow.pop %v2021
        %v2023 = vadd.f32 %v2003, %v2020
        %v2024 = vadd.f32 %v2004, %v2022
        %v2025 = vsub.f32 %v1420, 4.0
        %v2026 = vsub.f32 %v1421, 4.0
        %v2027 = vand.u32 2147483647, %v2025
        %v2028 = vand.u32 2147483647, %v2026
        %v2029 = vsub.f32 1.0, %v2027
        %v2030 = vsub.f32 1.0, %v2028
        %v2031 = vmax.f32 %v2029, 0.0
        %v2032 = vmax.f32 %v2030, 0.0
        %v2033 = vmul.f32 %v1869, %v2031
        %v2034 = vmul.f32 %v1870, %v2032
        %v2035 = vadd.f32 %v2015, %v2033
        %v2036 = vadd.f32 %v2016, %v2034
        %v2037 = vsub.f32 %v1875, %v1937
        %v2038 = vsub.f32 %v1876, %v1938
        %v2039 = vmul.f32 %v2037, 1.442695
        %v2040 = vpow.pop %v2039
        %v2041 = vmul.f32 %v2038, 1.442695
        %v2042 = vpow.pop %v2041
        %v2043 = vadd.f32 %v2023, %v2040
        %v2044 = vadd.f32 %v2024, %v2042
        %v2045 = vsub.f32 %v1420, 5.0
        %v2046 = vsub.f32 %v1421, 5.0
        %v2047 = vand.u32 2147483647, %v2045
        %v2048 = vand.u32 2147483647, %v2046
        %v2049 = vsub.f32 1.0, %v2047
        %v2050 = vsub.f32 1.0, %v2048
        %v2051 = vmax.f32 %v2049, 0.0
        %v2052 = vmax.f32 %v2050, 0.0
        %v2053 = vmul.f32 %v1875, %v2051
        %v2054 = vmul.f32 %v1876, %v2052
        %v2055 = vadd.f32 %v2035, %v2053
        %v2056 = vadd.f32 %v2036, %v2054
        %v2057 = vsub.f32 %v1881, %v1937
        %v2058 = vsub.f32 %v1882, %v1938
        %v2059 = vmul.f32 %v2057, 1.442695
        %v2060 = vpow.pop %v2059
        %v2061 = vmul.f32 %v2058, 1.442695
        %v2062 = vpow.pop %v2061
        %v2063 = vadd.f32 %v2043, %v2060
        %v2064 = vadd.f32 %v2044, %v2062
        %v2065 = vsub.f32 %v1420, 6.0
        %v2066 = vsub.f32 %v1421, 6.0
        %v2067 = vand.u32 2147483647, %v2065
        %v2068 = vand.u32 2147483647, %v2066
        %v2069 = vsub.f32 1.0, %v2067
        %v2070 = vsub.f32 1.0, %v2068
        %v2071 = vmax.f32 %v2069, 0.0
        %v2072 = vmax.f32 %v2070, 0.0
        %v2073 = vmul.f32 %v1881, %v2071
        %v2074 = vmul.f32 %v1882, %v2072
        %v2075 = vadd.f32 %v2055, %v2073
        %v2076 = vadd.f32 %v2056, %v2074
        %v2077 = vsub.f32 %v1887, %v1937
        %v2078 = vsub.f32 %v1888, %v1938
        %v2079 = vmul.f32 %v2077, 1.442695
        %v2080 = vpow.pop %v2079
        %v2081 = vmul.f32 %v2078, 1.442695
        %v2082 = vpow.pop %v2081
        %v2083 = vadd.f32 %v2063, %v2080
        %v2084 = vadd.f32 %v2064, %v2082
        %v2085 = vsub.f32 %v1420, 7.0
        %v2086 = vsub.f32 %v1421, 7.0
        %v2087 = vand.u32 2147483647, %v2085
        %v2088 = vand.u32 2147483647, %v2086
        %v2089 = vsub.f32 1.0, %v2087
        %v2090 = vsub.f32 1.0, %v2088
        %v2091 = vmax.f32 %v2089, 0.0
        %v2092 = vmax.f32 %v2090, 0.0
        %v2093 = vmul.f32 %v1887, %v2091
        %v2094 = vmul.f32 %v1888, %v2092
        %v2095 = vadd.f32 %v2075, %v2093
        %v2096 = vadd.f32 %v2076, %v2094
        %v2097 = vsub.f32 %v1893, %v1937
        %v2098 = vsub.f32 %v1894, %v1938
        %v2099 = vmul.f32 %v2097, 1.442695
        %v2100 = vpow.pop %v2099
        %v2101 = vmul.f32 %v2098, 1.442695
        %v2102 = vpow.pop %v2101
        %v2103 = vadd.f32 %v2083, %v2100
        %v2104 = vadd.f32 %v2084, %v2102
        %v2105 = vsub.f32 %v1420, 8.0
        %v2106 = vsub.f32 %v1421, 8.0
        %v2107 = vand.u32 2147483647, %v2105
        %v2108 = vand.u32 2147483647, %v2106
        %v2109 = vsub.f32 1.0, %v2107
        %v2110 = vsub.f32 1.0, %v2108
        %v2111 = vmax.f32 %v2109, 0.0
        %v2112 = vmax.f32 %v2110, 0.0
        %v2113 = vmul.f32 %v1893, %v2111
        %v2114 = vmul.f32 %v1894, %v2112
        %v2115 = vadd.f32 %v2095, %v2113
        %v2116 = vadd.f32 %v2096, %v2114
        %v2117 = vsub.f32 %v1899, %v1937
        %v2118 = vsub.f32 %v1900, %v1938
        %v2119 = vmul.f32 %v2117, 1.442695
        %v2120 = vpow.pop %v2119
        %v2121 = vmul.f32 %v2118, 1.442695
        %v2122 = vpow.pop %v2121
        %v2123 = vadd.f32 %v2103, %v2120
        %v2124 = vadd.f32 %v2104, %v2122
        %v2125 = vsub.f32 %v1420, 9.0
        %v2126 = vsub.f32 %v1421, 9.0
        %v2127 = vand.u32 2147483647, %v2125
        %v2128 = vand.u32 2147483647, %v2126
        %v2129 = vsub.f32 1.0, %v2127
        %v2130 = vsub.f32 1.0, %v2128
        %v2131 = vmax.f32 %v2129, 0.0
        %v2132 = vmax.f32 %v2130, 0.0
        %v2133 = vmul.f32 %v1899, %v2131
        %v2134 = vmul.f32 %v1900, %v2132
        %v2135 = vadd.f32 %v2115, %v2133
        %v2136 = vadd.f32 %v2116, %v2134
        %v2137 = vsub.f32 %v1905, %v1937
        %v2138 = vsub.f32 %v1906, %v1938
        %v2139 = vmul.f32 %v2137, 1.442695
        %v2140 = vpow.pop %v2139
        %v2141 = vmul.f32 %v2138, 1.442695
        %v2142 = vpow.pop %v2141
        %v2143 = vadd.f32 %v2123, %v2140
        %v2144 = vadd.f32 %v2124, %v2142
        %v2145 = vsub.f32 %v1420, 10.0
        %v2146 = vsub.f32 %v1421, 10.0
        %v2147 = vand.u32 2147483647, %v2145
        %v2148 = vand.u32 2147483647, %v2146
        %v2149 = vsub.f32 1.0, %v2147
        %v2150 = vsub.f32 1.0, %v2148
        %v2151 = vmax.f32 %v2149, 0.0
        %v2152 = vmax.f32 %v2150, 0.0
        %v2153 = vmul.f32 %v1905, %v2151
        %v2154 = vmul.f32 %v1906, %v2152
        %v2155 = vadd.f32 %v2135, %v2153
        %v2156 = vadd.f32 %v2136, %v2154
        %v2157 = vsub.f32 %v1911, %v1937
        %v2158 = vsub.f32 %v1912, %v1938
        %v2159 = vmul.f32 %v2157, 1.442695
        %v2160 = vpow.pop %v2159
        %v2161 = vmul.f32 %v2158, 1.442695
        %v2162 = vpow.pop %v2161
        %v2163 = vadd.f32 %v2143, %v2160
        %v2164 = vadd.f32 %v2144, %v2162
        %v2165 = vsub.f32 %v1420, 11.0
        %v2166 = vsub.f32 %v1421, 11.0
        %v2167 = vand.u32 2147483647, %v2165
        %v2168 = vand.u32 2147483647, %v2166
        %v2169 = vsub.f32 1.0, %v2167
        %v2170 = vsub.f32 1.0, %v2168
        %v2171 = vmax.f32 %v2169, 0.0
        %v2172 = vmax.f32 %v2170, 0.0
        %v2173 = vmul.f32 %v1911, %v2171
        %v2174 = vmul.f32 %v1912, %v2172
        %v2175 = vadd.f32 %v2155, %v2173
        %v2176 = vadd.f32 %v2156, %v2174
        %v2177 = vsub.f32 %v1917, %v1937
        %v2178 = vsub.f32 %v1918, %v1938
        %v2179 = vmul.f32 %v2177, 1.442695
        %v2180 = vpow.pop %v2179
        %v2181 = vmul.f32 %v2178, 1.442695
        %v2182 = vpow.pop %v2181
        %v2183 = vadd.f32 %v2163, %v2180
        %v2184 = vadd.f32 %v2164, %v2182
        %v2185 = vsub.f32 %v1420, 12.0
        %v2186 = vsub.f32 %v1421, 12.0
        %v2187 = vand.u32 2147483647, %v2185
        %v2188 = vand.u32 2147483647, %v2186
        %v2189 = vsub.f32 1.0, %v2187
        %v2190 = vsub.f32 1.0, %v2188
        %v2191 = vmax.f32 %v2189, 0.0
        %v2192 = vmax.f32 %v2190, 0.0
        %v2193 = vmul.f32 %v1917, %v2191
        %v2194 = vmul.f32 %v1918, %v2192
        %v2195 = vadd.f32 %v2175, %v2193
        %v2196 = vadd.f32 %v2176, %v2194
        %v2197 = vsub.f32 %v1923, %v1937
        %v2198 = vsub.f32 %v1924, %v1938
        %v2199 = vmul.f32 %v2197, 1.442695
        %v2200 = vpow.pop %v2199
        %v2201 = vmul.f32 %v2198, 1.442695
        %v2202 = vpow.pop %v2201
        %v2203 = vadd.f32 %v2183, %v2200
        %v2204 = vadd.f32 %v2184, %v2202
        %v2205 = vsub.f32 %v1420, 13.0
        %v2206 = vsub.f32 %v1421, 13.0
        %v2207 = vand.u32 2147483647, %v2205
        %v2208 = vand.u32 2147483647, %v2206
        %v2209 = vsub.f32 1.0, %v2207
        %v2210 = vsub.f32 1.0, %v2208
        %v2211 = vmax.f32 %v2209, 0.0
        %v2212 = vmax.f32 %v2210, 0.0
        %v2213 = vmul.f32 %v1923, %v2211
        %v2214 = vmul.f32 %v1924, %v2212
        %v2215 = vadd.f32 %v2195, %v2213
        %v2216 = vadd.f32 %v2196, %v2214
        %v2217 = vsub.f32 %v1929, %v1937
        %v2218 = vsub.f32 %v1930, %v1938
        %v2219 = vmul.f32 %v2217, 1.442695
        %v2220 = vpow.pop %v2219
        %v2221 = vmul.f32 %v2218, 1.442695
        %v2222 = vpow.pop %v2221
        %v2223 = vadd.f32 %v2203, %v2220
        %v2224 = vadd.f32 %v2204, %v2222
        %v2225 = vsub.f32 %v1420, 14.0
        %v2226 = vsub.f32 %v1421, 14.0
        %v2227 = vand.u32 2147483647, %v2225
        %v2228 = vand.u32 2147483647, %v2226
        %v2229 = vsub.f32 1.0, %v2227
        %v2230 = vsub.f32 1.0, %v2228
        %v2231 = vmax.f32 %v2229, 0.0
        %v2232 = vmax.f32 %v2230, 0.0
        %v2233 = vmul.f32 %v1929, %v2231
        %v2234 = vmul.f32 %v1930, %v2232
        %v2235 = vadd.f32 %v2215, %v2233
        %v2236 = vadd.f32 %v2216, %v2234
        %v2237 = vsub.f32 %v1935, %v1937
        %v2238 = vsub.f32 %v1936, %v1938
        %v2239 = vmul.f32 %v2237, 1.442695
        %v2240 = vpow.pop %v2239
        %v2241 = vmul.f32 %v2238, 1.442695
        %v2242 = vpow.pop %v2241
        %v2243 = vadd.f32 %v2223, %v2240
        %v2244 = vadd.f32 %v2224, %v2242
        %v2245 = vsub.f32 %v1420, 15.0
        %v2246 = vsub.f32 %v1421, 15.0
        %v2247 = vand.u32 2147483647, %v2245
        %v2248 = vand.u32 2147483647, %v2246
        %v2249 = vsub.f32 1.0, %v2247
        %v2250 = vsub.f32 1.0, %v2248
        %v2251 = vmax.f32 %v2249, 0.0
        %v2252 = vmax.f32 %v2250, 0.0
        %v2253 = vmul.f32 %v1935, %v2251
        %v2254 = vmul.f32 %v1936, %v2252
        %v2255 = vadd.f32 %v2235, %v2253
        %v2256 = vadd.f32 %v2236, %v2254
        %v2257 = vlog2.pop %v2243
        %v2258 = vmul.f32 %v2257, 0.6931472
        %v2259 = vlog2.pop %v2244
        %v2260 = vmul.f32 %v2259, 0.6931472
        %v2261 = vadd.f32 %v1937, %v2258
        %v2262 = vadd.f32 %v1938, %v2260
        %v2263 = vsub.f32 %v2261, %v2255
        %v2264 = vsub.f32 %v2262, %v2256
        %v2265 = vadd.f32 %v1843, %v2263
        %v2266 = vadd.f32 %v1844, %v2264
        %s2267 = sadd.s32 0, 512
        %s2268 = scalar_lea.vmem %s275, %s2267 [#allocation5]
        %v2269 = vld [vmem:[%s2268] sm:$0xff]
        %v2270 = vld [vmem:[%s2268 + $0x8] sm:$0xff]
        %s2271 = sadd.s32 %s322, 512
        %s2272 = scalar_lea.vmem %s275, %s2271 [#allocation5]
        %v2273 = vld [vmem:[%s2272] sm:$0xff]
        %v2274 = vld [vmem:[%s2272 + $0x8] sm:$0xff]
        %v2275 = vmax.f32 %v2269, %v2273
        %v2276 = vmax.f32 %v2270, %v2274
        %s2277 = sadd.s32 %s326, 512
        %s2278 = scalar_lea.vmem %s275, %s2277 [#allocation5]
        %v2279 = vld [vmem:[%s2278] sm:$0xff]
        %v2280 = vld [vmem:[%s2278 + $0x8] sm:$0xff]
        %v2281 = vmax.f32 %v2275, %v2279
        %v2282 = vmax.f32 %v2276, %v2280
        %s2283 = sadd.s32 %s330, 512
        %s2284 = scalar_lea.vmem %s275, %s2283 [#allocation5]
        %v2285 = vld [vmem:[%s2284] sm:$0xff]
        %v2286 = vld [vmem:[%s2284 + $0x8] sm:$0xff]
        %v2287 = vmax.f32 %v2281, %v2285
        %v2288 = vmax.f32 %v2282, %v2286
        %s2289 = sadd.s32 %s334, 512
        %s2290 = scalar_lea.vmem %s275, %s2289 [#allocation5]
        %v2291 = vld [vmem:[%s2290] sm:$0xff]
        %v2292 = vld [vmem:[%s2290 + $0x8] sm:$0xff]
        %v2293 = vmax.f32 %v2287, %v2291
        %v2294 = vmax.f32 %v2288, %v2292
        %s2295 = sadd.s32 %s338, 512
        %s2296 = scalar_lea.vmem %s275, %s2295 [#allocation5]
        %v2297 = vld [vmem:[%s2296] sm:$0xff]
        %v2298 = vld [vmem:[%s2296 + $0x8] sm:$0xff]
        %v2299 = vmax.f32 %v2293, %v2297
        %v2300 = vmax.f32 %v2294, %v2298
        %s2301 = sadd.s32 %s342, 512
        %s2302 = scalar_lea.vmem %s275, %s2301 [#allocation5]
        %v2303 = vld [vmem:[%s2302] sm:$0xff]
        %v2304 = vld [vmem:[%s2302 + $0x8] sm:$0xff]
        %v2305 = vmax.f32 %v2299, %v2303
        %v2306 = vmax.f32 %v2300, %v2304
        %s2307 = sadd.s32 %s346, 512
        %s2308 = scalar_lea.vmem %s275, %s2307 [#allocation5]
        %v2309 = vld [vmem:[%s2308] sm:$0xff]
        %v2310 = vld [vmem:[%s2308 + $0x8] sm:$0xff]
        %v2311 = vmax.f32 %v2305, %v2309
        %v2312 = vmax.f32 %v2306, %v2310
        %s2313 = sadd.s32 %s350, 512
        %s2314 = scalar_lea.vmem %s275, %s2313 [#allocation5]
        %v2315 = vld [vmem:[%s2314] sm:$0xff]
        %v2316 = vld [vmem:[%s2314 + $0x8] sm:$0xff]
        %v2317 = vmax.f32 %v2311, %v2315
        %v2318 = vmax.f32 %v2312, %v2316
        %s2319 = sadd.s32 %s354, 512
        %s2320 = scalar_lea.vmem %s275, %s2319 [#allocation5]
        %v2321 = vld [vmem:[%s2320] sm:$0xff]
        %v2322 = vld [vmem:[%s2320 + $0x8] sm:$0xff]
        %v2323 = vmax.f32 %v2317, %v2321
        %v2324 = vmax.f32 %v2318, %v2322
        %s2325 = sadd.s32 %s358, 512
        %s2326 = scalar_lea.vmem %s275, %s2325 [#allocation5]
        %v2327 = vld [vmem:[%s2326] sm:$0xff]
        %v2328 = vld [vmem:[%s2326 + $0x8] sm:$0xff]
        %v2329 = vmax.f32 %v2323, %v2327
        %v2330 = vmax.f32 %v2324, %v2328
        %s2331 = sadd.s32 %s362, 512
        %s2332 = scalar_lea.vmem %s275, %s2331 [#allocation5]
        %v2333 = vld [vmem:[%s2332] sm:$0xff]
        %v2334 = vld [vmem:[%s2332 + $0x8] sm:$0xff]
        %v2335 = vmax.f32 %v2329, %v2333
        %v2336 = vmax.f32 %v2330, %v2334
        %s2337 = sadd.s32 %s366, 512
        %s2338 = scalar_lea.vmem %s275, %s2337 [#allocation5]
        %v2339 = vld [vmem:[%s2338] sm:$0xff]
        %v2340 = vld [vmem:[%s2338 + $0x8] sm:$0xff]
        %v2341 = vmax.f32 %v2335, %v2339
        %v2342 = vmax.f32 %v2336, %v2340
        %s2343 = sadd.s32 %s370, 512
        %s2344 = scalar_lea.vmem %s275, %s2343 [#allocation5]
        %v2345 = vld [vmem:[%s2344] sm:$0xff]
        %v2346 = vld [vmem:[%s2344 + $0x8] sm:$0xff]
        %v2347 = vmax.f32 %v2341, %v2345
        %v2348 = vmax.f32 %v2342, %v2346
        %s2349 = sadd.s32 %s1505, 512
        %s2350 = scalar_lea.vmem %s275, %s2349 [#allocation5]
        %v2351 = vld [vmem:[%s2350] sm:$0xff]
        %v2352 = vld [vmem:[%s2350 + $0x8] sm:$0xff]
        %v2353 = vmax.f32 %v2347, %v2351
        %v2354 = vmax.f32 %v2348, %v2352
        %s2355 = sadd.s32 %s1511, 512
        %s2356 = scalar_lea.vmem %s275, %s2355 [#allocation5]
        %v2357 = vld [vmem:[%s2356] sm:$0xff]
        %v2358 = vld [vmem:[%s2356 + $0x8] sm:$0xff]
        %v2359 = vmax.f32 %v2353, %v2357
        %v2360 = vmax.f32 %v2354, %v2358
        %v2361 = vsub.f32 %v2269, %v2359
        %v2362 = vsub.f32 %v2270, %v2360
        %v2363 = vmul.f32 %v2361, 1.442695
        %v2364 = vpow.pop %v2363
        %v2365 = vmul.f32 %v2362, 1.442695
        %v2366 = vpow.pop %v2365
        %v2367 = vadd.f32 %v2364, 0.0
        %v2368 = vadd.f32 %v2366, 0.0
        %v2369 = vand.u32 2147483647, %v1428
        %v2370 = vand.u32 2147483647, %v1429
        %v2371 = vsub.f32 1.0, %v2369
        %v2372 = vsub.f32 1.0, %v2370
        %v2373 = vmax.f32 %v2371, 0.0
        %v2374 = vmax.f32 %v2372, 0.0
        %v2375 = vmul.f32 %v2269, %v2373
        %v2376 = vmul.f32 %v2270, %v2374
        %v2377 = vadd.f32 %v2375, 0.0
        %v2378 = vadd.f32 %v2376, 0.0
        %v2379 = vsub.f32 %v2273, %v2359
        %v2380 = vsub.f32 %v2274, %v2360
        %v2381 = vmul.f32 %v2379, 1.442695
        %v2382 = vpow.pop %v2381
        %v2383 = vmul.f32 %v2380, 1.442695
        %v2384 = vpow.pop %v2383
        %v2385 = vadd.f32 %v2367, %v2382
        %v2386 = vadd.f32 %v2368, %v2384
        %v2387 = vsub.f32 %v1428, 1.0
        %v2388 = vsub.f32 %v1429, 1.0
        %v2389 = vand.u32 2147483647, %v2387
        %v2390 = vand.u32 2147483647, %v2388
        %v2391 = vsub.f32 1.0, %v2389
        %v2392 = vsub.f32 1.0, %v2390
        %v2393 = vmax.f32 %v2391, 0.0
        %v2394 = vmax.f32 %v2392, 0.0
        %v2395 = vmul.f32 %v2273, %v2393
        %v2396 = vmul.f32 %v2274, %v2394
        %v2397 = vadd.f32 %v2377, %v2395
        %v2398 = vadd.f32 %v2378, %v2396
        %v2399 = vsub.f32 %v2279, %v2359
        %v2400 = vsub.f32 %v2280, %v2360
        %v2401 = vmul.f32 %v2399, 1.442695
        %v2402 = vpow.pop %v2401
        %v2403 = vmul.f32 %v2400, 1.442695
        %v2404 = vpow.pop %v2403
        %v2405 = vadd.f32 %v2385, %v2402
        %v2406 = vadd.f32 %v2386, %v2404
        %v2407 = vsub.f32 %v1428, 2.0
        %v2408 = vsub.f32 %v1429, 2.0
        %v2409 = vand.u32 2147483647, %v2407
        %v2410 = vand.u32 2147483647, %v2408
        %v2411 = vsub.f32 1.0, %v2409
        %v2412 = vsub.f32 1.0, %v2410
        %v2413 = vmax.f32 %v2411, 0.0
        %v2414 = vmax.f32 %v2412, 0.0
        %v2415 = vmul.f32 %v2279, %v2413
        %v2416 = vmul.f32 %v2280, %v2414
        %v2417 = vadd.f32 %v2397, %v2415
        %v2418 = vadd.f32 %v2398, %v2416
        %v2419 = vsub.f32 %v2285, %v2359
        %v2420 = vsub.f32 %v2286, %v2360
        %v2421 = vmul.f32 %v2419, 1.442695
        %v2422 = vpow.pop %v2421
        %v2423 = vmul.f32 %v2420, 1.442695
        %v2424 = vpow.pop %v2423
        %v2425 = vadd.f32 %v2405, %v2422
        %v2426 = vadd.f32 %v2406, %v2424
        %v2427 = vsub.f32 %v1428, 3.0
        %v2428 = vsub.f32 %v1429, 3.0
        %v2429 = vand.u32 2147483647, %v2427
        %v2430 = vand.u32 2147483647, %v2428
        %v2431 = vsub.f32 1.0, %v2429
        %v2432 = vsub.f32 1.0, %v2430
        %v2433 = vmax.f32 %v2431, 0.0
        %v2434 = vmax.f32 %v2432, 0.0
        %v2435 = vmul.f32 %v2285, %v2433
        %v2436 = vmul.f32 %v2286, %v2434
        %v2437 = vadd.f32 %v2417, %v2435
        %v2438 = vadd.f32 %v2418, %v2436
        %v2439 = vsub.f32 %v2291, %v2359
        %v2440 = vsub.f32 %v2292, %v2360
        %v2441 = vmul.f32 %v2439, 1.442695
        %v2442 = vpow.pop %v2441
        %v2443 = vmul.f32 %v2440, 1.442695
        %v2444 = vpow.pop %v2443
        %v2445 = vadd.f32 %v2425, %v2442
        %v2446 = vadd.f32 %v2426, %v2444
        %v2447 = vsub.f32 %v1428, 4.0
        %v2448 = vsub.f32 %v1429, 4.0
        %v2449 = vand.u32 2147483647, %v2447
        %v2450 = vand.u32 2147483647, %v2448
        %v2451 = vsub.f32 1.0, %v2449
        %v2452 = vsub.f32 1.0, %v2450
        %v2453 = vmax.f32 %v2451, 0.0
        %v2454 = vmax.f32 %v2452, 0.0
        %v2455 = vmul.f32 %v2291, %v2453
        %v2456 = vmul.f32 %v2292, %v2454
        %v2457 = vadd.f32 %v2437, %v2455
        %v2458 = vadd.f32 %v2438, %v2456
        %v2459 = vsub.f32 %v2297, %v2359
        %v2460 = vsub.f32 %v2298, %v2360
        %v2461 = vmul.f32 %v2459, 1.442695
        %v2462 = vpow.pop %v2461
        %v2463 = vmul.f32 %v2460, 1.442695
        %v2464 = vpow.pop %v2463
        %v2465 = vadd.f32 %v2445, %v2462
        %v2466 = vadd.f32 %v2446, %v2464
        %v2467 = vsub.f32 %v1428, 5.0
        %v2468 = vsub.f32 %v1429, 5.0
        %v2469 = vand.u32 2147483647, %v2467
        %v2470 = vand.u32 2147483647, %v2468
        %v2471 = vsub.f32 1.0, %v2469
        %v2472 = vsub.f32 1.0, %v2470
        %v2473 = vmax.f32 %v2471, 0.0
        %v2474 = vmax.f32 %v2472, 0.0
        %v2475 = vmul.f32 %v2297, %v2473
        %v2476 = vmul.f32 %v2298, %v2474
        %v2477 = vadd.f32 %v2457, %v2475
        %v2478 = vadd.f32 %v2458, %v2476
        %v2479 = vsub.f32 %v2303, %v2359
        %v2480 = vsub.f32 %v2304, %v2360
        %v2481 = vmul.f32 %v2479, 1.442695
        %v2482 = vpow.pop %v2481
        %v2483 = vmul.f32 %v2480, 1.442695
        %v2484 = vpow.pop %v2483
        %v2485 = vadd.f32 %v2465, %v2482
        %v2486 = vadd.f32 %v2466, %v2484
        %v2487 = vsub.f32 %v1428, 6.0
        %v2488 = vsub.f32 %v1429, 6.0
        %v2489 = vand.u32 2147483647, %v2487
        %v2490 = vand.u32 2147483647, %v2488
        %v2491 = vsub.f32 1.0, %v2489
        %v2492 = vsub.f32 1.0, %v2490
        %v2493 = vmax.f32 %v2491, 0.0
        %v2494 = vmax.f32 %v2492, 0.0
        %v2495 = vmul.f32 %v2303, %v2493
        %v2496 = vmul.f32 %v2304, %v2494
        %v2497 = vadd.f32 %v2477, %v2495
        %v2498 = vadd.f32 %v2478, %v2496
        %v2499 = vsub.f32 %v2309, %v2359
        %v2500 = vsub.f32 %v2310, %v2360
        %v2501 = vmul.f32 %v2499, 1.442695
        %v2502 = vpow.pop %v2501
        %v2503 = vmul.f32 %v2500, 1.442695
        %v2504 = vpow.pop %v2503
        %v2505 = vadd.f32 %v2485, %v2502
        %v2506 = vadd.f32 %v2486, %v2504
        %v2507 = vsub.f32 %v1428, 7.0
        %v2508 = vsub.f32 %v1429, 7.0
        %v2509 = vand.u32 2147483647, %v2507
        %v2510 = vand.u32 2147483647, %v2508
        %v2511 = vsub.f32 1.0, %v2509
        %v2512 = vsub.f32 1.0, %v2510
        %v2513 = vmax.f32 %v2511, 0.0
        %v2514 = vmax.f32 %v2512, 0.0
        %v2515 = vmul.f32 %v2309, %v2513
        %v2516 = vmul.f32 %v2310, %v2514
        %v2517 = vadd.f32 %v2497, %v2515
        %v2518 = vadd.f32 %v2498, %v2516
        %v2519 = vsub.f32 %v2315, %v2359
        %v2520 = vsub.f32 %v2316, %v2360
        %v2521 = vmul.f32 %v2519, 1.442695
        %v2522 = vpow.pop %v2521
        %v2523 = vmul.f32 %v2520, 1.442695
        %v2524 = vpow.pop %v2523
        %v2525 = vadd.f32 %v2505, %v2522
        %v2526 = vadd.f32 %v2506, %v2524
        %v2527 = vsub.f32 %v1428, 8.0
        %v2528 = vsub.f32 %v1429, 8.0
        %v2529 = vand.u32 2147483647, %v2527
        %v2530 = vand.u32 2147483647, %v2528
        %v2531 = vsub.f32 1.0, %v2529
        %v2532 = vsub.f32 1.0, %v2530
        %v2533 = vmax.f32 %v2531, 0.0
        %v2534 = vmax.f32 %v2532, 0.0
        %v2535 = vmul.f32 %v2315, %v2533
        %v2536 = vmul.f32 %v2316, %v2534
        %v2537 = vadd.f32 %v2517, %v2535
        %v2538 = vadd.f32 %v2518, %v2536
        %v2539 = vsub.f32 %v2321, %v2359
        %v2540 = vsub.f32 %v2322, %v2360
        %v2541 = vmul.f32 %v2539, 1.442695
        %v2542 = vpow.pop %v2541
        %v2543 = vmul.f32 %v2540, 1.442695
        %v2544 = vpow.pop %v2543
        %v2545 = vadd.f32 %v2525, %v2542
        %v2546 = vadd.f32 %v2526, %v2544
        %v2547 = vsub.f32 %v1428, 9.0
        %v2548 = vsub.f32 %v1429, 9.0
        %v2549 = vand.u32 2147483647, %v2547
        %v2550 = vand.u32 2147483647, %v2548
        %v2551 = vsub.f32 1.0, %v2549
        %v2552 = vsub.f32 1.0, %v2550
        %v2553 = vmax.f32 %v2551, 0.0
        %v2554 = vmax.f32 %v2552, 0.0
        %v2555 = vmul.f32 %v2321, %v2553
        %v2556 = vmul.f32 %v2322, %v2554
        %v2557 = vadd.f32 %v2537, %v2555
        %v2558 = vadd.f32 %v2538, %v2556
        %v2559 = vsub.f32 %v2327, %v2359
        %v2560 = vsub.f32 %v2328, %v2360
        %v2561 = vmul.f32 %v2559, 1.442695
        %v2562 = vpow.pop %v2561
        %v2563 = vmul.f32 %v2560, 1.442695
        %v2564 = vpow.pop %v2563
        %v2565 = vadd.f32 %v2545, %v2562
        %v2566 = vadd.f32 %v2546, %v2564
        %v2567 = vsub.f32 %v1428, 10.0
        %v2568 = vsub.f32 %v1429, 10.0
        %v2569 = vand.u32 2147483647, %v2567
        %v2570 = vand.u32 2147483647, %v2568
        %v2571 = vsub.f32 1.0, %v2569
        %v2572 = vsub.f32 1.0, %v2570
        %v2573 = vmax.f32 %v2571, 0.0
        %v2574 = vmax.f32 %v2572, 0.0
        %v2575 = vmul.f32 %v2327, %v2573
        %v2576 = vmul.f32 %v2328, %v2574
        %v2577 = vadd.f32 %v2557, %v2575
        %v2578 = vadd.f32 %v2558, %v2576
        %v2579 = vsub.f32 %v2333, %v2359
        %v2580 = vsub.f32 %v2334, %v2360
        %v2581 = vmul.f32 %v2579, 1.442695
        %v2582 = vpow.pop %v2581
        %v2583 = vmul.f32 %v2580, 1.442695
        %v2584 = vpow.pop %v2583
        %v2585 = vadd.f32 %v2565, %v2582
        %v2586 = vadd.f32 %v2566, %v2584
        %v2587 = vsub.f32 %v1428, 11.0
        %v2588 = vsub.f32 %v1429, 11.0
        %v2589 = vand.u32 2147483647, %v2587
        %v2590 = vand.u32 2147483647, %v2588
        %v2591 = vsub.f32 1.0, %v2589
        %v2592 = vsub.f32 1.0, %v2590
        %v2593 = vmax.f32 %v2591, 0.0
        %v2594 = vmax.f32 %v2592, 0.0
        %v2595 = vmul.f32 %v2333, %v2593
        %v2596 = vmul.f32 %v2334, %v2594
        %v2597 = vadd.f32 %v2577, %v2595
        %v2598 = vadd.f32 %v2578, %v2596
        %v2599 = vsub.f32 %v2339, %v2359
        %v2600 = vsub.f32 %v2340, %v2360
        %v2601 = vmul.f32 %v2599, 1.442695
        %v2602 = vpow.pop %v2601
        %v2603 = vmul.f32 %v2600, 1.442695
        %v2604 = vpow.pop %v2603
        %v2605 = vadd.f32 %v2585, %v2602
        %v2606 = vadd.f32 %v2586, %v2604
        %v2607 = vsub.f32 %v1428, 12.0
        %v2608 = vsub.f32 %v1429, 12.0
        %v2609 = vand.u32 2147483647, %v2607
        %v2610 = vand.u32 2147483647, %v2608
        %v2611 = vsub.f32 1.0, %v2609
        %v2612 = vsub.f32 1.0, %v2610
        %v2613 = vmax.f32 %v2611, 0.0
        %v2614 = vmax.f32 %v2612, 0.0
        %v2615 = vmul.f32 %v2339, %v2613
        %v2616 = vmul.f32 %v2340, %v2614
        %v2617 = vadd.f32 %v2597, %v2615
        %v2618 = vadd.f32 %v2598, %v2616
        %v2619 = vsub.f32 %v2345, %v2359
        %v2620 = vsub.f32 %v2346, %v2360
        %v2621 = vmul.f32 %v2619, 1.442695
        %v2622 = vpow.pop %v2621
        %v2623 = vmul.f32 %v2620, 1.442695
        %v2624 = vpow.pop %v2623
        %v2625 = vadd.f32 %v2605, %v2622
        %v2626 = vadd.f32 %v2606, %v2624
        %v2627 = vsub.f32 %v1428, 13.0
        %v2628 = vsub.f32 %v1429, 13.0
        %v2629 = vand.u32 2147483647, %v2627
        %v2630 = vand.u32 2147483647, %v2628
        %v2631 = vsub.f32 1.0, %v2629
        %v2632 = vsub.f32 1.0, %v2630
        %v2633 = vmax.f32 %v2631, 0.0
        %v2634 = vmax.f32 %v2632, 0.0
        %v2635 = vmul.f32 %v2345, %v2633
        %v2636 = vmul.f32 %v2346, %v2634
        %v2637 = vadd.f32 %v2617, %v2635
        %v2638 = vadd.f32 %v2618, %v2636
        %v2639 = vsub.f32 %v2351, %v2359
        %v2640 = vsub.f32 %v2352, %v2360
        %v2641 = vmul.f32 %v2639, 1.442695
        %v2642 = vpow.pop %v2641
        %v2643 = vmul.f32 %v2640, 1.442695
        %v2644 = vpow.pop %v2643
        %v2645 = vadd.f32 %v2625, %v2642
        %v2646 = vadd.f32 %v2626, %v2644
        %v2647 = vsub.f32 %v1428, 14.0
        %v2648 = vsub.f32 %v1429, 14.0
        %v2649 = vand.u32 2147483647, %v2647
        %v2650 = vand.u32 2147483647, %v2648
        %v2651 = vsub.f32 1.0, %v2649
        %v2652 = vsub.f32 1.0, %v2650
        %v2653 = vmax.f32 %v2651, 0.0
        %v2654 = vmax.f32 %v2652, 0.0
        %v2655 = vmul.f32 %v2351, %v2653
        %v2656 = vmul.f32 %v2352, %v2654
        %v2657 = vadd.f32 %v2637, %v2655
        %v2658 = vadd.f32 %v2638, %v2656
        %v2659 = vsub.f32 %v2357, %v2359
        %v2660 = vsub.f32 %v2358, %v2360
        %v2661 = vmul.f32 %v2659, 1.442695
        %v2662 = vpow.pop %v2661
        %v2663 = vmul.f32 %v2660, 1.442695
        %v2664 = vpow.pop %v2663
        %v2665 = vadd.f32 %v2645, %v2662
        %v2666 = vadd.f32 %v2646, %v2664
        %v2667 = vsub.f32 %v1428, 15.0
        %v2668 = vsub.f32 %v1429, 15.0
        %v2669 = vand.u32 2147483647, %v2667
        %v2670 = vand.u32 2147483647, %v2668
        %v2671 = vsub.f32 1.0, %v2669
        %v2672 = vsub.f32 1.0, %v2670
        %v2673 = vmax.f32 %v2671, 0.0
        %v2674 = vmax.f32 %v2672, 0.0
        %v2675 = vmul.f32 %v2357, %v2673
        %v2676 = vmul.f32 %v2358, %v2674
        %v2677 = vadd.f32 %v2657, %v2675
        %v2678 = vadd.f32 %v2658, %v2676
        %v2679 = vlog2.pop %v2665
        %v2680 = vmul.f32 %v2679, 0.6931472
        %v2681 = vlog2.pop %v2666
        %v2682 = vmul.f32 %v2681, 0.6931472
        %v2683 = vadd.f32 %v2359, %v2680
        %v2684 = vadd.f32 %v2360, %v2682
        %v2685 = vsub.f32 %v2683, %v2677
        %v2686 = vsub.f32 %v2684, %v2678
        %v2687 = vadd.f32 %v2265, %v2685
        %v2688 = vadd.f32 %v2266, %v2686
        %s2689 = sadd.s32 0, 768
        %s2690 = scalar_lea.vmem %s275, %s2689 [#allocation5]
        %v2691 = vld [vmem:[%s2690] sm:$0xff]
        %v2692 = vld [vmem:[%s2690 + $0x8] sm:$0xff]
        %s2693 = sadd.s32 %s322, 768
        %s2694 = scalar_lea.vmem %s275, %s2693 [#allocation5]
        %v2695 = vld [vmem:[%s2694] sm:$0xff]
        %v2696 = vld [vmem:[%s2694 + $0x8] sm:$0xff]
        %v2697 = vmax.f32 %v2691, %v2695
        %v2698 = vmax.f32 %v2692, %v2696
        %s2699 = sadd.s32 %s326, 768
        %s2700 = scalar_lea.vmem %s275, %s2699 [#allocation5]
        %v2701 = vld [vmem:[%s2700] sm:$0xff]
        %v2702 = vld [vmem:[%s2700 + $0x8] sm:$0xff]
        %v2703 = vmax.f32 %v2697, %v2701
        %v2704 = vmax.f32 %v2698, %v2702
        %s2705 = sadd.s32 %s330, 768
        %s2706 = scalar_lea.vmem %s275, %s2705 [#allocation5]
        %v2707 = vld [vmem:[%s2706] sm:$0xff]
        %v2708 = vld [vmem:[%s2706 + $0x8] sm:$0xff]
        %v2709 = vmax.f32 %v2703, %v2707
        %v2710 = vmax.f32 %v2704, %v2708
        %s2711 = sadd.s32 %s334, 768
        %s2712 = scalar_lea.vmem %s275, %s2711 [#allocation5]
        %v2713 = vld [vmem:[%s2712] sm:$0xff]
        %v2714 = vld [vmem:[%s2712 + $0x8] sm:$0xff]
        %v2715 = vmax.f32 %v2709, %v2713
        %v2716 = vmax.f32 %v2710, %v2714
        %s2717 = sadd.s32 %s338, 768
        %s2718 = scalar_lea.vmem %s275, %s2717 [#allocation5]
        %v2719 = vld [vmem:[%s2718] sm:$0xff]
        %v2720 = vld [vmem:[%s2718 + $0x8] sm:$0xff]
        %v2721 = vmax.f32 %v2715, %v2719
        %v2722 = vmax.f32 %v2716, %v2720
        %s2723 = sadd.s32 %s342, 768
        %s2724 = scalar_lea.vmem %s275, %s2723 [#allocation5]
        %v2725 = vld [vmem:[%s2724] sm:$0xff]
        %v2726 = vld [vmem:[%s2724 + $0x8] sm:$0xff]
        %v2727 = vmax.f32 %v2721, %v2725
        %v2728 = vmax.f32 %v2722, %v2726
        %s2729 = sadd.s32 %s346, 768
        %s2730 = scalar_lea.vmem %s275, %s2729 [#allocation5]
        %v2731 = vld [vmem:[%s2730] sm:$0xff]
        %v2732 = vld [vmem:[%s2730 + $0x8] sm:$0xff]
        %v2733 = vmax.f32 %v2727, %v2731
        %v2734 = vmax.f32 %v2728, %v2732
        %s2735 = sadd.s32 %s350, 768
        %s2736 = scalar_lea.vmem %s275, %s2735 [#allocation5]
        %v2737 = vld [vmem:[%s2736] sm:$0xff]
        %v2738 = vld [vmem:[%s2736 + $0x8] sm:$0xff]
        %v2739 = vmax.f32 %v2733, %v2737
        %v2740 = vmax.f32 %v2734, %v2738
        %s2741 = sadd.s32 %s354, 768
        %s2742 = scalar_lea.vmem %s275, %s2741 [#allocation5]
        %v2743 = vld [vmem:[%s2742] sm:$0xff]
        %v2744 = vld [vmem:[%s2742 + $0x8] sm:$0xff]
        %v2745 = vmax.f32 %v2739, %v2743
        %v2746 = vmax.f32 %v2740, %v2744
        %s2747 = sadd.s32 %s358, 768
        %s2748 = scalar_lea.vmem %s275, %s2747 [#allocation5]
        %v2749 = vld [vmem:[%s2748] sm:$0xff]
        %v2750 = vld [vmem:[%s2748 + $0x8] sm:$0xff]
        %v2751 = vmax.f32 %v2745, %v2749
        %v2752 = vmax.f32 %v2746, %v2750
        %s2753 = sadd.s32 %s362, 768
        %s2754 = scalar_lea.vmem %s275, %s2753 [#allocation5]
        %v2755 = vld [vmem:[%s2754] sm:$0xff]
        %v2756 = vld [vmem:[%s2754 + $0x8] sm:$0xff]
        %v2757 = vmax.f32 %v2751, %v2755
        %v2758 = vmax.f32 %v2752, %v2756
        %s2759 = sadd.s32 %s366, 768
        %s2760 = scalar_lea.vmem %s275, %s2759 [#allocation5]
        %v2761 = vld [vmem:[%s2760] sm:$0xff]
        %v2762 = vld [vmem:[%s2760 + $0x8] sm:$0xff]
        %v2763 = vmax.f32 %v2757, %v2761
        %v2764 = vmax.f32 %v2758, %v2762
        %s2765 = sadd.s32 %s370, 768
        %s2766 = scalar_lea.vmem %s275, %s2765 [#allocation5]
        %v2767 = vld [vmem:[%s2766] sm:$0xff]
        %v2768 = vld [vmem:[%s2766 + $0x8] sm:$0xff]
        %v2769 = vmax.f32 %v2763, %v2767
        %v2770 = vmax.f32 %v2764, %v2768
        %s2771 = sadd.s32 %s1505, 768
        %s2772 = scalar_lea.vmem %s275, %s2771 [#allocation5]
        %v2773 = vld [vmem:[%s2772] sm:$0xff]
        %v2774 = vld [vmem:[%s2772 + $0x8] sm:$0xff]
        %v2775 = vmax.f32 %v2769, %v2773
        %v2776 = vmax.f32 %v2770, %v2774
        %s2777 = sadd.s32 %s1511, 768
        %s2778 = scalar_lea.vmem %s275, %s2777 [#allocation5]
        %v2779 = vld [vmem:[%s2778] sm:$0xff]
        %v2780 = vld [vmem:[%s2778 + $0x8] sm:$0xff]
        %v2781 = vmax.f32 %v2775, %v2779
        %v2782 = vmax.f32 %v2776, %v2780
        %v2783 = vsub.f32 %v2691, %v2781
        %v2784 = vsub.f32 %v2692, %v2782
        %v2785 = vmul.f32 %v2783, 1.442695
        %v2786 = vpow.pop %v2785
        %v2787 = vmul.f32 %v2784, 1.442695
        %v2788 = vpow.pop %v2787
        %v2789 = vadd.f32 %v2786, 0.0
        %v2790 = vadd.f32 %v2788, 0.0
        %v2791 = vand.u32 2147483647, %v1436
        %v2792 = vand.u32 2147483647, %v1437
        %v2793 = vsub.f32 1.0, %v2791
        %v2794 = vsub.f32 1.0, %v2792
        %v2795 = vmax.f32 %v2793, 0.0
        %v2796 = vmax.f32 %v2794, 0.0
        %v2797 = vmul.f32 %v2691, %v2795
        %v2798 = vmul.f32 %v2692, %v2796
        %v2799 = vadd.f32 %v2797, 0.0
        %v2800 = vadd.f32 %v2798, 0.0
        %v2801 = vsub.f32 %v2695, %v2781
        %v2802 = vsub.f32 %v2696, %v2782
        %v2803 = vmul.f32 %v2801, 1.442695
        %v2804 = vpow.pop %v2803
        %v2805 = vmul.f32 %v2802, 1.442695
        %v2806 = vpow.pop %v2805
        %v2807 = vadd.f32 %v2789, %v2804
        %v2808 = vadd.f32 %v2790, %v2806
        %v2809 = vsub.f32 %v1436, 1.0
        %v2810 = vsub.f32 %v1437, 1.0
        %v2811 = vand.u32 2147483647, %v2809
        %v2812 = vand.u32 2147483647, %v2810
        %v2813 = vsub.f32 1.0, %v2811
        %v2814 = vsub.f32 1.0, %v2812
        %v2815 = vmax.f32 %v2813, 0.0
        %v2816 = vmax.f32 %v2814, 0.0
        %v2817 = vmul.f32 %v2695, %v2815
        %v2818 = vmul.f32 %v2696, %v2816
        %v2819 = vadd.f32 %v2799, %v2817
        %v2820 = vadd.f32 %v2800, %v2818
        %v2821 = vsub.f32 %v2701, %v2781
        %v2822 = vsub.f32 %v2702, %v2782
        %v2823 = vmul.f32 %v2821, 1.442695
        %v2824 = vpow.pop %v2823
        %v2825 = vmul.f32 %v2822, 1.442695
        %v2826 = vpow.pop %v2825
        %v2827 = vadd.f32 %v2807, %v2824
        %v2828 = vadd.f32 %v2808, %v2826
        %v2829 = vsub.f32 %v1436, 2.0
        %v2830 = vsub.f32 %v1437, 2.0
        %v2831 = vand.u32 2147483647, %v2829
        %v2832 = vand.u32 2147483647, %v2830
        %v2833 = vsub.f32 1.0, %v2831
        %v2834 = vsub.f32 1.0, %v2832
        %v2835 = vmax.f32 %v2833, 0.0
        %v2836 = vmax.f32 %v2834, 0.0
        %v2837 = vmul.f32 %v2701, %v2835
        %v2838 = vmul.f32 %v2702, %v2836
        %v2839 = vadd.f32 %v2819, %v2837
        %v2840 = vadd.f32 %v2820, %v2838
        %v2841 = vsub.f32 %v2707, %v2781
        %v2842 = vsub.f32 %v2708, %v2782
        %v2843 = vmul.f32 %v2841, 1.442695
        %v2844 = vpow.pop %v2843
        %v2845 = vmul.f32 %v2842, 1.442695
        %v2846 = vpow.pop %v2845
        %v2847 = vadd.f32 %v2827, %v2844
        %v2848 = vadd.f32 %v2828, %v2846
        %v2849 = vsub.f32 %v1436, 3.0
        %v2850 = vsub.f32 %v1437, 3.0
        %v2851 = vand.u32 2147483647, %v2849
        %v2852 = vand.u32 2147483647, %v2850
        %v2853 = vsub.f32 1.0, %v2851
        %v2854 = vsub.f32 1.0, %v2852
        %v2855 = vmax.f32 %v2853, 0.0
        %v2856 = vmax.f32 %v2854, 0.0
        %v2857 = vmul.f32 %v2707, %v2855
        %v2858 = vmul.f32 %v2708, %v2856
        %v2859 = vadd.f32 %v2839, %v2857
        %v2860 = vadd.f32 %v2840, %v2858
        %v2861 = vsub.f32 %v2713, %v2781
        %v2862 = vsub.f32 %v2714, %v2782
        %v2863 = vmul.f32 %v2861, 1.442695
        %v2864 = vpow.pop %v2863
        %v2865 = vmul.f32 %v2862, 1.442695
        %v2866 = vpow.pop %v2865
        %v2867 = vadd.f32 %v2847, %v2864
        %v2868 = vadd.f32 %v2848, %v2866
        %v2869 = vsub.f32 %v1436, 4.0
        %v2870 = vsub.f32 %v1437, 4.0
        %v2871 = vand.u32 2147483647, %v2869
        %v2872 = vand.u32 2147483647, %v2870
        %v2873 = vsub.f32 1.0, %v2871
        %v2874 = vsub.f32 1.0, %v2872
        %v2875 = vmax.f32 %v2873, 0.0
        %v2876 = vmax.f32 %v2874, 0.0
        %v2877 = vmul.f32 %v2713, %v2875
        %v2878 = vmul.f32 %v2714, %v2876
        %v2879 = vadd.f32 %v2859, %v2877
        %v2880 = vadd.f32 %v2860, %v2878
        %v2881 = vsub.f32 %v2719, %v2781
        %v2882 = vsub.f32 %v2720, %v2782
        %v2883 = vmul.f32 %v2881, 1.442695
        %v2884 = vpow.pop %v2883
        %v2885 = vmul.f32 %v2882, 1.442695
        %v2886 = vpow.pop %v2885
        %v2887 = vadd.f32 %v2867, %v2884
        %v2888 = vadd.f32 %v2868, %v2886
        %v2889 = vsub.f32 %v1436, 5.0
        %v2890 = vsub.f32 %v1437, 5.0
        %v2891 = vand.u32 2147483647, %v2889
        %v2892 = vand.u32 2147483647, %v2890
        %v2893 = vsub.f32 1.0, %v2891
        %v2894 = vsub.f32 1.0, %v2892
        %v2895 = vmax.f32 %v2893, 0.0
        %v2896 = vmax.f32 %v2894, 0.0
        %v2897 = vmul.f32 %v2719, %v2895
        %v2898 = vmul.f32 %v2720, %v2896
        %v2899 = vadd.f32 %v2879, %v2897
        %v2900 = vadd.f32 %v2880, %v2898
        %v2901 = vsub.f32 %v2725, %v2781
        %v2902 = vsub.f32 %v2726, %v2782
        %v2903 = vmul.f32 %v2901, 1.442695
        %v2904 = vpow.pop %v2903
        %v2905 = vmul.f32 %v2902, 1.442695
        %v2906 = vpow.pop %v2905
        %v2907 = vadd.f32 %v2887, %v2904
        %v2908 = vadd.f32 %v2888, %v2906
        %v2909 = vsub.f32 %v1436, 6.0
        %v2910 = vsub.f32 %v1437, 6.0
        %v2911 = vand.u32 2147483647, %v2909
        %v2912 = vand.u32 2147483647, %v2910
        %v2913 = vsub.f32 1.0, %v2911
        %v2914 = vsub.f32 1.0, %v2912
        %v2915 = vmax.f32 %v2913, 0.0
        %v2916 = vmax.f32 %v2914, 0.0
        %v2917 = vmul.f32 %v2725, %v2915
        %v2918 = vmul.f32 %v2726, %v2916
        %v2919 = vadd.f32 %v2899, %v2917
        %v2920 = vadd.f32 %v2900, %v2918
        %v2921 = vsub.f32 %v2731, %v2781
        %v2922 = vsub.f32 %v2732, %v2782
        %v2923 = vmul.f32 %v2921, 1.442695
        %v2924 = vpow.pop %v2923
        %v2925 = vmul.f32 %v2922, 1.442695
        %v2926 = vpow.pop %v2925
        %v2927 = vadd.f32 %v2907, %v2924
        %v2928 = vadd.f32 %v2908, %v2926
        %v2929 = vsub.f32 %v1436, 7.0
        %v2930 = vsub.f32 %v1437, 7.0
        %v2931 = vand.u32 2147483647, %v2929
        %v2932 = vand.u32 2147483647, %v2930
        %v2933 = vsub.f32 1.0, %v2931
        %v2934 = vsub.f32 1.0, %v2932
        %v2935 = vmax.f32 %v2933, 0.0
        %v2936 = vmax.f32 %v2934, 0.0
        %v2937 = vmul.f32 %v2731, %v2935
        %v2938 = vmul.f32 %v2732, %v2936
        %v2939 = vadd.f32 %v2919, %v2937
        %v2940 = vadd.f32 %v2920, %v2938
        %v2941 = vsub.f32 %v2737, %v2781
        %v2942 = vsub.f32 %v2738, %v2782
        %v2943 = vmul.f32 %v2941, 1.442695
        %v2944 = vpow.pop %v2943
        %v2945 = vmul.f32 %v2942, 1.442695
        %v2946 = vpow.pop %v2945
        %v2947 = vadd.f32 %v2927, %v2944
        %v2948 = vadd.f32 %v2928, %v2946
        %v2949 = vsub.f32 %v1436, 8.0
        %v2950 = vsub.f32 %v1437, 8.0
        %v2951 = vand.u32 2147483647, %v2949
        %v2952 = vand.u32 2147483647, %v2950
        %v2953 = vsub.f32 1.0, %v2951
        %v2954 = vsub.f32 1.0, %v2952
        %v2955 = vmax.f32 %v2953, 0.0
        %v2956 = vmax.f32 %v2954, 0.0
        %v2957 = vmul.f32 %v2737, %v2955
        %v2958 = vmul.f32 %v2738, %v2956
        %v2959 = vadd.f32 %v2939, %v2957
        %v2960 = vadd.f32 %v2940, %v2958
        %v2961 = vsub.f32 %v2743, %v2781
        %v2962 = vsub.f32 %v2744, %v2782
        %v2963 = vmul.f32 %v2961, 1.442695
        %v2964 = vpow.pop %v2963
        %v2965 = vmul.f32 %v2962, 1.442695
        %v2966 = vpow.pop %v2965
        %v2967 = vadd.f32 %v2947, %v2964
        %v2968 = vadd.f32 %v2948, %v2966
        %v2969 = vsub.f32 %v1436, 9.0
        %v2970 = vsub.f32 %v1437, 9.0
        %v2971 = vand.u32 2147483647, %v2969
        %v2972 = vand.u32 2147483647, %v2970
        %v2973 = vsub.f32 1.0, %v2971
        %v2974 = vsub.f32 1.0, %v2972
        %v2975 = vmax.f32 %v2973, 0.0
        %v2976 = vmax.f32 %v2974, 0.0
        %v2977 = vmul.f32 %v2743, %v2975
        %v2978 = vmul.f32 %v2744, %v2976
        %v2979 = vadd.f32 %v2959, %v2977
        %v2980 = vadd.f32 %v2960, %v2978
        %v2981 = vsub.f32 %v2749, %v2781
        %v2982 = vsub.f32 %v2750, %v2782
        %v2983 = vmul.f32 %v2981, 1.442695
        %v2984 = vpow.pop %v2983
        %v2985 = vmul.f32 %v2982, 1.442695
        %v2986 = vpow.pop %v2985
        %v2987 = vadd.f32 %v2967, %v2984
        %v2988 = vadd.f32 %v2968, %v2986
        %v2989 = vsub.f32 %v1436, 10.0
        %v2990 = vsub.f32 %v1437, 10.0
        %v2991 = vand.u32 2147483647, %v2989
        %v2992 = vand.u32 2147483647, %v2990
        %v2993 = vsub.f32 1.0, %v2991
        %v2994 = vsub.f32 1.0, %v2992
        %v2995 = vmax.f32 %v2993, 0.0
        %v2996 = vmax.f32 %v2994, 0.0
        %v2997 = vmul.f32 %v2749, %v2995
        %v2998 = vmul.f32 %v2750, %v2996
        %v2999 = vadd.f32 %v2979, %v2997
        %v3000 = vadd.f32 %v2980, %v2998
        %v3001 = vsub.f32 %v2755, %v2781
        %v3002 = vsub.f32 %v2756, %v2782
        %v3003 = vmul.f32 %v3001, 1.442695
        %v3004 = vpow.pop %v3003
        %v3005 = vmul.f32 %v3002, 1.442695
        %v3006 = vpow.pop %v3005
        %v3007 = vadd.f32 %v2987, %v3004
        %v3008 = vadd.f32 %v2988, %v3006
        %v3009 = vsub.f32 %v1436, 11.0
        %v3010 = vsub.f32 %v1437, 11.0
        %v3011 = vand.u32 2147483647, %v3009
        %v3012 = vand.u32 2147483647, %v3010
        %v3013 = vsub.f32 1.0, %v3011
        %v3014 = vsub.f32 1.0, %v3012
        %v3015 = vmax.f32 %v3013, 0.0
        %v3016 = vmax.f32 %v3014, 0.0
        %v3017 = vmul.f32 %v2755, %v3015
        %v3018 = vmul.f32 %v2756, %v3016
        %v3019 = vadd.f32 %v2999, %v3017
        %v3020 = vadd.f32 %v3000, %v3018
        %v3021 = vsub.f32 %v2761, %v2781
        %v3022 = vsub.f32 %v2762, %v2782
        %v3023 = vmul.f32 %v3021, 1.442695
        %v3024 = vpow.pop %v3023
        %v3025 = vmul.f32 %v3022, 1.442695
        %v3026 = vpow.pop %v3025
        %v3027 = vadd.f32 %v3007, %v3024
        %v3028 = vadd.f32 %v3008, %v3026
        %v3029 = vsub.f32 %v1436, 12.0
        %v3030 = vsub.f32 %v1437, 12.0
        %v3031 = vand.u32 2147483647, %v3029
        %v3032 = vand.u32 2147483647, %v3030
        %v3033 = vsub.f32 1.0, %v3031
        %v3034 = vsub.f32 1.0, %v3032
        %v3035 = vmax.f32 %v3033, 0.0
        %v3036 = vmax.f32 %v3034, 0.0
        %v3037 = vmul.f32 %v2761, %v3035
        %v3038 = vmul.f32 %v2762, %v3036
        %v3039 = vadd.f32 %v3019, %v3037
        %v3040 = vadd.f32 %v3020, %v3038
        %v3041 = vsub.f32 %v2767, %v2781
        %v3042 = vsub.f32 %v2768, %v2782
        %v3043 = vmul.f32 %v3041, 1.442695
        %v3044 = vpow.pop %v3043
        %v3045 = vmul.f32 %v3042, 1.442695
        %v3046 = vpow.pop %v3045
        %v3047 = vadd.f32 %v3027, %v3044
        %v3048 = vadd.f32 %v3028, %v3046
        %v3049 = vsub.f32 %v1436, 13.0
        %v3050 = vsub.f32 %v1437, 13.0
        %v3051 = vand.u32 2147483647, %v3049
        %v3052 = vand.u32 2147483647, %v3050
        %v3053 = vsub.f32 1.0, %v3051
        %v3054 = vsub.f32 1.0, %v3052
        %v3055 = vmax.f32 %v3053, 0.0
        %v3056 = vmax.f32 %v3054, 0.0
        %v3057 = vmul.f32 %v2767, %v3055
        %v3058 = vmul.f32 %v2768, %v3056
        %v3059 = vadd.f32 %v3039, %v3057
        %v3060 = vadd.f32 %v3040, %v3058
        %v3061 = vsub.f32 %v2773, %v2781
        %v3062 = vsub.f32 %v2774, %v2782
        %v3063 = vmul.f32 %v3061, 1.442695
        %v3064 = vpow.pop %v3063
        %v3065 = vmul.f32 %v3062, 1.442695
        %v3066 = vpow.pop %v3065
        %v3067 = vadd.f32 %v3047, %v3064
        %v3068 = vadd.f32 %v3048, %v3066
        %v3069 = vsub.f32 %v1436, 14.0
        %v3070 = vsub.f32 %v1437, 14.0
        %v3071 = vand.u32 2147483647, %v3069
        %v3072 = vand.u32 2147483647, %v3070
        %v3073 = vsub.f32 1.0, %v3071
        %v3074 = vsub.f32 1.0, %v3072
        %v3075 = vmax.f32 %v3073, 0.0
        %v3076 = vmax.f32 %v3074, 0.0
        %v3077 = vmul.f32 %v2773, %v3075
        %v3078 = vmul.f32 %v2774, %v3076
        %v3079 = vadd.f32 %v3059, %v3077
        %v3080 = vadd.f32 %v3060, %v3078
        %v3081 = vsub.f32 %v2779, %v2781
        %v3082 = vsub.f32 %v2780, %v2782
        %v3083 = vmul.f32 %v3081, 1.442695
        %v3084 = vpow.pop %v3083
        %v3085 = vmul.f32 %v3082, 1.442695
        %v3086 = vpow.pop %v3085
        %v3087 = vadd.f32 %v3067, %v3084
        %v3088 = vadd.f32 %v3068, %v3086
        %v3089 = vsub.f32 %v1436, 15.0
        %v3090 = vsub.f32 %v1437, 15.0
        %v3091 = vand.u32 2147483647, %v3089
        %v3092 = vand.u32 2147483647, %v3090
        %v3093 = vsub.f32 1.0, %v3091
        %v3094 = vsub.f32 1.0, %v3092
        %v3095 = vmax.f32 %v3093, 0.0
        %v3096 = vmax.f32 %v3094, 0.0
        %v3097 = vmul.f32 %v2779, %v3095
        %v3098 = vmul.f32 %v2780, %v3096
        %v3099 = vadd.f32 %v3079, %v3097
        %v3100 = vadd.f32 %v3080, %v3098
        %v3101 = vlog2.pop %v3087
        %v3102 = vmul.f32 %v3101, 0.6931472
        %v3103 = vlog2.pop %v3088
        %v3104 = vmul.f32 %v3103, 0.6931472
        %v3105 = vadd.f32 %v2781, %v3102
        %v3106 = vadd.f32 %v2782, %v3104
        %v3107 = vsub.f32 %v3105, %v3099
        %v3108 = vsub.f32 %v3106, %v3100
        %v3109 = vadd.f32 %v2687, %v3107
        %v3110 = vadd.f32 %v2688, %v3108
        %v3111 = vld [vmem:[%s307] sm:$0xff]
        %v3112 = vld [vmem:[%s307 + $0x8] sm:$0xff]
        %v3113 = vmul.f32 %v3109, 0.25
        %v3114 = vmul.f32 %v3110, 0.25
        %v3115 = vmul.f32 %v3113, %v368
        %v3116 = vmul.f32 %v3114, %v369
        %v3117 = vsel %vm374, %v3115, 0.0
        %v3118 = vsel %vm375, %v3116, 0.0
        %v3119 = vadd.f32 %v3111, %v3117
        %v3120 = vadd.f32 %v3112, %v3118
        %3121 = vst [vmem:[%s307] sm:$0xff] %v3119
        %3122 = vst [vmem:[%s307 + $0x8] sm:$0xff] %v3120
        %s3123 = sand.u32 %s103, 1
        %s3124 = scalar_lea.sflag [#allocation4], %s3123
        %s3125 = sand.u32 %s103, 1
        %s3126 = smul.addr %s3125, 16
        %s3127 = scalar_lea.vmem [#allocation7], %s3126
        %s3128 = sand.u32 %s129, 1
        %s3129 = scalar_lea.sflag [#allocation9], %s3128
        %s3130 = sand.u32 %s129, 1
        %s3131 = smul.addr %s3130, 16
        %s3132 = scalar_lea.vmem [#allocation8], %s3131
        // Predicated region
        $region41: #{tpu_custom_call.1} parent=27 // pred_check
          %p3133 = pneg %p113
        $region42: #{tpu_custom_call.1} parent=27 // pred_check_branch
          %3135 = sbr.rel (%p3133) target = $region44
        $region43: #{tpu_custom_call.1} parent=27 // pred_region
          %s3137 = ssub.s32 256, 256
          %3138 = vsyncadd %s3124, %s3137
          %s3139 = smul.addr %s31, 2
          %s3140 = smul.addr %s3139, 128
          %s3141 = scalar_lea.hbm %s2, %s3140
          %s3142 = sshll.u32 %s3127, 4
          %s3143 = int_to_ptr.vmem [resolvable:$true] %s3142
          %3148 = dma.vmem_to_hbm [thread:$0]  %s3143, 256, %s3141, %s3124, 128, 128, 8
        $region44: #{tpu_custom_call.1} parent=27 // pred_fallthru
          _
        // Predicated region
        $region45: #{tpu_custom_call.1} parent=27 // pred_check
          %p3149 = pneg %p139
        $region46: #{tpu_custom_call.1} parent=27 // pred_check_branch
          %3151 = sbr.rel (%p3149) target = $region48
        $region47: #{tpu_custom_call.1} parent=27 // pred_region
          %s3153 = ssub.s32 256, 256
          %3154 = vsyncadd %s3129, %s3153
          %s3155 = smul.addr %s31, 2
          %s3156 = smul.addr %s3155, 128
          %s3157 = scalar_lea.hbm %s3, %s3156
          %s3158 = sshll.u32 %s3132, 4
          %s3159 = int_to_ptr.vmem [resolvable:$true] %s3158
          %3164 = dma.vmem_to_hbm [thread:$0]  %s3159, 256, %s3157, %s3129, 128, 128, 8
        $region48: #{tpu_custom_call.1} parent=27 // pred_fallthru
          _
      $region28: #{tpu_custom_call.1} parent=5 // pred_fallthru
        _
      %p3165 = scmp.le.s32.totalorder 2, %s22
      // Predicated region
      $region49: #{tpu_custom_call.1} parent=5 // pred_check
        %p3166 = pneg %p3165
      $region50: #{tpu_custom_call.1} parent=5 // pred_check_branch
        %3168 = sbr.rel (%p3166) target = $region52
      $region51: #{tpu_custom_call.1} parent=5 // pred_region
        %s3169 = ssub.s32 %s22, 2
        // Predicated region
        $region53: #{tpu_custom_call.1} parent=51 // pred_check
          %p3170 = pneg %p119
        $region54: #{tpu_custom_call.1} parent=51 // pred_check_branch
          %3172 = sbr.rel (%p3170) target = $region56
        $region55: #{tpu_custom_call.1} parent=51 // pred_region
          %s3173 = sand.u32 %s104, 1
          %s3174 = scalar_lea.sflag [#allocation4], %s3173
          %s3175 = sand.u32 %s104, 1
          %s3176 = smul.addr %s3175, 16
          %s3177 = scalar_lea.vmem [#allocation7], %s3176
          %3178 = dma.done %s3174, 256
        $region56: #{tpu_custom_call.1} parent=51 // pred_fallthru
          _
        // Predicated region
        $region57: #{tpu_custom_call.1} parent=51 // pred_check
          %p3179 = pneg %p145
        $region58: #{tpu_custom_call.1} parent=51 // pred_check_branch
          %3181 = sbr.rel (%p3179) target = $region60
        $region59: #{tpu_custom_call.1} parent=51 // pred_region
          %s3182 = sand.u32 %s130, 1
          %s3183 = scalar_lea.sflag [#allocation9], %s3182
          %s3184 = sand.u32 %s130, 1
          %s3185 = smul.addr %s3184, 16
          %s3186 = scalar_lea.vmem [#allocation8], %s3185
          %3187 = dma.done %s3183, 256
        $region60: #{tpu_custom_call.1} parent=51 // pred_fallthru
          _
      $region52: #{tpu_custom_call.1} parent=5 // pred_fallthru
        _
    $region6: #{tpu_custom_call.1} parent=1 // loop_footer
      %s26 = sadd.s32 1, %s22
    $region7: #{tpu_custom_call.1} parent=1 // loop_footer_branch
      %21 = sbr.rel target = $region3
    $region8: #{tpu_custom_call.1} parent=1 // loop_exit
      _
    %3188 = vsyncpa [#allocation3], 1
    %s3189 = scalar_lea.sflag [#allocation3], 1
    %3190 = vsyncpa %s3189, 1
    %3191 = vsyncpa [#allocation6], 1
    %s3192 = scalar_lea.sflag [#allocation6], 1
    %3193 = vsyncpa %s3192, 1
    %3194 = vsyncpa [#allocation4], 1
    %s3195 = scalar_lea.sflag [#allocation4], 1
    %3196 = vsyncpa %s3195, 1
    %3197 = vsyncpa [#allocation9], 1
    %s3198 = scalar_lea.sflag [#allocation9], 1
    %3199 = vsyncpa %s3198, 1

</llo_original>
